<compile_context>
chip_gen: v6e
topology: v6e:2x2x1
jax: 0.10.0
libtpu: 0.0.40
codegen_flags: <defaults>
</compile_context>

<pallas_src>
import functools
import math

import jax
import jax.numpy as jnp
from jax import lax
from jax.experimental import pallas as pl
from jax.experimental.pallas import tpu as pltpu


def _elu(x):
    # ELU(alpha=1): x if x > 0 else exp(x) - 1 (clamp keeps exp bounded).
    return jnp.where(x > 0, x, jnp.exp(jnp.minimum(x, 0.0)) - 1.0)


def _split_bf16(x_f32):
    """hi/lo bf16 split: x ~= hi + lo with representation error <= |x| * 2^-18."""
    hi = x_f32.astype(jnp.bfloat16)
    lo = (x_f32 - hi.astype(jnp.float32)).astype(jnp.bfloat16)
    return hi, lo


def _kernel(x_ref, rwh_ref, rwl_ref, ew_ref, b_ref, o_ref, acc_ref,
            *, s, H, W, C, preact):
    """One batch plane per grid step.

    x_ref  : (1, C*H, W)      f32   original-resolution plane (rows = (ci, h))
    rwh_ref: (3, s*C*H, C*H)  bf16  hi part of the banded row-mix matrices (per h-tap)
    rwl_ref: (3, s*C*H, C*H)  bf16  lo (residual) part of the same matrices
    ew_ref : (3, W, W*s)      bf16  exact 0/1 W-upsample + 'same' pad + h-tap selection
    b_ref  : (s*C*H, 1)       f32   bias replicated over (ry, co, Y) rows
    o_ref  : (1, C*H, s*W*s)  f32   rows = (co, Y); lane band ry*Wu:(ry+1)*Wu = row phase ry
    acc_ref: (s*C*H, W*s)     f32   VMEM accumulator (seeded with bias, += per tap)
    """
    Wu = W * s
    CH = C * H

    x2 = x_ref[0]                                            # (C*H, W) f32
    if preact:
        # Torch semantics: ELU before interpolate -> applied on the small pre-upsample
        # block (s^2 less transcendental / EUP work).
        x2 = _elu(x2)
    x_hi, x_lo = _split_bf16(x2)

    # Seed the accumulator with the bias once (lane broadcast of a (s*C*H, 1) column).
    acc_ref[...] = jnp.broadcast_to(b_ref[...], (s * CH, Wu))

    for kj in range(3):                                      # 3 horizontal conv taps
        # (a) H-upsample + vertical taps + Cin->Cout mix on the ORIGINAL width (N = W):
        #     bf16x3 split of the f32 x f32 product -> 3 single-pass bf16 MXU matmuls
        #     (vs ~6 passes for one f32 HIGHEST matmul), f32 accumulation.
        z = jnp.dot(rwh_ref[kj], x_hi, preferred_element_type=jnp.float32)
        z = z + jnp.dot(rwh_ref[kj], x_lo, preferred_element_type=jnp.float32)
        z = z + jnp.dot(rwl_ref[kj], x_hi, preferred_element_type=jnp.float32)

        # (b) W-upsample + 'same' pad + horizontal tap kj: ew is an exact 0/1 selection
        #     matrix (each output column picks <= 1 z column), so a hi/lo split of z is
        #     ~exact in 2 bf16 passes.  In-place accumulate (v7x MRB-friendly).
        z_hi, z_lo = _split_bf16(z)
        acc_ref[...] += jnp.dot(z_hi, ew_ref[kj], preferred_element_type=jnp.float32)
        acc_ref[...] += jnp.dot(z_lo, ew_ref[kj], preferred_element_type=jnp.float32)

    acc = acc_ref[...]
    if not preact:
        acc = _elu(acc)

    # Scatter the s output-row phases into disjoint lane bands; the wrapper's free
    # (metadata-only) reshape interleaves them back into (C, Hu, Wu).  Bands are
    # 128-lane-dense whenever Wu % 128 == 0 (production widths).
    for ry in range(s):
        o_ref[0, :, ry * Wu:(ry + 1) * Wu] = (
            acc[ry * CH:(ry + 1) * CH, :].astype(o_ref.dtype))


def _w_expand_matrices(W, s):
    """(3, W, Wu) 0/1 per-tap selection: ew[kj, w, x'] = 1 iff the 'same'-padded,
    W-upsampled source column x' + kj - 1 is in range and maps to original column w."""
    Wu = W * s
    xp = jnp.arange(Wu)
    kj = jnp.arange(3)
    src = xp[None, :] + kj[:, None] - 1                      # (3, Wu): padded col - 1
    valid = (src >= 0) & (src < Wu)
    hit = valid[:, None, :] & ((src[:, None, :] // s) == jnp.arange(W)[None, :, None])
    return hit.astype(jnp.bfloat16)                          # 0/1 -> exact in bf16


def _row_mix_matrices(weight, s, H):
    """(3, s*Cout*H, Cin*H): for horizontal tap kj, rows (ry, co, Y), cols (ci, h):
         sum_{ki} w[co, ci, ki, kj] * 1[h == Y + floor((ry + ki - 1)/s)]
    i.e. H-axis nearest upsample + 'same' pad + vertical taps + Cin->Cout mixing folded
    into one banded block-Toeplitz matrix per horizontal tap."""
    Cout, Cin = weight.shape[0], weight.shape[1]
    ry = jnp.arange(s)
    ki = jnp.arange(3)
    dy = (ry[:, None] + ki[None, :] - 1) // s                # (s, 3), floor division
    Y = jnp.arange(H)
    h = jnp.arange(H)
    match = (h[None, None, None, :] ==
             Y[None, None, :, None] + dy[:, :, None, None]).astype(jnp.float32)  # (s,3,H,H)
    big = jnp.einsum('oikj,rkyh->jroyih', weight, match)     # (3, s, Cout, H, Cin, H)
    return big.reshape(3, s * Cout * H, Cin * H)


def _vmem_limit_bytes(C, H, W, s):
    """Scoped-VMEM request: double-buffered blocks + scratch + temporaries + headroom."""
    CH, sCH, Wu = C * H, s * C * H, W * s

    def tile(shape, itemsize):
        *lead, r, c = shape
        r = -(-r // 16) * 16             # sublane pad (16 also covers bf16 packing)
        c = -(-c // 128) * 128           # lane pad
        n = itemsize * r * c
        for d in lead:
            n *= d
        return n

    blocks = (tile((1, CH, W), 4)            # x
              + 2 * tile((3, sCH, CH), 2)    # rw_hi + rw_lo (bf16)
              + tile((3, W, Wu), 2)          # ew (bf16)
              + tile((sCH, 1), 4)            # bias
              + tile((1, CH, s * Wu), 4))    # out
    need = 2 * blocks                        # default double-buffering
    need += tile((sCH, Wu), 4)               # accumulator scratch
    need += 4 * tile((sCH, W), 4)            # z / hi-lo temporaries
    need += 4 << 20                          # compiler-internal headroom
    return int(min(128 << 20, max(32 << 20, need)))


def interpolate_upsampling(x, weight, bias, pooling_factor, preact=False):
    """Forward pass of _InterpolateUpSampling.

    x: (B, C, H, W) f32 NCHW; weight: (C, C, 3, 3) OIHW; bias: (C,)
    """
    B, C, H, W = x.shape
    s = int(pooling_factor)
    Hu, Wu = H * s, W * s
    CH = C * H
    sCH = s * CH

    # Layout plumbing: metadata-only reshape, no HBM data movement.
    x2d = x.reshape(B, CH, W)

    # Small constant operands (constant block index -> fetched into VMEM once).
    ew = _w_expand_matrices(W, s)                            # (3, W, Wu) bf16, exact 0/1
    rw = _row_mix_matrices(weight, s, H)                     # (3, s*C*H, C*H) f32
    rw_hi = rw.astype(jnp.bfloat16)                          # bf16x3 operand split:
    rw_lo = (rw - rw_hi.astype(jnp.float32)).astype(jnp.bfloat16)   # rw ~= hi + lo
    brow = jnp.tile(jnp.repeat(bias, H), s).reshape(sCH, 1).astype(jnp.float32)

    kernel = functools.partial(_kernel, s=s, H=H, W=W, C=C, preact=preact)

    # TODO(synk): for very large C*H (rw_hi/rw_lo are each 3*s*(C*H)^2 bf16) add an H-tile
    # grid axis with a 1-row halo (per-tile banded rw + manual DMA for the overlapping x
    # rows) to bound VMEM on v7x (64 MiB) and keep both its TensorCores busy at B == 1.
    # TODO(synk): when C*H is far below the MXU row width (128 on v5e, 256 on v6e/v7x),
    # fold Bt > 1 batch planes per grid step to fill M and amortize per-step overhead.
    out3 = pl.pallas_call(
        kernel,
        out_shape=jax.ShapeDtypeStruct((B, CH, s * Wu), x.dtype),
        grid=(B,),
        in_specs=[
            pl.BlockSpec((1, CH, W), lambda b: (b, 0, 0)),
            pl.BlockSpec((3, sCH, CH), lambda b: (0, 0, 0)),      # constant across grid
            pl.BlockSpec((3, sCH, CH), lambda b: (0, 0, 0)),      # constant across grid
            pl.BlockSpec((3, W, Wu), lambda b: (0, 0, 0)),        # constant across grid
            pl.BlockSpec((sCH, 1), lambda b: (0, 0)),             # constant across grid
        ],
        out_specs=pl.BlockSpec((1, CH, s * Wu), lambda b: (b, 0, 0)),
        scratch_shapes=[pltpu.VMEM((sCH, Wu), jnp.float32)],
        compiler_params=pltpu.CompilerParams(
            dimension_semantics=("parallel",),
            vmem_limit_bytes=_vmem_limit_bytes(C, H, W, s)),
    )(x2d, rw_hi, rw_lo, ew, brow)

    # Free reshape: row (co*H + Y), lane band ry of (B, C*H, s*Wu) lands at output
    # row s*Y + ry -> exact nearest-upsample interleave into NCHW.
    return out3.reshape(B, C, Hu, Wu)


def _reference(x, weight, bias, pooling_factor, preact=False):
    s = int(pooling_factor)
    if preact:
        x = jax.nn.elu(x)
    xu = jnp.repeat(jnp.repeat(x, s, axis=2), s, axis=3)
    out = lax.conv_general_dilated(
        xu, weight, window_strides=(1, 1), padding=((1, 1), (1, 1)),
        dimension_numbers=("NCHW", "OIHW", "NCHW"),
        precision=lax.Precision.HIGHEST)
    out = out + bias[None, :, None, None]
    if not preact:
        out = jax.nn.elu(out)
    return out


if __name__ == "__main__":
    key = jax.random.PRNGKey(0)
    kx, kw, kb = jax.random.split(key, 3)

    B, C, H, W = 2, 4, 16, 16
    pooling_factor = 2

    x = jax.random.normal(kx, (B, C, H, W), dtype=jnp.float32)
    # deterministic Conv2d-style init: U(-1/sqrt(fan_in), 1/sqrt(fan_in)), fan_in = C*3*3
    bound = 1.0 / math.sqrt(C * 3 * 3)
    weight = jax.random.uniform(kw, (C, C, 3, 3), jnp.float32, -bound, bound)
    bias = jax.random.uniform(kb, (C,), jnp.float32, -bound, bound)

    for preact in (False, True):
        out = interpolate_upsampling(x, weight, bias, pooling_factor, preact=preact)
        out = jax.block_until_ready(out)
        ref = _reference(x, weight, bias, pooling_factor, preact=preact)
        assert out.shape == (B, C, H * pooling_factor, W * pooling_factor)
        assert jnp.allclose(out, ref, atol=1e-3, rtol=1e-3), (
            f"mismatch vs JAX reference (preact={preact})")

    print("KERNEL_OK")
</pallas_src>

<mosaic_0001>
module attributes {stable_mosaic.version = 11 : i64} {
  func.func @_kernel(%arg0: i32, %arg1: memref<1x64x16xf32, #tpu.memory_space<vmem>>, %arg2: memref<3x128x64xbf16, #tpu.memory_space<vmem>>, %arg3: memref<3x128x64xbf16, #tpu.memory_space<vmem>>, %arg4: memref<3x16x32xbf16, #tpu.memory_space<vmem>>, %arg5: memref<128x1xf32, #tpu.memory_space<vmem>>, %arg6: memref<1x64x64xf32, #tpu.memory_space<vmem>>, %arg7: memref<128x32xf32, #tpu.memory_space<vmem>>) attributes {dimension_semantics = [#tpu.dimension_semantics<parallel>], iteration_bounds = array<i64: 2>, scalar_prefetch = 0 : i64, scratch_operands = 1 : i64, tpu.core_type = #tpu.core_type<tc>, window_params = [{transform_indices = @transform_0, window_bounds = array<i64: 1, 64, 16>}, {pipeline_mode = #tpu.pipeline_mode<synchronous>, transform_indices = @transform_1, window_bounds = array<i64: 3, 128, 64>}, {pipeline_mode = #tpu.pipeline_mode<synchronous>, transform_indices = @transform_2, window_bounds = array<i64: 3, 128, 64>}, {pipeline_mode = #tpu.pipeline_mode<synchronous>, transform_indices = @transform_3, window_bounds = array<i64: 3, 16, 32>}, {pipeline_mode = #tpu.pipeline_mode<synchronous>, transform_indices = @transform_4, window_bounds = array<i64: 128, 1>}, {transform_indices = @transform_5, window_bounds = array<i64: 1, 64, 64>}]} {
    %c0 = arith.constant 0 : index
    %c0_0 = arith.constant 0 : index
    %c0_1 = arith.constant 0 : index
    %0 = vector.load %arg1[%c0, %c0_0, %c0_1] : memref<1x64x16xf32, #tpu.memory_space<vmem>>, vector<1x64x16xf32>
    %1 = vector.shape_cast %0 : vector<1x64x16xf32> to vector<64x16xf32>
    %2 = arith.truncf %1 : vector<64x16xf32> to vector<64x16xbf16>
    %3 = arith.extf %2 : vector<64x16xbf16> to vector<64x16xf32>
    %4 = arith.subf %1, %3 : vector<64x16xf32>
    %5 = arith.truncf %4 : vector<64x16xf32> to vector<64x16xbf16>
    %c0_2 = arith.constant 0 : index
    %c0_3 = arith.constant 0 : index
    %6 = vector.load %arg5[%c0_2, %c0_3] : memref<128x1xf32, #tpu.memory_space<vmem>>, vector<128x1xf32>
    %7 = vector.shape_cast %6 : vector<128x1xf32> to vector<128x1xf32>
    %8 = vector.broadcast %7 : vector<128x1xf32> to vector<128x32xf32>
    %c0_4 = arith.constant 0 : index
    %c0_5 = arith.constant 0 : index
    %9 = vector.load %arg7[%c0_4, %c0_5] : memref<128x32xf32, #tpu.memory_space<vmem>>, vector<128x32xf32>
    tpu.vector_store %arg7[%c0_4, %c0_5], %8 {strides = array<i32>} : memref<128x32xf32, #tpu.memory_space<vmem>>, vector<128x32xf32>,
    %c0_6 = arith.constant 0 : index
    %c0_7 = arith.constant 0 : index
    %c0_8 = arith.constant 0 : index
    %10 = vector.load %arg2[%c0_6, %c0_7, %c0_8] : memref<3x128x64xbf16, #tpu.memory_space<vmem>>, vector<1x128x64xbf16>
    %11 = vector.shape_cast %10 : vector<1x128x64xbf16> to vector<128x64xbf16>
    %cst = arith.constant dense<0.000000e+00> : vector<128x16xf32>
    %12 = tpu.matmul %11, %2, %cst {dimension_numbers = #tpu.dot_dimension_numbers<[1], [0], [0], [1], [0, 0, 1, 1], [], []>} : vector<128x64xbf16>, vector<64x16xbf16>, vector<128x16xf32> -> vector<128x16xf32>
    %c0_9 = arith.constant 0 : index
    %c0_10 = arith.constant 0 : index
    %c0_11 = arith.constant 0 : index
    %13 = vector.load %arg2[%c0_9, %c0_10, %c0_11] : memref<3x128x64xbf16, #tpu.memory_space<vmem>>, vector<1x128x64xbf16>
    %14 = vector.shape_cast %13 : vector<1x128x64xbf16> to vector<128x64xbf16>
    %cst_12 = arith.constant dense<0.000000e+00> : vector<128x16xf32>
    %15 = tpu.matmul %14, %5, %cst_12 {dimension_numbers = #tpu.dot_dimension_numbers<[1], [0], [0], [1], [0, 0, 1, 1], [], []>} : vector<128x64xbf16>, vector<64x16xbf16>, vector<128x16xf32> -> vector<128x16xf32>
    %16 = arith.addf %12, %15 : vector<128x16xf32>
    %c0_13 = arith.constant 0 : index
    %c0_14 = arith.constant 0 : index
    %c0_15 = arith.constant 0 : index
    %17 = vector.load %arg3[%c0_13, %c0_14, %c0_15] : memref<3x128x64xbf16, #tpu.memory_space<vmem>>, vector<1x128x64xbf16>
    %18 = vector.shape_cast %17 : vector<1x128x64xbf16> to vector<128x64xbf16>
    %cst_16 = arith.constant dense<0.000000e+00> : vector<128x16xf32>
    %19 = tpu.matmul %18, %2, %cst_16 {dimension_numbers = #tpu.dot_dimension_numbers<[1], [0], [0], [1], [0, 0, 1, 1], [], []>} : vector<128x64xbf16>, vector<64x16xbf16>, vector<128x16xf32> -> vector<128x16xf32>
    %20 = arith.addf %16, %19 : vector<128x16xf32>
    %21 = arith.truncf %20 : vector<128x16xf32> to vector<128x16xbf16>
    %22 = arith.extf %21 : vector<128x16xbf16> to vector<128x16xf32>
    %23 = arith.subf %20, %22 : vector<128x16xf32>
    %24 = arith.truncf %23 : vector<128x16xf32> to vector<128x16xbf16>
    %c0_17 = arith.constant 0 : index
    %c0_18 = arith.constant 0 : index
    %25 = vector.load %arg7[%c0_17, %c0_18] : memref<128x32xf32, #tpu.memory_space<vmem>>, vector<128x32xf32>
    %c0_19 = arith.constant 0 : index
    %c0_20 = arith.constant 0 : index
    %c0_21 = arith.constant 0 : index
    %26 = vector.load %arg4[%c0_19, %c0_20, %c0_21] : memref<3x16x32xbf16, #tpu.memory_space<vmem>>, vector<1x16x32xbf16>
    %27 = vector.shape_cast %26 : vector<1x16x32xbf16> to vector<16x32xbf16>
    %cst_22 = arith.constant dense<0.000000e+00> : vector<128x32xf32>
    %28 = tpu.matmul %21, %27, %cst_22 {dimension_numbers = #tpu.dot_dimension_numbers<[1], [0], [0], [1], [0, 0, 1, 1], [], []>} : vector<128x16xbf16>, vector<16x32xbf16>, vector<128x32xf32> -> vector<128x32xf32>
    %29 = arith.addf %25, %28 : vector<128x32xf32>
    %c0_23 = arith.constant 0 : index
    %c0_24 = arith.constant 0 : index
    %30 = vector.load %arg7[%c0_23, %c0_24] : memref<128x32xf32, #tpu.memory_space<vmem>>, vector<128x32xf32>
    tpu.vector_store %arg7[%c0_23, %c0_24], %29 {strides = array<i32>} : memref<128x32xf32, #tpu.memory_space<vmem>>, vector<128x32xf32>,
    %c0_25 = arith.constant 0 : index
    %c0_26 = arith.constant 0 : index
    %31 = vector.load %arg7[%c0_25, %c0_26] : memref<128x32xf32, #tpu.memory_space<vmem>>, vector<128x32xf32>
    %c0_27 = arith.constant 0 : index
    %c0_28 = arith.constant 0 : index
    %c0_29 = arith.constant 0 : index
    %32 = vector.load %arg4[%c0_27, %c0_28, %c0_29] : memref<3x16x32xbf16, #tpu.memory_space<vmem>>, vector<1x16x32xbf16>
    %33 = vector.shape_cast %32 : vector<1x16x32xbf16> to vector<16x32xbf16>
    %cst_30 = arith.constant dense<0.000000e+00> : vector<128x32xf32>
    %34 = tpu.matmul %24, %33, %cst_30 {dimension_numbers = #tpu.dot_dimension_numbers<[1], [0], [0], [1], [0, 0, 1, 1], [], []>} : vector<128x16xbf16>, vector<16x32xbf16>, vector<128x32xf32> -> vector<128x32xf32>
    %35 = arith.addf %31, %34 : vector<128x32xf32>
    %c0_31 = arith.constant 0 : index
    %c0_32 = arith.constant 0 : index
    %36 = vector.load %arg7[%c0_31, %c0_32] : memref<128x32xf32, #tpu.memory_space<vmem>>, vector<128x32xf32>
    tpu.vector_store %arg7[%c0_31, %c0_32], %35 {strides = array<i32>} : memref<128x32xf32, #tpu.memory_space<vmem>>, vector<128x32xf32>,
    %c1 = arith.constant 1 : index
    %c0_33 = arith.constant 0 : index
    %c0_34 = arith.constant 0 : index
    %37 = vector.load %arg2[%c1, %c0_33, %c0_34] : memref<3x128x64xbf16, #tpu.memory_space<vmem>>, vector<1x128x64xbf16>
    %38 = vector.shape_cast %37 : vector<1x128x64xbf16> to vector<128x64xbf16>
    %cst_35 = arith.constant dense<0.000000e+00> : vector<128x16xf32>
    %39 = tpu.matmul %38, %2, %cst_35 {dimension_numbers = #tpu.dot_dimension_numbers<[1], [0], [0], [1], [0, 0, 1, 1], [], []>} : vector<128x64xbf16>, vector<64x16xbf16>, vector<128x16xf32> -> vector<128x16xf32>
    %c1_36 = arith.constant 1 : index
    %c0_37 = arith.constant 0 : index
    %c0_38 = arith.constant 0 : index
    %40 = vector.load %arg2[%c1_36, %c0_37, %c0_38] : memref<3x128x64xbf16, #tpu.memory_space<vmem>>, vector<1x128x64xbf16>
    %41 = vector.shape_cast %40 : vector<1x128x64xbf16> to vector<128x64xbf16>
    %cst_39 = arith.constant dense<0.000000e+00> : vector<128x16xf32>
    %42 = tpu.matmul %41, %5, %cst_39 {dimension_numbers = #tpu.dot_dimension_numbers<[1], [0], [0], [1], [0, 0, 1, 1], [], []>} : vector<128x64xbf16>, vector<64x16xbf16>, vector<128x16xf32> -> vector<128x16xf32>
    %43 = arith.addf %39, %42 : vector<128x16xf32>
    %c1_40 = arith.constant 1 : index
    %c0_41 = arith.constant 0 : index
    %c0_42 = arith.constant 0 : index
    %44 = vector.load %arg3[%c1_40, %c0_41, %c0_42] : memref<3x128x64xbf16, #tpu.memory_space<vmem>>, vector<1x128x64xbf16>
    %45 = vector.shape_cast %44 : vector<1x128x64xbf16> to vector<128x64xbf16>
    %cst_43 = arith.constant dense<0.000000e+00> : vector<128x16xf32>
    %46 = tpu.matmul %45, %2, %cst_43 {dimension_numbers = #tpu.dot_dimension_numbers<[1], [0], [0], [1], [0, 0, 1, 1], [], []>} : vector<128x64xbf16>, vector<64x16xbf16>, vector<128x16xf32> -> vector<128x16xf32>
    %47 = arith.addf %43, %46 : vector<128x16xf32>
    %48 = arith.truncf %47 : vector<128x16xf32> to vector<128x16xbf16>
    %49 = arith.extf %48 : vector<128x16xbf16> to vector<128x16xf32>
    %50 = arith.subf %47, %49 : vector<128x16xf32>
    %51 = arith.truncf %50 : vector<128x16xf32> to vector<128x16xbf16>
    %c0_44 = arith.constant 0 : index
    %c0_45 = arith.constant 0 : index
    %52 = vector.load %arg7[%c0_44, %c0_45] : memref<128x32xf32, #tpu.memory_space<vmem>>, vector<128x32xf32>
    %c1_46 = arith.constant 1 : index
    %c0_47 = arith.constant 0 : index
    %c0_48 = arith.constant 0 : index
    %53 = vector.load %arg4[%c1_46, %c0_47, %c0_48] : memref<3x16x32xbf16, #tpu.memory_space<vmem>>, vector<1x16x32xbf16>
    %54 = vector.shape_cast %53 : vector<1x16x32xbf16> to vector<16x32xbf16>
    %cst_49 = arith.constant dense<0.000000e+00> : vector<128x32xf32>
    %55 = tpu.matmul %48, %54, %cst_49 {dimension_numbers = #tpu.dot_dimension_numbers<[1], [0], [0], [1], [0, 0, 1, 1], [], []>} : vector<128x16xbf16>, vector<16x32xbf16>, vector<128x32xf32> -> vector<128x32xf32>
    %56 = arith.addf %52, %55 : vector<128x32xf32>
    %c0_50 = arith.constant 0 : index
    %c0_51 = arith.constant 0 : index
    %57 = vector.load %arg7[%c0_50, %c0_51] : memref<128x32xf32, #tpu.memory_space<vmem>>, vector<128x32xf32>
    tpu.vector_store %arg7[%c0_50, %c0_51], %56 {strides = array<i32>} : memref<128x32xf32, #tpu.memory_space<vmem>>, vector<128x32xf32>,
    %c0_52 = arith.constant 0 : index
    %c0_53 = arith.constant 0 : index
    %58 = vector.load %arg7[%c0_52, %c0_53] : memref<128x32xf32, #tpu.memory_space<vmem>>, vector<128x32xf32>
    %c1_54 = arith.constant 1 : index
    %c0_55 = arith.constant 0 : index
    %c0_56 = arith.constant 0 : index
    %59 = vector.load %arg4[%c1_54, %c0_55, %c0_56] : memref<3x16x32xbf16, #tpu.memory_space<vmem>>, vector<1x16x32xbf16>
    %60 = vector.shape_cast %59 : vector<1x16x32xbf16> to vector<16x32xbf16>
    %cst_57 = arith.constant dense<0.000000e+00> : vector<128x32xf32>
    %61 = tpu.matmul %51, %60, %cst_57 {dimension_numbers = #tpu.dot_dimension_numbers<[1], [0], [0], [1], [0, 0, 1, 1], [], []>} : vector<128x16xbf16>, vector<16x32xbf16>, vector<128x32xf32> -> vector<128x32xf32>
    %62 = arith.addf %58, %61 : vector<128x32xf32>
    %c0_58 = arith.constant 0 : index
    %c0_59 = arith.constant 0 : index
    %63 = vector.load %arg7[%c0_58, %c0_59] : memref<128x32xf32, #tpu.memory_space<vmem>>, vector<128x32xf32>
    tpu.vector_store %arg7[%c0_58, %c0_59], %62 {strides = array<i32>} : memref<128x32xf32, #tpu.memory_space<vmem>>, vector<128x32xf32>,
    %c2 = arith.constant 2 : index
    %c0_60 = arith.constant 0 : index
    %c0_61 = arith.constant 0 : index
    %64 = vector.load %arg2[%c2, %c0_60, %c0_61] : memref<3x128x64xbf16, #tpu.memory_space<vmem>>, vector<1x128x64xbf16>
    %65 = vector.shape_cast %64 : vector<1x128x64xbf16> to vector<128x64xbf16>
    %cst_62 = arith.constant dense<0.000000e+00> : vector<128x16xf32>
    %66 = tpu.matmul %65, %2, %cst_62 {dimension_numbers = #tpu.dot_dimension_numbers<[1], [0], [0], [1], [0, 0, 1, 1], [], []>} : vector<128x64xbf16>, vector<64x16xbf16>, vector<128x16xf32> -> vector<128x16xf32>
    %c2_63 = arith.constant 2 : index
    %c0_64 = arith.constant 0 : index
    %c0_65 = arith.constant 0 : index
    %67 = vector.load %arg2[%c2_63, %c0_64, %c0_65] : memref<3x128x64xbf16, #tpu.memory_space<vmem>>, vector<1x128x64xbf16>
    %68 = vector.shape_cast %67 : vector<1x128x64xbf16> to vector<128x64xbf16>
    %cst_66 = arith.constant dense<0.000000e+00> : vector<128x16xf32>
    %69 = tpu.matmul %68, %5, %cst_66 {dimension_numbers = #tpu.dot_dimension_numbers<[1], [0], [0], [1], [0, 0, 1, 1], [], []>} : vector<128x64xbf16>, vector<64x16xbf16>, vector<128x16xf32> -> vector<128x16xf32>
    %70 = arith.addf %66, %69 : vector<128x16xf32>
    %c2_67 = arith.constant 2 : index
    %c0_68 = arith.constant 0 : index
    %c0_69 = arith.constant 0 : index
    %71 = vector.load %arg3[%c2_67, %c0_68, %c0_69] : memref<3x128x64xbf16, #tpu.memory_space<vmem>>, vector<1x128x64xbf16>
    %72 = vector.shape_cast %71 : vector<1x128x64xbf16> to vector<128x64xbf16>
    %cst_70 = arith.constant dense<0.000000e+00> : vector<128x16xf32>
    %73 = tpu.matmul %72, %2, %cst_70 {dimension_numbers = #tpu.dot_dimension_numbers<[1], [0], [0], [1], [0, 0, 1, 1], [], []>} : vector<128x64xbf16>, vector<64x16xbf16>, vector<128x16xf32> -> vector<128x16xf32>
    %74 = arith.addf %70, %73 : vector<128x16xf32>
    %75 = arith.truncf %74 : vector<128x16xf32> to vector<128x16xbf16>
    %76 = arith.extf %75 : vector<128x16xbf16> to vector<128x16xf32>
    %77 = arith.subf %74, %76 : vector<128x16xf32>
    %78 = arith.truncf %77 : vector<128x16xf32> to vector<128x16xbf16>
    %c0_71 = arith.constant 0 : index
    %c0_72 = arith.constant 0 : index
    %79 = vector.load %arg7[%c0_71, %c0_72] : memref<128x32xf32, #tpu.memory_space<vmem>>, vector<128x32xf32>
    %c2_73 = arith.constant 2 : index
    %c0_74 = arith.constant 0 : index
    %c0_75 = arith.constant 0 : index
    %80 = vector.load %arg4[%c2_73, %c0_74, %c0_75] : memref<3x16x32xbf16, #tpu.memory_space<vmem>>, vector<1x16x32xbf16>
    %81 = vector.shape_cast %80 : vector<1x16x32xbf16> to vector<16x32xbf16>
    %cst_76 = arith.constant dense<0.000000e+00> : vector<128x32xf32>
    %82 = tpu.matmul %75, %81, %cst_76 {dimension_numbers = #tpu.dot_dimension_numbers<[1], [0], [0], [1], [0, 0, 1, 1], [], []>} : vector<128x16xbf16>, vector<16x32xbf16>, vector<128x32xf32> -> vector<128x32xf32>
    %83 = arith.addf %79, %82 : vector<128x32xf32>
    %c0_77 = arith.constant 0 : index
    %c0_78 = arith.constant 0 : index
    %84 = vector.load %arg7[%c0_77, %c0_78] : memref<128x32xf32, #tpu.memory_space<vmem>>, vector<128x32xf32>
    tpu.vector_store %arg7[%c0_77, %c0_78], %83 {strides = array<i32>} : memref<128x32xf32, #tpu.memory_space<vmem>>, vector<128x32xf32>,
    %c0_79 = arith.constant 0 : index
    %c0_80 = arith.constant 0 : index
    %85 = vector.load %arg7[%c0_79, %c0_80] : memref<128x32xf32, #tpu.memory_space<vmem>>, vector<128x32xf32>
    %c2_81 = arith.constant 2 : index
    %c0_82 = arith.constant 0 : index
    %c0_83 = arith.constant 0 : index
    %86 = vector.load %arg4[%c2_81, %c0_82, %c0_83] : memref<3x16x32xbf16, #tpu.memory_space<vmem>>, vector<1x16x32xbf16>
    %87 = vector.shape_cast %86 : vector<1x16x32xbf16> to vector<16x32xbf16>
    %cst_84 = arith.constant dense<0.000000e+00> : vector<128x32xf32>
    %88 = tpu.matmul %78, %87, %cst_84 {dimension_numbers = #tpu.dot_dimension_numbers<[1], [0], [0], [1], [0, 0, 1, 1], [], []>} : vector<128x16xbf16>, vector<16x32xbf16>, vector<128x32xf32> -> vector<128x32xf32>
    %89 = arith.addf %85, %88 : vector<128x32xf32>
    %c0_85 = arith.constant 0 : index
    %c0_86 = arith.constant 0 : index
    %90 = vector.load %arg7[%c0_85, %c0_86] : memref<128x32xf32, #tpu.memory_space<vmem>>, vector<128x32xf32>
    tpu.vector_store %arg7[%c0_85, %c0_86], %89 {strides = array<i32>} : memref<128x32xf32, #tpu.memory_space<vmem>>, vector<128x32xf32>,
    %c0_87 = arith.constant 0 : index
    %c0_88 = arith.constant 0 : index
    %91 = vector.load %arg7[%c0_87, %c0_88] : memref<128x32xf32, #tpu.memory_space<vmem>>, vector<128x32xf32>
    %cst_89 = arith.constant 0.000000e+00 : f32
    %92 = vector.broadcast %cst_89 : f32 to vector<128x32xf32>
    %93 = arith.cmpf ogt, %91, %92 : vector<128x32xf32>
    %cst_90 = arith.constant 0.000000e+00 : f32
    %94 = vector.broadcast %cst_90 : f32 to vector<128x32xf32>
    %95 = arith.minimumf %91, %94 : vector<128x32xf32>
    %96 = math.exp %95 : vector<128x32xf32>
    %cst_91 = arith.constant 1.000000e+00 : f32
    %97 = vector.broadcast %cst_91 : f32 to vector<128x32xf32>
    %98 = arith.subf %96, %97 : vector<128x32xf32>
    %99 = arith.select %93, %91, %98 : vector<128x32xi1>, vector<128x32xf32>
    %100 = vector.extract_strided_slice %99 {offsets = [0, 0], sizes = [64, 32], strides = [1, 1]} : vector<128x32xf32> to vector<64x32xf32>
    %c0_92 = arith.constant 0 : index
    %c0_93 = arith.constant 0 : index
    %c0_94 = arith.constant 0 : index
    %101 = vector.load %arg6[%c0_92, %c0_93, %c0_94] : memref<1x64x64xf32, #tpu.memory_space<vmem>>, vector<1x64x32xf32>
    %102 = vector.shape_cast %101 : vector<1x64x32xf32> to vector<64x32xf32>
    %103 = vector.shape_cast %100 : vector<64x32xf32> to vector<1x64x32xf32>
    tpu.vector_store %arg6[%c0_92, %c0_93, %c0_94], %103 {strides = array<i32>} : memref<1x64x64xf32, #tpu.memory_space<vmem>>, vector<1x64x32xf32>,
    %104 = vector.extract_strided_slice %99 {offsets = [64, 0], sizes = [64, 32], strides = [1, 1]} : vector<128x32xf32> to vector<64x32xf32>
    %c0_95 = arith.constant 0 : index
    %c0_96 = arith.constant 0 : index
    %c32 = arith.constant 32 : index
    %105 = vector.load %arg6[%c0_95, %c0_96, %c32] : memref<1x64x64xf32, #tpu.memory_space<vmem>>, vector<1x64x32xf32>
    %106 = vector.shape_cast %105 : vector<1x64x32xf32> to vector<64x32xf32>
    %107 = vector.shape_cast %104 : vector<64x32xf32> to vector<1x64x32xf32>
    tpu.vector_store %arg6[%c0_95, %c0_96, %c32], %107 {strides = array<i32>} : memref<1x64x64xf32, #tpu.memory_space<vmem>>, vector<1x64x32xf32>,
    return
  }
  func.func @transform_0(%arg0: i32) -> (i32, i32, i32) {
    %c0_i32 = arith.constant 0 : i32
    %c0_i32_0 = arith.constant 0 : i32
    %c0_i32_1 = arith.constant 0 : i32
    return %arg0, %c0_i32, %c0_i32_0 : i32, i32, i32
  }
  func.func @transform_1(%arg0: i32) -> (i32, i32, i32) {
    %c0_i32 = arith.constant 0 : i32
    %c0_i32_0 = arith.constant 0 : i32
    %c0_i32_1 = arith.constant 0 : i32
    %c0_i32_2 = arith.constant 0 : i32
    return %c0_i32, %c0_i32_0, %c0_i32_1 : i32, i32, i32
  }
  func.func @transform_2(%arg0: i32) -> (i32, i32, i32) {
    %c0_i32 = arith.constant 0 : i32
    %c0_i32_0 = arith.constant 0 : i32
    %c0_i32_1 = arith.constant 0 : i32
    %c0_i32_2 = arith.constant 0 : i32
    return %c0_i32, %c0_i32_0, %c0_i32_1 : i32, i32, i32
  }
  func.func @transform_3(%arg0: i32) -> (i32, i32, i32) {
    %c0_i32 = arith.constant 0 : i32
    %c0_i32_0 = arith.constant 0 : i32
    %c0_i32_1 = arith.constant 0 : i32
    %c0_i32_2 = arith.constant 0 : i32
    return %c0_i32, %c0_i32_0, %c0_i32_1 : i32, i32, i32
  }
  func.func @transform_4(%arg0: i32) -> (i32, i32) {
    %c0_i32 = arith.constant 0 : i32
    %c0_i32_0 = arith.constant 0 : i32
    %c0_i32_1 = arith.constant 0 : i32
    return %c0_i32, %c0_i32_0 : i32, i32
  }
  func.func @transform_5(%arg0: i32) -> (i32, i32, i32) {
    %c0_i32 = arith.constant 0 : i32
    %c0_i32_0 = arith.constant 0 : i32
    %c0_i32_1 = arith.constant 0 : i32
    return %arg0, %c0_i32, %c0_i32_0 : i32, i32, i32
  }
}

</mosaic_0001>

<llo_original>
// kernel: tpu_custom_call.1
$region0: #{tpu_custom_call.1}
  #allocation0 [shape = 'u32[]', space=smem, size = 0x4, offset = 0x4, fixed_abs, tag = 'smem constant byte address 0x4 - core index']
  #allocation1 [shape = 'u32[144,128]{1,0:T(1,128)}', space=vmem, size = 0x12000, scoped, tag = 'internal scratch']
  #allocation2 [shape = 'f32[128,32]{1,0:T(8,128)}', space=vmem, size = 0x10000, scoped, tag = 'scratch operand']
  %s0 = inlined_call_operand.vmem [shape: f32[2,64,16], index: 0, kind: input, shape index: {}]
  %s1 = inlined_call_operand.vmem [shape: bf16[3,128,64], index: 1, kind: input, shape index: {}]
  %s2 = inlined_call_operand.vmem [shape: bf16[3,128,64], index: 2, kind: input, shape index: {}]
  %s3 = inlined_call_operand.vmem [shape: bf16[3,16,32], index: 3, kind: input, shape index: {}]
  %s4 = inlined_call_operand.vmem [shape: f32[128,1], index: 4, kind: input, shape index: {}]
  %s5 = inlined_call_operand.hbm [shape: f32[2,64,64], index: 5, kind: output, shape index: {}]
  %s6 = sld [smem:[#allocation0]]
  $region53: #{tpu_custom_call.1} parent=0
    _
  %s8 = ssub.s32 1, %s6
  %s9 = scalar_select 0, %s8, %s6
  $region1: #{tpu_custom_call.1} parent=0
    #allocation3 [shape = 'u8[65536]{0}', space=vmem, size = 0x10000, scoped, tag = 'output window, operand 0']
    #allocation4 [shape = 's32[2]{0}', space=sflag, size = 0x8, scoped, tag = 'scoped memory for tpu_custom_call.1']
    %10 = vsyncpa [#allocation4], 0
    %s11 = scalar_lea.sflag [#allocation4], 1
    %12 = vsyncpa %s11, 0
    loop: start=0, step=1, limit=4
    $region2: #{tpu_custom_call.1} parent=1 // loop_pre_header
      _
    $region3: #{tpu_custom_call.1} parent=1 // loop_header
      %s14 = sphi 0, %s18
      %p15 = scmp.ge.s32.totalorder %s14, 4
      %s24 = sphi 0, %s26
      %s27 = sphi 0, %s24
      %s28 = sphi 0, %s27
      %s44 = sphi 0, %s28
      %s48 = sphi 0, %s48
      %s50 = sphi 0, %s48
      %s51 = sphi 0, %s50
      %s65 = sphi 0, %s51
      %s69 = sphi 0, %s69
      %s71 = sphi 0, %s69
      %s72 = sphi 0, %s71
      %s86 = sphi 0, %s72
      %s90 = sphi 0, %s90
      %s92 = sphi 0, %s90
      %s93 = sphi 0, %s92
      %s107 = sphi 0, %s93
      %s111 = sphi 0, %s111
      %s113 = sphi 0, %s111
      %s114 = sphi 0, %s113
      %s128 = sphi 0, %s114
      %s134 = sphi 0, %s136
      %s137 = sphi 0, %s134
      %s138 = sphi 0, %s137
      %s154 = sphi 0, %s138
    $region4: #{tpu_custom_call.1} parent=1 // loop_header_branch
      %17 = sbr.rel (%p15) target = $region8
    $region5: #{tpu_custom_call.1} parent=1 // loop_body
      %s19 = ssub.s32 %s14, 1
      %s20 = ssub.s32 %s14, 2
      %s21 = sadd.s32 %s14, 1
      %s22 = ssub.s32 %s14, %s21
      %p23 = scmp.eq.s32.totalorder %s22, 0
      %s25 = sadd.s32 %s24, 1
      %s26 = scalar_select %p23, %s24, %s25
      %p29 = pneg %p23
      %p30 = scmp.eq.s32.totalorder %s14, 1
      %p31 = por %p29, %p30
      %p32 = scmp.ne.s32.totalorder %s24, %s27
      %p33 = scmp.eq.s32.totalorder %s14, 0
      %p34 = por %p32, %p33
      %p35 = scmp.ne.s32.totalorder %s24, %s27
      %p36 = scmp.eq.s32.totalorder %s19, 1
      %p37 = por %p35, %p36
      %p38 = scmp.ne.s32.totalorder %s27, %s28
      %p39 = scmp.eq.s32.totalorder %s19, 0
      %p40 = por %p38, %p39
      %p41 = scmp.ne.s32.totalorder %s27, %s28
      %p42 = scmp.eq.s32.totalorder %s20, 1
      %p43 = por %p41, %p42
      %p45 = scmp.ne.s32.totalorder %s28, %s44
      %p46 = scmp.eq.s32.totalorder %s20, 0
      %p47 = por %p45, %p46
      %s49 = sadd.s32 %s48, 1
      %p52 = scmp.eq.s32.totalorder %s14, 1
      %p53 = scmp.ne.s32.totalorder %s48, %s50
      %p54 = scmp.eq.s32.totalorder %s14, 0
      %p55 = por %p53, %p54
      %p56 = scmp.ne.s32.totalorder %s48, %s50
      %p57 = scmp.eq.s32.totalorder %s19, 1
      %p58 = por %p56, %p57
      %p59 = scmp.ne.s32.totalorder %s50, %s51
      %p60 = scmp.eq.s32.totalorder %s19, 0
      %p61 = por %p59, %p60
      %p62 = scmp.ne.s32.totalorder %s50, %s51
      %p63 = scmp.eq.s32.totalorder %s20, 1
      %p64 = por %p62, %p63
      %p66 = scmp.ne.s32.totalorder %s51, %s65
      %p67 = scmp.eq.s32.totalorder %s20, 0
      %p68 = por %p66, %p67
      %s70 = sadd.s32 %s69, 1
      %p73 = scmp.eq.s32.totalorder %s14, 1
      %p74 = scmp.ne.s32.totalorder %s69, %s71
      %p75 = scmp.eq.s32.totalorder %s14, 0
      %p76 = por %p74, %p75
      %p77 = scmp.ne.s32.totalorder %s69, %s71
      %p78 = scmp.eq.s32.totalorder %s19, 1
      %p79 = por %p77, %p78
      %p80 = scmp.ne.s32.totalorder %s71, %s72
      %p81 = scmp.eq.s32.totalorder %s19, 0
      %p82 = por %p80, %p81
      %p83 = scmp.ne.s32.totalorder %s71, %s72
      %p84 = scmp.eq.s32.totalorder %s20, 1
      %p85 = por %p83, %p84
      %p87 = scmp.ne.s32.totalorder %s72, %s86
      %p88 = scmp.eq.s32.totalorder %s20, 0
      %p89 = por %p87, %p88
      %s91 = sadd.s32 %s90, 1
      %p94 = scmp.eq.s32.totalorder %s14, 1
      %p95 = scmp.ne.s32.totalorder %s90, %s92
      %p96 = scmp.eq.s32.totalorder %s14, 0
      %p97 = por %p95, %p96
      %p98 = scmp.ne.s32.totalorder %s90, %s92
      %p99 = scmp.eq.s32.totalorder %s19, 1
      %p100 = por %p98, %p99
      %p101 = scmp.ne.s32.totalorder %s92, %s93
      %p102 = scmp.eq.s32.totalorder %s19, 0
      %p103 = por %p101, %p102
      %p104 = scmp.ne.s32.totalorder %s92, %s93
      %p105 = scmp.eq.s32.totalorder %s20, 1
      %p106 = por %p104, %p105
      %p108 = scmp.ne.s32.totalorder %s93, %s107
      %p109 = scmp.eq.s32.totalorder %s20, 0
      %p110 = por %p108, %p109
      %s112 = sadd.s32 %s111, 1
      %p115 = scmp.eq.s32.totalorder %s14, 1
      %p116 = scmp.ne.s32.totalorder %s111, %s113
      %p117 = scmp.eq.s32.totalorder %s14, 0
      %p118 = por %p116, %p117
      %p119 = scmp.ne.s32.totalorder %s111, %s113
      %p120 = scmp.eq.s32.totalorder %s19, 1
      %p121 = por %p119, %p120
      %p122 = scmp.ne.s32.totalorder %s113, %s114
      %p123 = scmp.eq.s32.totalorder %s19, 0
      %p124 = por %p122, %p123
      %p125 = scmp.ne.s32.totalorder %s113, %s114
      %p126 = scmp.eq.s32.totalorder %s20, 1
      %p127 = por %p125, %p126
      %p129 = scmp.ne.s32.totalorder %s114, %s128
      %p130 = scmp.eq.s32.totalorder %s20, 0
      %p131 = por %p129, %p130
      %s132 = ssub.s32 %s14, %s21
      %p133 = scmp.eq.s32.totalorder %s132, 0
      %s135 = sadd.s32 %s134, 1
      %s136 = scalar_select %p133, %s134, %s135
      %p139 = pneg %p133
      %p140 = scmp.eq.s32.totalorder %s14, 1
      %p141 = por %p139, %p140
      %p142 = scmp.ne.s32.totalorder %s134, %s137
      %p143 = scmp.eq.s32.totalorder %s14, 0
      %p144 = por %p142, %p143
      %p145 = scmp.ne.s32.totalorder %s134, %s137
      %p146 = scmp.eq.s32.totalorder %s19, 1
      %p147 = por %p145, %p146
      %p148 = scmp.ne.s32.totalorder %s137, %s138
      %p149 = scmp.eq.s32.totalorder %s19, 0
      %p150 = por %p148, %p149
      %p151 = scmp.ne.s32.totalorder %s137, %s138
      %p152 = scmp.eq.s32.totalorder %s20, 1
      %p153 = por %p151, %p152
      %p155 = scmp.ne.s32.totalorder %s138, %s154
      %p156 = scmp.eq.s32.totalorder %s20, 0
      %p157 = por %p155, %p156
      %p158 = scmp.le.s32.totalorder 1, %s14
      %p159 = scmp.lt.s32.totalorder %s14, 3
      %p160 = pnand %p158, %p159
      %p161 = pneg %p160
      // Predicated region
      $region9: #{tpu_custom_call.1} parent=5 // pred_check
        _
      $region10: #{tpu_custom_call.1} parent=5 // pred_check_branch
        %163 = sbr.rel (%p160) target = $region12
      $region11: #{tpu_custom_call.1} parent=5 // pred_region
        %s164 = ssub.s32 %s14, 1
        // Predicated region
        $region13: #{tpu_custom_call.1} parent=11 // pred_check
          %p165 = pneg %p61
        $region14: #{tpu_custom_call.1} parent=11 // pred_check_branch
          %167 = sbr.rel (%p165) target = $region16
        $region15: #{tpu_custom_call.1} parent=11 // pred_region
          _
        $region16: #{tpu_custom_call.1} parent=11 // pred_fallthru
          _
        // Predicated region
        $region17: #{tpu_custom_call.1} parent=11 // pred_check
          %p168 = pneg %p82
        $region18: #{tpu_custom_call.1} parent=11 // pred_check_branch
          %170 = sbr.rel (%p168) target = $region20
        $region19: #{tpu_custom_call.1} parent=11 // pred_region
          _
        $region20: #{tpu_custom_call.1} parent=11 // pred_fallthru
          _
        // Predicated region
        $region21: #{tpu_custom_call.1} parent=11 // pred_check
          %p171 = pneg %p103
        $region22: #{tpu_custom_call.1} parent=11 // pred_check_branch
          %173 = sbr.rel (%p171) target = $region24
        $region23: #{tpu_custom_call.1} parent=11 // pred_region
          _
        $region24: #{tpu_custom_call.1} parent=11 // pred_fallthru
          _
        // Predicated region
        $region25: #{tpu_custom_call.1} parent=11 // pred_check
          %p174 = pneg %p124
        $region26: #{tpu_custom_call.1} parent=11 // pred_check_branch
          %176 = sbr.rel (%p174) target = $region28
        $region27: #{tpu_custom_call.1} parent=11 // pred_region
          _
        $region28: #{tpu_custom_call.1} parent=11 // pred_fallthru
          _
      $region12: #{tpu_custom_call.1} parent=5 // pred_fallthru
        _
      %p177 = scmp.lt.s32.totalorder %s14, 2
      // Predicated region
      $region29: #{tpu_custom_call.1} parent=5 // pred_check
        %p178 = pneg %p177
      $region30: #{tpu_custom_call.1} parent=5 // pred_check_branch
        %180 = sbr.rel (%p178) target = $region32
      $region31: #{tpu_custom_call.1} parent=5 // pred_region
        // Predicated region
        $region33: #{tpu_custom_call.1} parent=31 // pred_check
          %p181 = pneg %p34
        $region34: #{tpu_custom_call.1} parent=31 // pred_check_branch
          %183 = sbr.rel (%p181) target = $region36
        $region35: #{tpu_custom_call.1} parent=31 // pred_region
          %p184 = scmp.lt.s32.totalorder %s14, 1
          %s185 = scalar_select %p184, %s14, 1
          %s186 = smul.addr %s185, 8
          %s187 = smul.addr %s186, 8
          %s188 = scalar_lea.vmem %s0, %s187
        $region36: #{tpu_custom_call.1} parent=31 // pred_fallthru
          _
      $region32: #{tpu_custom_call.1} parent=5 // pred_fallthru
        _
      %p189 = scmp.le.s32.totalorder 1, %s14
      %p190 = scmp.lt.s32.totalorder %s14, 3
      %p191 = pnand %p189, %p190
      %p192 = pneg %p191
      // Predicated region
      $region37: #{tpu_custom_call.1} parent=5 // pred_check
        _
      $region38: #{tpu_custom_call.1} parent=5 // pred_check_branch
        %194 = sbr.rel (%p191) target = $region40
      $region39: #{tpu_custom_call.1} parent=5 // pred_region
        %s195 = ssub.s32 %s14, 1
        %p196 = scmp.lt.s32.totalorder %s19, 1
        %s197 = scalar_select %p196, %s19, 1
        %s198 = smul.addr %s197, 8
        %s199 = smul.addr %s198, 8
        %s200 = scalar_lea.vmem %s0, %s199
        %p201 = pneg %p40
        %p202 = pneg %p37
        %p203 = pneg %p61
        %p204 = pneg %p58
        %p205 = pneg %p82
        %p206 = pneg %p79
        %p207 = pneg %p103
        %p208 = pneg %p100
        %p209 = pneg %p124
        %p210 = pneg %p121
        %p211 = pneg %p150
        %p212 = pneg %p147
        %s213 = sand.u32 %s137, 1
        %s214 = scalar_lea.sflag [#allocation4], %s213
        %s215 = sand.u32 %s137, 1
        %s216 = smul.addr %s215, 64
        %s217 = scalar_lea.vmem [#allocation3], %s216
        %p218 = scmp.lt.s32.totalorder %s19, 1
        %s219 = scalar_select %p218, %s19, 1
        %s220 = smul.addr %s219, 8
        %s221 = smul.addr %s220, 8
        %s222 = scalar_lea.vmem %s0, %s221
        %v224 = vld [vmem:[%s222] sm:$0xff]
        %v225 = vld [vmem:[%s222 + $0x8] sm:$0xff]
        %v226 = vld [vmem:[%s222 + $0x10] sm:$0xff]
        %v227 = vld [vmem:[%s222 + $0x18] sm:$0xff]
        %v228 = vld [vmem:[%s222 + $0x20] sm:$0xff]
        %v229 = vld [vmem:[%s222 + $0x28] sm:$0xff]
        %v230 = vld [vmem:[%s222 + $0x30] sm:$0xff]
        %v231 = vld [vmem:[%s222 + $0x38] sm:$0xff]
        %v232 = vpack.c.bf16 %v225, %v224
        %v233 = vpack.c.bf16 %v227, %v226
        %v234 = vpack.c.bf16 %v229, %v228
        %v235 = vpack.c.bf16 %v231, %v230
        %v236 = vunpack.c.l.bf16 %v232
        %v237 = vunpack.c.h.bf16 %v232
        %v238 = vunpack.c.l.bf16 %v233
        %v239 = vunpack.c.h.bf16 %v233
        %v240 = vunpack.c.l.bf16 %v234
        %v241 = vunpack.c.h.bf16 %v234
        %v242 = vunpack.c.l.bf16 %v235
        %v243 = vunpack.c.h.bf16 %v235
        %v244 = vsub.f32 %v224, %v236
        %v245 = vsub.f32 %v225, %v237
        %v246 = vsub.f32 %v226, %v238
        %v247 = vsub.f32 %v227, %v239
        %v248 = vsub.f32 %v228, %v240
        %v249 = vsub.f32 %v229, %v241
        %v250 = vsub.f32 %v230, %v242
        %v251 = vsub.f32 %v231, %v243
        %v252 = vpack.c.bf16 %v245, %v244
        %v253 = vpack.c.bf16 %v247, %v246
        %v254 = vpack.c.bf16 %v249, %v248
        %v255 = vpack.c.bf16 %v251, %v250
        %v256 = vld [vmem:[%s4] sm:$0xff]
        %v257 = vld [vmem:[%s4 + $0x8] sm:$0xff]
        %v258 = vld [vmem:[%s4 + $0x10] sm:$0xff]
        %v259 = vld [vmem:[%s4 + $0x18] sm:$0xff]
        %v260 = vld [vmem:[%s4 + $0x20] sm:$0xff]
        %v261 = vld [vmem:[%s4 + $0x28] sm:$0xff]
        %v262 = vld [vmem:[%s4 + $0x30] sm:$0xff]
        %v263 = vld [vmem:[%s4 + $0x38] sm:$0xff]
        %v264 = vld [vmem:[%s4 + $0x40] sm:$0xff]
        %v265 = vld [vmem:[%s4 + $0x48] sm:$0xff]
        %v266 = vld [vmem:[%s4 + $0x50] sm:$0xff]
        %v267 = vld [vmem:[%s4 + $0x58] sm:$0xff]
        %v268 = vld [vmem:[%s4 + $0x60] sm:$0xff]
        %v269 = vld [vmem:[%s4 + $0x68] sm:$0xff]
        %v270 = vld [vmem:[%s4 + $0x70] sm:$0xff]
        %v271 = vld [vmem:[%s4 + $0x78] sm:$0xff]
        %273 = vset.pattern.permute.xlu0 0
        %274 = vperm.xlu0 %273, %v256
        %v275 = vpop.permute.xlu0 %274
        %278 = vset.pattern.permute.xlu0 0
        %279 = vperm.xlu0 %278, %v257
        %v280 = vpop.permute.xlu0 %279
        %283 = vset.pattern.permute.xlu0 0
        %284 = vperm.xlu0 %283, %v258
        %v285 = vpop.permute.xlu0 %284
        %288 = vset.pattern.permute.xlu0 0
        %289 = vperm.xlu0 %288, %v259
        %v290 = vpop.permute.xlu0 %289
        %293 = vset.pattern.permute.xlu0 0
        %294 = vperm.xlu0 %293, %v260
        %v295 = vpop.permute.xlu0 %294
        %298 = vset.pattern.permute.xlu0 0
        %299 = vperm.xlu0 %298, %v261
        %v300 = vpop.permute.xlu0 %299
        %303 = vset.pattern.permute.xlu0 0
        %304 = vperm.xlu0 %303, %v262
        %v305 = vpop.permute.xlu0 %304
        %308 = vset.pattern.permute.xlu0 0
        %309 = vperm.xlu0 %308, %v263
        %v310 = vpop.permute.xlu0 %309
        %313 = vset.pattern.permute.xlu0 0
        %314 = vperm.xlu0 %313, %v264
        %v315 = vpop.permute.xlu0 %314
        %318 = vset.pattern.permute.xlu0 0
        %319 = vperm.xlu0 %318, %v265
        %v320 = vpop.permute.xlu0 %319
        %323 = vset.pattern.permute.xlu0 0
        %324 = vperm.xlu0 %323, %v266
        %v325 = vpop.permute.xlu0 %324
        %328 = vset.pattern.permute.xlu0 0
        %329 = vperm.xlu0 %328, %v267
        %v330 = vpop.permute.xlu0 %329
        %333 = vset.pattern.permute.xlu0 0
        %334 = vperm.xlu0 %333, %v268
        %v335 = vpop.permute.xlu0 %334
        %338 = vset.pattern.permute.xlu0 0
        %339 = vperm.xlu0 %338, %v269
        %v340 = vpop.permute.xlu0 %339
        %343 = vset.pattern.permute.xlu0 0
        %344 = vperm.xlu0 %343, %v270
        %v345 = vpop.permute.xlu0 %344
        %348 = vset.pattern.permute.xlu0 0
        %349 = vperm.xlu0 %348, %v271
        %v350 = vpop.permute.xlu0 %349
        %vm352 = vcmask 261120
        %353 = vst.msk [vmem:[#allocation2] sm:$0xff] %vm352, %v275
        %354 = vst.msk [vmem:[#allocation2 + $0x8] sm:$0xff] %vm352, %v280
        %355 = vst.msk [vmem:[#allocation2 + $0x10] sm:$0xff] %vm352, %v285
        %356 = vst.msk [vmem:[#allocation2 + $0x18] sm:$0xff] %vm352, %v290
        %357 = vst.msk [vmem:[#allocation2 + $0x20] sm:$0xff] %vm352, %v295
        %358 = vst.msk [vmem:[#allocation2 + $0x28] sm:$0xff] %vm352, %v300
        %359 = vst.msk [vmem:[#allocation2 + $0x30] sm:$0xff] %vm352, %v305
        %360 = vst.msk [vmem:[#allocation2 + $0x38] sm:$0xff] %vm352, %v310
        %361 = vst.msk [vmem:[#allocation2 + $0x40] sm:$0xff] %vm352, %v315
        %362 = vst.msk [vmem:[#allocation2 + $0x48] sm:$0xff] %vm352, %v320
        %363 = vst.msk [vmem:[#allocation2 + $0x50] sm:$0xff] %vm352, %v325
        %364 = vst.msk [vmem:[#allocation2 + $0x58] sm:$0xff] %vm352, %v330
        %365 = vst.msk [vmem:[#allocation2 + $0x60] sm:$0xff] %vm352, %v335
        %366 = vst.msk [vmem:[#allocation2 + $0x68] sm:$0xff] %vm352, %v340
        %367 = vst.msk [vmem:[#allocation2 + $0x70] sm:$0xff] %vm352, %v345
        %368 = vst.msk [vmem:[#allocation2 + $0x78] sm:$0xff] %vm352, %v350
        %v369 = vld [vmem:[%s1] sm:$0xf]
        %v370 = vld [vmem:[%s1 + $0x4] sm:$0xf]
        %v371 = vld [vmem:[%s1 + $0x8] sm:$0xf]
        %v372 = vld [vmem:[%s1 + $0xc] sm:$0xf]
        %v373 = vld [vmem:[%s1 + $0x10] sm:$0xf]
        %v374 = vld [vmem:[%s1 + $0x14] sm:$0xf]
        %v375 = vld [vmem:[%s1 + $0x18] sm:$0xf]
        %v376 = vld [vmem:[%s1 + $0x1c] sm:$0xf]
        %v377 = vld [vmem:[%s1 + $0x20] sm:$0xf]
        %v378 = vld [vmem:[%s1 + $0x24] sm:$0xf]
        %v379 = vld [vmem:[%s1 + $0x28] sm:$0xf]
        %v380 = vld [vmem:[%s1 + $0x2c] sm:$0xf]
        %v381 = vld [vmem:[%s1 + $0x30] sm:$0xf]
        %v382 = vld [vmem:[%s1 + $0x34] sm:$0xf]
        %v383 = vld [vmem:[%s1 + $0x38] sm:$0xf]
        %v384 = vld [vmem:[%s1 + $0x3c] sm:$0xf]
        %v401 = vunpack.c.l.b16 %v369
        %v402 = vunpack.c.l.b16 %v370
        %v403 = vunpack.c.l.b16 %v371
        %v404 = vunpack.c.l.b16 %v372
        %v405 = vunpack.c.l.b16 %v373
        %v406 = vunpack.c.l.b16 %v374
        %v407 = vunpack.c.l.b16 %v375
        %v408 = vunpack.c.l.b16 %v376
        %v409 = vunpack.c.l.b16 %v377
        %v410 = vunpack.c.l.b16 %v378
        %v411 = vunpack.c.l.b16 %v379
        %v412 = vunpack.c.l.b16 %v380
        %v413 = vunpack.c.l.b16 %v381
        %v414 = vunpack.c.l.b16 %v382
        %v415 = vunpack.c.l.b16 %v383
        %v416 = vunpack.c.l.b16 %v384
        %v417 = vpack.c.b16 %v402, %v401
        %v418 = vpack.c.b16 %v404, %v403
        %v419 = vpack.c.b16 %v406, %v405
        %v420 = vpack.c.b16 %v408, %v407
        %v421 = vpack.c.b16 %v410, %v409
        %v422 = vpack.c.b16 %v412, %v411
        %v423 = vpack.c.b16 %v414, %v413
        %v424 = vpack.c.b16 %v416, %v415
        %vm425 = vcmask 523264
        %v427 = vsel %vm425, %v417, 0
        %v430 = vsel %vm425, %v418, 0
        %v433 = vsel %vm425, %v419, 0
        %v436 = vsel %vm425, %v420, 0
        %v439 = vsel %vm425, %v421, 0
        %v442 = vsel %vm425, %v422, 0
        %v445 = vsel %vm425, %v423, 0
        %v448 = vsel %vm425, %v424, 0
        %450 = vmatprep.subr.bf16.mxu0 0
        %451 = vmatpush1.bf16.msra.mxu0 0
        %452 = vmatprep.subr.bf16.mxu0 0
        %453 = vmatpush1.bf16.msra.mxu0 0
        %454 = vmatprep.subr.bf16.mxu0 0
        %455 = vmatpush1.bf16.msra.mxu0 0
        %456 = vmatprep.subr.bf16.mxu0 0
        %457 = vmatpush1.bf16.msra.mxu0 0
        %458 = vmatprep.subr.bf16.mxu0 0
        %459 = vmatpush1.bf16.msra.mxu0 %v255
        %460 = vmatprep.subr.bf16.mxu0 0
        %461 = vmatpush1.bf16.msra.mxu0 %v254
        %462 = vmatprep.subr.bf16.mxu0 0
        %463 = vmatpush1.bf16.msra.mxu0 %v253
        %464 = vmatprep.subr.bf16.mxu0 0
        %465 = vmatpush1.bf16.msra.mxu0 %v252
        %466 = vmatprep.subr.bf16.mxu0 0
        %467 = vmatpush2.bf16.msra.mxu0 0
        %468 = vmatprep.subr.bf16.mxu0 0
        %469 = vmatpush2.bf16.msra.mxu0 0
        %470 = vmatprep.subr.bf16.mxu0 0
        %471 = vmatpush2.bf16.msra.mxu0 0
        %472 = vmatprep.subr.bf16.mxu0 0
        %473 = vmatpush2.bf16.msra.mxu0 0
        %474 = vmatprep.subr.bf16.mxu0 0
        %475 = vmatpush2.bf16.msra.mxu0 0
        %476 = vmatprep.subr.bf16.mxu0 0
        %477 = vmatpush2.bf16.msra.mxu0 0
        %478 = vmatprep.subr.bf16.mxu0 0
        %479 = vmatpush2.bf16.msra.mxu0 0
        %480 = vmatprep.subr.bf16.mxu0 0
        %481 = vmatpush2.bf16.msra.mxu0 0
        %482 = vmatprep.mubr.bf16.mxu0 0
        %483 = vmatmul.mubr.bf16.gmra.mxu0 %v427
        %v484 = vpop.f32.mrf.mxu0
        %v485 = vadd.f32 0.0, %v484
        %v486 = vpop.f32.mrf.mxu0
        %v487 = vpop.f32.mrf.mxu0
        %v488 = vadd.f32 0.0, %v487
        %v489 = vpop.f32.mrf.mxu0
        %490 = vmatprep.mubr.bf16.mxu0 0
        %491 = vmatmul.mubr.bf16.gmra.mxu0 %v430
        %v492 = vpop.f32.mrf.mxu0
        %v493 = vadd.f32 0.0, %v492
        %v494 = vpop.f32.mrf.mxu0
        %v495 = vpop.f32.mrf.mxu0
        %v496 = vadd.f32 0.0, %v495
        %v497 = vpop.f32.mrf.mxu0
        %498 = vmatprep.mubr.bf16.mxu0 0
        %499 = vmatmul.mubr.bf16.gmra.mxu0 %v433
        %v500 = vpop.f32.mrf.mxu0
        %v501 = vadd.f32 0.0, %v500
        %v502 = vpop.f32.mrf.mxu0
        %v503 = vpop.f32.mrf.mxu0
        %v504 = vadd.f32 0.0, %v503
        %v505 = vpop.f32.mrf.mxu0
        %506 = vmatprep.mubr.bf16.mxu0 0
        %507 = vmatmul.mubr.bf16.gmra.mxu0 %v436
        %v508 = vpop.f32.mrf.mxu0
        %v509 = vadd.f32 0.0, %v508
        %v510 = vpop.f32.mrf.mxu0
        %v511 = vpop.f32.mrf.mxu0
        %v512 = vadd.f32 0.0, %v511
        %v513 = vpop.f32.mrf.mxu0
        %514 = vmatprep.mubr.bf16.mxu0 0
        %515 = vmatmul.mubr.bf16.gmra.mxu0 %v439
        %v516 = vpop.f32.mrf.mxu0
        %v517 = vadd.f32 0.0, %v516
        %v518 = vpop.f32.mrf.mxu0
        %v519 = vpop.f32.mrf.mxu0
        %v520 = vadd.f32 0.0, %v519
        %v521 = vpop.f32.mrf.mxu0
        %522 = vmatprep.mubr.bf16.mxu0 0
        %523 = vmatmul.mubr.bf16.gmra.mxu0 %v442
        %v524 = vpop.f32.mrf.mxu0
        %v525 = vadd.f32 0.0, %v524
        %v526 = vpop.f32.mrf.mxu0
        %v527 = vpop.f32.mrf.mxu0
        %v528 = vadd.f32 0.0, %v527
        %v529 = vpop.f32.mrf.mxu0
        %530 = vmatprep.mubr.bf16.mxu0 0
        %531 = vmatmul.mubr.bf16.gmra.mxu0 %v445
        %v532 = vpop.f32.mrf.mxu0
        %v533 = vadd.f32 0.0, %v532
        %v534 = vpop.f32.mrf.mxu0
        %v535 = vpop.f32.mrf.mxu0
        %v536 = vadd.f32 0.0, %v535
        %v537 = vpop.f32.mrf.mxu0
        %538 = vmatprep.mubr.bf16.mxu0 0
        %539 = vmatmul.mubr.bf16.gmra.mxu0 %v448
        %v540 = vpop.f32.mrf.mxu0
        %v541 = vadd.f32 0.0, %v540
        %v542 = vpop.f32.mrf.mxu0
        %v543 = vpop.f32.mrf.mxu0
        %v544 = vadd.f32 0.0, %v543
        %v545 = vpop.f32.mrf.mxu0
        %546 = vdwg.mxu0
        %547 = vmatprep.subr.bf16.mxu0 0
        %548 = vmatpush1.bf16.msra.mxu0 0
        %549 = vmatprep.subr.bf16.mxu0 0
        %550 = vmatpush1.bf16.msra.mxu0 0
        %551 = vmatprep.subr.bf16.mxu0 0
        %552 = vmatpush1.bf16.msra.mxu0 0
        %553 = vmatprep.subr.bf16.mxu0 0
        %554 = vmatpush1.bf16.msra.mxu0 0
        %555 = vmatprep.subr.bf16.mxu0 0
        %556 = vmatpush1.bf16.msra.mxu0 %v235
        %557 = vmatprep.subr.bf16.mxu0 0
        %558 = vmatpush1.bf16.msra.mxu0 %v234
        %559 = vmatprep.subr.bf16.mxu0 0
        %560 = vmatpush1.bf16.msra.mxu0 %v233
        %561 = vmatprep.subr.bf16.mxu0 0
        %562 = vmatpush1.bf16.msra.mxu0 %v232
        %563 = vmatprep.subr.bf16.mxu0 0
        %564 = vmatpush2.bf16.msra.mxu0 0
        %565 = vmatprep.subr.bf16.mxu0 0
        %566 = vmatpush2.bf16.msra.mxu0 0
        %567 = vmatprep.subr.bf16.mxu0 0
        %568 = vmatpush2.bf16.msra.mxu0 0
        %569 = vmatprep.subr.bf16.mxu0 0
        %570 = vmatpush2.bf16.msra.mxu0 0
        %571 = vmatprep.subr.bf16.mxu0 0
        %572 = vmatpush2.bf16.msra.mxu0 0
        %573 = vmatprep.subr.bf16.mxu0 0
        %574 = vmatpush2.bf16.msra.mxu0 0
        %575 = vmatprep.subr.bf16.mxu0 0
        %576 = vmatpush2.bf16.msra.mxu0 0
        %577 = vmatprep.subr.bf16.mxu0 0
        %578 = vmatpush2.bf16.msra.mxu0 0
        %579 = vmatprep.mubr.bf16.mxu0 0
        %580 = vmatmul.mubr.bf16.gmra.mxu0 %v427
        %v581 = vpop.f32.mrf.mxu0
        %v582 = vadd.f32 %v485, %v581
        %v583 = vpop.f32.mrf.mxu0
        %v584 = vpop.f32.mrf.mxu0
        %v585 = vadd.f32 %v488, %v584
        %v586 = vpop.f32.mrf.mxu0
        %587 = vmatprep.mubr.bf16.mxu0 0
        %588 = vmatmul.mubr.bf16.gmra.mxu0 %v430
        %v589 = vpop.f32.mrf.mxu0
        %v590 = vadd.f32 %v493, %v589
        %v591 = vpop.f32.mrf.mxu0
        %v592 = vpop.f32.mrf.mxu0
        %v593 = vadd.f32 %v496, %v592
        %v594 = vpop.f32.mrf.mxu0
        %595 = vmatprep.mubr.bf16.mxu0 0
        %596 = vmatmul.mubr.bf16.gmra.mxu0 %v433
        %v597 = vpop.f32.mrf.mxu0
        %v598 = vadd.f32 %v501, %v597
        %v599 = vpop.f32.mrf.mxu0
        %v600 = vpop.f32.mrf.mxu0
        %v601 = vadd.f32 %v504, %v600
        %v602 = vpop.f32.mrf.mxu0
        %603 = vmatprep.mubr.bf16.mxu0 0
        %604 = vmatmul.mubr.bf16.gmra.mxu0 %v436
        %v605 = vpop.f32.mrf.mxu0
        %v606 = vadd.f32 %v509, %v605
        %v607 = vpop.f32.mrf.mxu0
        %v608 = vpop.f32.mrf.mxu0
        %v609 = vadd.f32 %v512, %v608
        %v610 = vpop.f32.mrf.mxu0
        %611 = vmatprep.mubr.bf16.mxu0 0
        %612 = vmatmul.mubr.bf16.gmra.mxu0 %v439
        %v613 = vpop.f32.mrf.mxu0
        %v614 = vadd.f32 %v517, %v613
        %v615 = vpop.f32.mrf.mxu0
        %v616 = vpop.f32.mrf.mxu0
        %v617 = vadd.f32 %v520, %v616
        %v618 = vpop.f32.mrf.mxu0
        %619 = vmatprep.mubr.bf16.mxu0 0
        %620 = vmatmul.mubr.bf16.gmra.mxu0 %v442
        %v621 = vpop.f32.mrf.mxu0
        %v622 = vadd.f32 %v525, %v621
        %v623 = vpop.f32.mrf.mxu0
        %v624 = vpop.f32.mrf.mxu0
        %v625 = vadd.f32 %v528, %v624
        %v626 = vpop.f32.mrf.mxu0
        %627 = vmatprep.mubr.bf16.mxu0 0
        %628 = vmatmul.mubr.bf16.gmra.mxu0 %v445
        %v629 = vpop.f32.mrf.mxu0
        %v630 = vadd.f32 %v533, %v629
        %v631 = vpop.f32.mrf.mxu0
        %v632 = vpop.f32.mrf.mxu0
        %v633 = vadd.f32 %v536, %v632
        %v634 = vpop.f32.mrf.mxu0
        %635 = vmatprep.mubr.bf16.mxu0 0
        %636 = vmatmul.mubr.bf16.gmra.mxu0 %v448
        %v637 = vpop.f32.mrf.mxu0
        %v638 = vadd.f32 %v541, %v637
        %v639 = vpop.f32.mrf.mxu0
        %v640 = vpop.f32.mrf.mxu0
        %v641 = vadd.f32 %v544, %v640
        %v642 = vpop.f32.mrf.mxu0
        %643 = vdwg.mxu0
        %v644 = vld [vmem:[%s2] sm:$0xf]
        %v645 = vld [vmem:[%s2 + $0x4] sm:$0xf]
        %v646 = vld [vmem:[%s2 + $0x8] sm:$0xf]
        %v647 = vld [vmem:[%s2 + $0xc] sm:$0xf]
        %v648 = vld [vmem:[%s2 + $0x10] sm:$0xf]
        %v649 = vld [vmem:[%s2 + $0x14] sm:$0xf]
        %v650 = vld [vmem:[%s2 + $0x18] sm:$0xf]
        %v651 = vld [vmem:[%s2 + $0x1c] sm:$0xf]
        %v652 = vld [vmem:[%s2 + $0x20] sm:$0xf]
        %v653 = vld [vmem:[%s2 + $0x24] sm:$0xf]
        %v654 = vld [vmem:[%s2 + $0x28] sm:$0xf]
        %v655 = vld [vmem:[%s2 + $0x2c] sm:$0xf]
        %v656 = vld [vmem:[%s2 + $0x30] sm:$0xf]
        %v657 = vld [vmem:[%s2 + $0x34] sm:$0xf]
        %v658 = vld [vmem:[%s2 + $0x38] sm:$0xf]
        %v659 = vld [vmem:[%s2 + $0x3c] sm:$0xf]
        %v676 = vunpack.c.l.b16 %v644
        %v677 = vunpack.c.l.b16 %v645
        %v678 = vunpack.c.l.b16 %v646
        %v679 = vunpack.c.l.b16 %v647
        %v680 = vunpack.c.l.b16 %v648
        %v681 = vunpack.c.l.b16 %v649
        %v682 = vunpack.c.l.b16 %v650
        %v683 = vunpack.c.l.b16 %v651
        %v684 = vunpack.c.l.b16 %v652
        %v685 = vunpack.c.l.b16 %v653
        %v686 = vunpack.c.l.b16 %v654
        %v687 = vunpack.c.l.b16 %v655
        %v688 = vunpack.c.l.b16 %v656
        %v689 = vunpack.c.l.b16 %v657
        %v690 = vunpack.c.l.b16 %v658
        %v691 = vunpack.c.l.b16 %v659
        %v692 = vpack.c.b16 %v677, %v676
        %v693 = vpack.c.b16 %v679, %v678
        %v694 = vpack.c.b16 %v681, %v680
        %v695 = vpack.c.b16 %v683, %v682
        %v696 = vpack.c.b16 %v685, %v684
        %v697 = vpack.c.b16 %v687, %v686
        %v698 = vpack.c.b16 %v689, %v688
        %v699 = vpack.c.b16 %v691, %v690
        %v701 = vsel %vm425, %v692, 0
        %v704 = vsel %vm425, %v693, 0
        %v707 = vsel %vm425, %v694, 0
        %v710 = vsel %vm425, %v695, 0
        %v713 = vsel %vm425, %v696, 0
        %v716 = vsel %vm425, %v697, 0
        %v719 = vsel %vm425, %v698, 0
        %v722 = vsel %vm425, %v699, 0
        %724 = vmatprep.subr.bf16.mxu0 0
        %725 = vmatpush1.bf16.msra.mxu0 0
        %726 = vmatprep.subr.bf16.mxu0 0
        %727 = vmatpush1.bf16.msra.mxu0 0
        %728 = vmatprep.subr.bf16.mxu0 0
        %729 = vmatpush1.bf16.msra.mxu0 0
        %730 = vmatprep.subr.bf16.mxu0 0
        %731 = vmatpush1.bf16.msra.mxu0 0
        %732 = vmatprep.subr.bf16.mxu0 0
        %733 = vmatpush1.bf16.msra.mxu0 %v235
        %734 = vmatprep.subr.bf16.mxu0 0
        %735 = vmatpush1.bf16.msra.mxu0 %v234
        %736 = vmatprep.subr.bf16.mxu0 0
        %737 = vmatpush1.bf16.msra.mxu0 %v233
        %738 = vmatprep.subr.bf16.mxu0 0
        %739 = vmatpush1.bf16.msra.mxu0 %v232
        %740 = vmatprep.subr.bf16.mxu0 0
        %741 = vmatpush2.bf16.msra.mxu0 0
        %742 = vmatprep.subr.bf16.mxu0 0
        %743 = vmatpush2.bf16.msra.mxu0 0
        %744 = vmatprep.subr.bf16.mxu0 0
        %745 = vmatpush2.bf16.msra.mxu0 0
        %746 = vmatprep.subr.bf16.mxu0 0
        %747 = vmatpush2.bf16.msra.mxu0 0
        %748 = vmatprep.subr.bf16.mxu0 0
        %749 = vmatpush2.bf16.msra.mxu0 0
        %750 = vmatprep.subr.bf16.mxu0 0
        %751 = vmatpush2.bf16.msra.mxu0 0
        %752 = vmatprep.subr.bf16.mxu0 0
        %753 = vmatpush2.bf16.msra.mxu0 0
        %754 = vmatprep.subr.bf16.mxu0 0
        %755 = vmatpush2.bf16.msra.mxu0 0
        %756 = vmatprep.mubr.bf16.mxu0 0
        %757 = vmatmul.mubr.bf16.gmra.mxu0 %v701
        %v758 = vpop.f32.mrf.mxu0
        %v759 = vadd.f32 0.0, %v758
        %v760 = vpop.f32.mrf.mxu0
        %v761 = vpop.f32.mrf.mxu0
        %v762 = vadd.f32 0.0, %v761
        %v763 = vpop.f32.mrf.mxu0
        %764 = vmatprep.mubr.bf16.mxu0 0
        %765 = vmatmul.mubr.bf16.gmra.mxu0 %v704
        %v766 = vpop.f32.mrf.mxu0
        %v767 = vadd.f32 0.0, %v766
        %v768 = vpop.f32.mrf.mxu0
        %v769 = vpop.f32.mrf.mxu0
        %v770 = vadd.f32 0.0, %v769
        %v771 = vpop.f32.mrf.mxu0
        %772 = vmatprep.mubr.bf16.mxu0 0
        %773 = vmatmul.mubr.bf16.gmra.mxu0 %v707
        %v774 = vpop.f32.mrf.mxu0
        %v775 = vadd.f32 0.0, %v774
        %v776 = vpop.f32.mrf.mxu0
        %v777 = vpop.f32.mrf.mxu0
        %v778 = vadd.f32 0.0, %v777
        %v779 = vpop.f32.mrf.mxu0
        %780 = vmatprep.mubr.bf16.mxu0 0
        %781 = vmatmul.mubr.bf16.gmra.mxu0 %v710
        %v782 = vpop.f32.mrf.mxu0
        %v783 = vadd.f32 0.0, %v782
        %v784 = vpop.f32.mrf.mxu0
        %v785 = vpop.f32.mrf.mxu0
        %v786 = vadd.f32 0.0, %v785
        %v787 = vpop.f32.mrf.mxu0
        %788 = vmatprep.mubr.bf16.mxu0 0
        %789 = vmatmul.mubr.bf16.gmra.mxu0 %v713
        %v790 = vpop.f32.mrf.mxu0
        %v791 = vadd.f32 0.0, %v790
        %v792 = vpop.f32.mrf.mxu0
        %v793 = vpop.f32.mrf.mxu0
        %v794 = vadd.f32 0.0, %v793
        %v795 = vpop.f32.mrf.mxu0
        %796 = vmatprep.mubr.bf16.mxu0 0
        %797 = vmatmul.mubr.bf16.gmra.mxu0 %v716
        %v798 = vpop.f32.mrf.mxu0
        %v799 = vadd.f32 0.0, %v798
        %v800 = vpop.f32.mrf.mxu0
        %v801 = vpop.f32.mrf.mxu0
        %v802 = vadd.f32 0.0, %v801
        %v803 = vpop.f32.mrf.mxu0
        %804 = vmatprep.mubr.bf16.mxu0 0
        %805 = vmatmul.mubr.bf16.gmra.mxu0 %v719
        %v806 = vpop.f32.mrf.mxu0
        %v807 = vadd.f32 0.0, %v806
        %v808 = vpop.f32.mrf.mxu0
        %v809 = vpop.f32.mrf.mxu0
        %v810 = vadd.f32 0.0, %v809
        %v811 = vpop.f32.mrf.mxu0
        %812 = vmatprep.mubr.bf16.mxu0 0
        %813 = vmatmul.mubr.bf16.gmra.mxu0 %v722
        %v814 = vpop.f32.mrf.mxu0
        %v815 = vadd.f32 0.0, %v814
        %v816 = vpop.f32.mrf.mxu0
        %v817 = vpop.f32.mrf.mxu0
        %v818 = vadd.f32 0.0, %v817
        %v819 = vpop.f32.mrf.mxu0
        %820 = vdwg.mxu0
        %v821 = vadd.f32 %v582, %v759
        %v822 = vadd.f32 %v585, %v762
        %v823 = vadd.f32 %v590, %v767
        %v824 = vadd.f32 %v593, %v770
        %v825 = vadd.f32 %v598, %v775
        %v826 = vadd.f32 %v601, %v778
        %v827 = vadd.f32 %v606, %v783
        %v828 = vadd.f32 %v609, %v786
        %v829 = vadd.f32 %v614, %v791
        %v830 = vadd.f32 %v617, %v794
        %v831 = vadd.f32 %v622, %v799
        %v832 = vadd.f32 %v625, %v802
        %v833 = vadd.f32 %v630, %v807
        %v834 = vadd.f32 %v633, %v810
        %v835 = vadd.f32 %v638, %v815
        %v836 = vadd.f32 %v641, %v818
        %v837 = vpack.c.bf16 %v822, %v821
        %v838 = vpack.c.bf16 %v824, %v823
        %v839 = vpack.c.bf16 %v826, %v825
        %v840 = vpack.c.bf16 %v828, %v827
        %v841 = vpack.c.bf16 %v830, %v829
        %v842 = vpack.c.bf16 %v832, %v831
        %v843 = vpack.c.bf16 %v834, %v833
        %v844 = vpack.c.bf16 %v836, %v835
        %v845 = vunpack.c.l.bf16 %v837
        %v846 = vunpack.c.h.bf16 %v837
        %v847 = vunpack.c.l.bf16 %v838
        %v848 = vunpack.c.h.bf16 %v838
        %v849 = vunpack.c.l.bf16 %v839
        %v850 = vunpack.c.h.bf16 %v839
        %v851 = vunpack.c.l.bf16 %v840
        %v852 = vunpack.c.h.bf16 %v840
        %v853 = vunpack.c.l.bf16 %v841
        %v854 = vunpack.c.h.bf16 %v841
        %v855 = vunpack.c.l.bf16 %v842
        %v856 = vunpack.c.h.bf16 %v842
        %v857 = vunpack.c.l.bf16 %v843
        %v858 = vunpack.c.h.bf16 %v843
        %v859 = vunpack.c.l.bf16 %v844
        %v860 = vunpack.c.h.bf16 %v844
        %v861 = vsub.f32 %v821, %v845
        %v862 = vsub.f32 %v822, %v846
        %v863 = vsub.f32 %v823, %v847
        %v864 = vsub.f32 %v824, %v848
        %v865 = vsub.f32 %v825, %v849
        %v866 = vsub.f32 %v826, %v850
        %v867 = vsub.f32 %v827, %v851
        %v868 = vsub.f32 %v828, %v852
        %v869 = vsub.f32 %v829, %v853
        %v870 = vsub.f32 %v830, %v854
        %v871 = vsub.f32 %v831, %v855
        %v872 = vsub.f32 %v832, %v856
        %v873 = vsub.f32 %v833, %v857
        %v874 = vsub.f32 %v834, %v858
        %v875 = vsub.f32 %v835, %v859
        %v876 = vsub.f32 %v836, %v860
        %v877 = vpack.c.bf16 %v862, %v861
        %v878 = vpack.c.bf16 %v864, %v863
        %v879 = vpack.c.bf16 %v866, %v865
        %v880 = vpack.c.bf16 %v868, %v867
        %v881 = vpack.c.bf16 %v870, %v869
        %v882 = vpack.c.bf16 %v872, %v871
        %v883 = vpack.c.bf16 %v874, %v873
        %v884 = vpack.c.bf16 %v876, %v875
        %v885 = vld [vmem:[#allocation2] sm:$0xff]
        %v886 = vld [vmem:[#allocation2 + $0x8] sm:$0xff]
        %v887 = vld [vmem:[#allocation2 + $0x10] sm:$0xff]
        %v888 = vld [vmem:[#allocation2 + $0x18] sm:$0xff]
        %v889 = vld [vmem:[#allocation2 + $0x20] sm:$0xff]
        %v890 = vld [vmem:[#allocation2 + $0x28] sm:$0xff]
        %v891 = vld [vmem:[#allocation2 + $0x30] sm:$0xff]
        %v892 = vld [vmem:[#allocation2 + $0x38] sm:$0xff]
        %v893 = vld [vmem:[#allocation2 + $0x40] sm:$0xff]
        %v894 = vld [vmem:[#allocation2 + $0x48] sm:$0xff]
        %v895 = vld [vmem:[#allocation2 + $0x50] sm:$0xff]
        %v896 = vld [vmem:[#allocation2 + $0x58] sm:$0xff]
        %v897 = vld [vmem:[#allocation2 + $0x60] sm:$0xff]
        %v898 = vld [vmem:[#allocation2 + $0x68] sm:$0xff]
        %v899 = vld [vmem:[#allocation2 + $0x70] sm:$0xff]
        %v900 = vld [vmem:[#allocation2 + $0x78] sm:$0xff]
        %v901 = vld [vmem:[%s3] sm:$0xf]
        %v902 = vld [vmem:[%s3 + $0x4] sm:$0xf]
        %v905 = vunpack.c.l.b16 %v901
        %v906 = vunpack.c.l.b16 %v902
        %v907 = vpack.c.b16 %v906, %v905
        %vm909 = vcmask 130048
        %v911 = vsel %vm909, %v837, 0
        %v914 = vsel %vm909, %v838, 0
        %v917 = vsel %vm909, %v839, 0
        %v920 = vsel %vm909, %v840, 0
        %v923 = vsel %vm909, %v841, 0
        %v926 = vsel %vm909, %v842, 0
        %v929 = vsel %vm909, %v843, 0
        %v932 = vsel %vm909, %v844, 0
        %934 = vmatprep.subr.bf16.mxu0 0
        %935 = vmatpush1.bf16.msra.mxu0 0
        %936 = vmatprep.subr.bf16.mxu0 0
        %937 = vmatpush1.bf16.msra.mxu0 0
        %938 = vmatprep.subr.bf16.mxu0 0
        %939 = vmatpush1.bf16.msra.mxu0 0
        %940 = vmatprep.subr.bf16.mxu0 0
        %941 = vmatpush1.bf16.msra.mxu0 0
        %942 = vmatprep.subr.bf16.mxu0 0
        %943 = vmatpush1.bf16.msra.mxu0 0
        %944 = vmatprep.subr.bf16.mxu0 0
        %945 = vmatpush1.bf16.msra.mxu0 0
        %946 = vmatprep.subr.bf16.mxu0 0
        %947 = vmatpush1.bf16.msra.mxu0 0
        %948 = vmatprep.subr.bf16.mxu0 0
        %949 = vmatpush1.bf16.msra.mxu0 %v907
        %950 = vmatprep.subr.bf16.mxu0 0
        %951 = vmatpush2.bf16.msra.mxu0 0
        %952 = vmatprep.subr.bf16.mxu0 0
        %953 = vmatpush2.bf16.msra.mxu0 0
        %954 = vmatprep.subr.bf16.mxu0 0
        %955 = vmatpush2.bf16.msra.mxu0 0
        %956 = vmatprep.subr.bf16.mxu0 0
        %957 = vmatpush2.bf16.msra.mxu0 0
        %958 = vmatprep.subr.bf16.mxu0 0
        %959 = vmatpush2.bf16.msra.mxu0 0
        %960 = vmatprep.subr.bf16.mxu0 0
        %961 = vmatpush2.bf16.msra.mxu0 0
        %962 = vmatprep.subr.bf16.mxu0 0
        %963 = vmatpush2.bf16.msra.mxu0 0
        %964 = vmatprep.subr.bf16.mxu0 0
        %965 = vmatpush2.bf16.msra.mxu0 0
        %966 = vmatprep.mubr.bf16.mxu0 0
        %967 = vmatmul.mubr.bf16.gmra.mxu0 %v911
        %v968 = vpop.f32.mrf.mxu0
        %v969 = vadd.f32 0.0, %v968
        %v970 = vpop.f32.mrf.mxu0
        %v971 = vpop.f32.mrf.mxu0
        %v972 = vadd.f32 0.0, %v971
        %v973 = vpop.f32.mrf.mxu0
        %974 = vmatprep.mubr.bf16.mxu0 0
        %975 = vmatmul.mubr.bf16.gmra.mxu0 %v914
        %v976 = vpop.f32.mrf.mxu0
        %v977 = vadd.f32 0.0, %v976
        %v978 = vpop.f32.mrf.mxu0
        %v979 = vpop.f32.mrf.mxu0
        %v980 = vadd.f32 0.0, %v979
        %v981 = vpop.f32.mrf.mxu0
        %982 = vmatprep.mubr.bf16.mxu0 0
        %983 = vmatmul.mubr.bf16.gmra.mxu0 %v917
        %v984 = vpop.f32.mrf.mxu0
        %v985 = vadd.f32 0.0, %v984
        %v986 = vpop.f32.mrf.mxu0
        %v987 = vpop.f32.mrf.mxu0
        %v988 = vadd.f32 0.0, %v987
        %v989 = vpop.f32.mrf.mxu0
        %990 = vmatprep.mubr.bf16.mxu0 0
        %991 = vmatmul.mubr.bf16.gmra.mxu0 %v920
        %v992 = vpop.f32.mrf.mxu0
        %v993 = vadd.f32 0.0, %v992
        %v994 = vpop.f32.mrf.mxu0
        %v995 = vpop.f32.mrf.mxu0
        %v996 = vadd.f32 0.0, %v995
        %v997 = vpop.f32.mrf.mxu0
        %998 = vmatprep.mubr.bf16.mxu0 0
        %999 = vmatmul.mubr.bf16.gmra.mxu0 %v923
        %v1000 = vpop.f32.mrf.mxu0
        %v1001 = vadd.f32 0.0, %v1000
        %v1002 = vpop.f32.mrf.mxu0
        %v1003 = vpop.f32.mrf.mxu0
        %v1004 = vadd.f32 0.0, %v1003
        %v1005 = vpop.f32.mrf.mxu0
        %1006 = vmatprep.mubr.bf16.mxu0 0
        %1007 = vmatmul.mubr.bf16.gmra.mxu0 %v926
        %v1008 = vpop.f32.mrf.mxu0
        %v1009 = vadd.f32 0.0, %v1008
        %v1010 = vpop.f32.mrf.mxu0
        %v1011 = vpop.f32.mrf.mxu0
        %v1012 = vadd.f32 0.0, %v1011
        %v1013 = vpop.f32.mrf.mxu0
        %1014 = vmatprep.mubr.bf16.mxu0 0
        %1015 = vmatmul.mubr.bf16.gmra.mxu0 %v929
        %v1016 = vpop.f32.mrf.mxu0
        %v1017 = vadd.f32 0.0, %v1016
        %v1018 = vpop.f32.mrf.mxu0
        %v1019 = vpop.f32.mrf.mxu0
        %v1020 = vadd.f32 0.0, %v1019
        %v1021 = vpop.f32.mrf.mxu0
        %1022 = vmatprep.mubr.bf16.mxu0 0
        %1023 = vmatmul.mubr.bf16.gmra.mxu0 %v932
        %v1024 = vpop.f32.mrf.mxu0
        %v1025 = vadd.f32 0.0, %v1024
        %v1026 = vpop.f32.mrf.mxu0
        %v1027 = vpop.f32.mrf.mxu0
        %v1028 = vadd.f32 0.0, %v1027
        %v1029 = vpop.f32.mrf.mxu0
        %1030 = vdwg.mxu0
        %v1031 = vadd.f32 %v885, %v969
        %v1032 = vadd.f32 %v886, %v972
        %v1033 = vadd.f32 %v887, %v977
        %v1034 = vadd.f32 %v888, %v980
        %v1035 = vadd.f32 %v889, %v985
        %v1036 = vadd.f32 %v890, %v988
        %v1037 = vadd.f32 %v891, %v993
        %v1038 = vadd.f32 %v892, %v996
        %v1039 = vadd.f32 %v893, %v1001
        %v1040 = vadd.f32 %v894, %v1004
        %v1041 = vadd.f32 %v895, %v1009
        %v1042 = vadd.f32 %v896, %v1012
        %v1043 = vadd.f32 %v897, %v1017
        %v1044 = vadd.f32 %v898, %v1020
        %v1045 = vadd.f32 %v899, %v1025
        %v1046 = vadd.f32 %v900, %v1028
        %1047 = vst.msk [vmem:[#allocation2] sm:$0xff] %vm352, %v1031
        %1048 = vst.msk [vmem:[#allocation2 + $0x8] sm:$0xff] %vm352, %v1032
        %1049 = vst.msk [vmem:[#allocation2 + $0x10] sm:$0xff] %vm352, %v1033
        %1050 = vst.msk [vmem:[#allocation2 + $0x18] sm:$0xff] %vm352, %v1034
        %1051 = vst.msk [vmem:[#allocation2 + $0x20] sm:$0xff] %vm352, %v1035
        %1052 = vst.msk [vmem:[#allocation2 + $0x28] sm:$0xff] %vm352, %v1036
        %1053 = vst.msk [vmem:[#allocation2 + $0x30] sm:$0xff] %vm352, %v1037
        %1054 = vst.msk [vmem:[#allocation2 + $0x38] sm:$0xff] %vm352, %v1038
        %1055 = vst.msk [vmem:[#allocation2 + $0x40] sm:$0xff] %vm352, %v1039
        %1056 = vst.msk [vmem:[#allocation2 + $0x48] sm:$0xff] %vm352, %v1040
        %1057 = vst.msk [vmem:[#allocation2 + $0x50] sm:$0xff] %vm352, %v1041
        %1058 = vst.msk [vmem:[#allocation2 + $0x58] sm:$0xff] %vm352, %v1042
        %1059 = vst.msk [vmem:[#allocation2 + $0x60] sm:$0xff] %vm352, %v1043
        %1060 = vst.msk [vmem:[#allocation2 + $0x68] sm:$0xff] %vm352, %v1044
        %1061 = vst.msk [vmem:[#allocation2 + $0x70] sm:$0xff] %vm352, %v1045
        %1062 = vst.msk [vmem:[#allocation2 + $0x78] sm:$0xff] %vm352, %v1046
        %v1063 = vld [vmem:[#allocation2] sm:$0xff]
        %v1064 = vld [vmem:[#allocation2 + $0x8] sm:$0xff]
        %v1065 = vld [vmem:[#allocation2 + $0x10] sm:$0xff]
        %v1066 = vld [vmem:[#allocation2 + $0x18] sm:$0xff]
        %v1067 = vld [vmem:[#allocation2 + $0x20] sm:$0xff]
        %v1068 = vld [vmem:[#allocation2 + $0x28] sm:$0xff]
        %v1069 = vld [vmem:[#allocation2 + $0x30] sm:$0xff]
        %v1070 = vld [vmem:[#allocation2 + $0x38] sm:$0xff]
        %v1071 = vld [vmem:[#allocation2 + $0x40] sm:$0xff]
        %v1072 = vld [vmem:[#allocation2 + $0x48] sm:$0xff]
        %v1073 = vld [vmem:[#allocation2 + $0x50] sm:$0xff]
        %v1074 = vld [vmem:[#allocation2 + $0x58] sm:$0xff]
        %v1075 = vld [vmem:[#allocation2 + $0x60] sm:$0xff]
        %v1076 = vld [vmem:[#allocation2 + $0x68] sm:$0xff]
        %v1077 = vld [vmem:[#allocation2 + $0x70] sm:$0xff]
        %v1078 = vld [vmem:[#allocation2 + $0x78] sm:$0xff]
        %v1079 = vld [vmem:[%s3] sm:$0xf]
        %v1080 = vld [vmem:[%s3 + $0x4] sm:$0xf]
        %v1083 = vunpack.c.l.b16 %v1079
        %v1084 = vunpack.c.l.b16 %v1080
        %v1085 = vpack.c.b16 %v1084, %v1083
        %v1088 = vsel %vm909, %v877, 0
        %v1091 = vsel %vm909, %v878, 0
        %v1094 = vsel %vm909, %v879, 0
        %v1097 = vsel %vm909, %v880, 0
        %v1100 = vsel %vm909, %v881, 0
        %v1103 = vsel %vm909, %v882, 0
        %v1106 = vsel %vm909, %v883, 0
        %v1109 = vsel %vm909, %v884, 0
        %1111 = vmatprep.subr.bf16.mxu0 0
        %1112 = vmatpush1.bf16.msra.mxu0 0
        %1113 = vmatprep.subr.bf16.mxu0 0
        %1114 = vmatpush1.bf16.msra.mxu0 0
        %1115 = vmatprep.subr.bf16.mxu0 0
        %1116 = vmatpush1.bf16.msra.mxu0 0
        %1117 = vmatprep.subr.bf16.mxu0 0
        %1118 = vmatpush1.bf16.msra.mxu0 0
        %1119 = vmatprep.subr.bf16.mxu0 0
        %1120 = vmatpush1.bf16.msra.mxu0 0
        %1121 = vmatprep.subr.bf16.mxu0 0
        %1122 = vmatpush1.bf16.msra.mxu0 0
        %1123 = vmatprep.subr.bf16.mxu0 0
        %1124 = vmatpush1.bf16.msra.mxu0 0
        %1125 = vmatprep.subr.bf16.mxu0 0
        %1126 = vmatpush1.bf16.msra.mxu0 %v1085
        %1127 = vmatprep.subr.bf16.mxu0 0
        %1128 = vmatpush2.bf16.msra.mxu0 0
        %1129 = vmatprep.subr.bf16.mxu0 0
        %1130 = vmatpush2.bf16.msra.mxu0 0
        %1131 = vmatprep.subr.bf16.mxu0 0
        %1132 = vmatpush2.bf16.msra.mxu0 0
        %1133 = vmatprep.subr.bf16.mxu0 0
        %1134 = vmatpush2.bf16.msra.mxu0 0
        %1135 = vmatprep.subr.bf16.mxu0 0
        %1136 = vmatpush2.bf16.msra.mxu0 0
        %1137 = vmatprep.subr.bf16.mxu0 0
        %1138 = vmatpush2.bf16.msra.mxu0 0
        %1139 = vmatprep.subr.bf16.mxu0 0
        %1140 = vmatpush2.bf16.msra.mxu0 0
        %1141 = vmatprep.subr.bf16.mxu0 0
        %1142 = vmatpush2.bf16.msra.mxu0 0
        %1143 = vmatprep.mubr.bf16.mxu0 0
        %1144 = vmatmul.mubr.bf16.gmra.mxu0 %v1088
        %v1145 = vpop.f32.mrf.mxu0
        %v1146 = vadd.f32 0.0, %v1145
        %v1147 = vpop.f32.mrf.mxu0
        %v1148 = vpop.f32.mrf.mxu0
        %v1149 = vadd.f32 0.0, %v1148
        %v1150 = vpop.f32.mrf.mxu0
        %1151 = vmatprep.mubr.bf16.mxu0 0
        %1152 = vmatmul.mubr.bf16.gmra.mxu0 %v1091
        %v1153 = vpop.f32.mrf.mxu0
        %v1154 = vadd.f32 0.0, %v1153
        %v1155 = vpop.f32.mrf.mxu0
        %v1156 = vpop.f32.mrf.mxu0
        %v1157 = vadd.f32 0.0, %v1156
        %v1158 = vpop.f32.mrf.mxu0
        %1159 = vmatprep.mubr.bf16.mxu0 0
        %1160 = vmatmul.mubr.bf16.gmra.mxu0 %v1094
        %v1161 = vpop.f32.mrf.mxu0
        %v1162 = vadd.f32 0.0, %v1161
        %v1163 = vpop.f32.mrf.mxu0
        %v1164 = vpop.f32.mrf.mxu0
        %v1165 = vadd.f32 0.0, %v1164
        %v1166 = vpop.f32.mrf.mxu0
        %1167 = vmatprep.mubr.bf16.mxu0 0
        %1168 = vmatmul.mubr.bf16.gmra.mxu0 %v1097
        %v1169 = vpop.f32.mrf.mxu0
        %v1170 = vadd.f32 0.0, %v1169
        %v1171 = vpop.f32.mrf.mxu0
        %v1172 = vpop.f32.mrf.mxu0
        %v1173 = vadd.f32 0.0, %v1172
        %v1174 = vpop.f32.mrf.mxu0
        %1175 = vmatprep.mubr.bf16.mxu0 0
        %1176 = vmatmul.mubr.bf16.gmra.mxu0 %v1100
        %v1177 = vpop.f32.mrf.mxu0
        %v1178 = vadd.f32 0.0, %v1177
        %v1179 = vpop.f32.mrf.mxu0
        %v1180 = vpop.f32.mrf.mxu0
        %v1181 = vadd.f32 0.0, %v1180
        %v1182 = vpop.f32.mrf.mxu0
        %1183 = vmatprep.mubr.bf16.mxu0 0
        %1184 = vmatmul.mubr.bf16.gmra.mxu0 %v1103
        %v1185 = vpop.f32.mrf.mxu0
        %v1186 = vadd.f32 0.0, %v1185
        %v1187 = vpop.f32.mrf.mxu0
        %v1188 = vpop.f32.mrf.mxu0
        %v1189 = vadd.f32 0.0, %v1188
        %v1190 = vpop.f32.mrf.mxu0
        %1191 = vmatprep.mubr.bf16.mxu0 0
        %1192 = vmatmul.mubr.bf16.gmra.mxu0 %v1106
        %v1193 = vpop.f32.mrf.mxu0
        %v1194 = vadd.f32 0.0, %v1193
        %v1195 = vpop.f32.mrf.mxu0
        %v1196 = vpop.f32.mrf.mxu0
        %v1197 = vadd.f32 0.0, %v1196
        %v1198 = vpop.f32.mrf.mxu0
        %1199 = vmatprep.mubr.bf16.mxu0 0
        %1200 = vmatmul.mubr.bf16.gmra.mxu0 %v1109
        %v1201 = vpop.f32.mrf.mxu0
        %v1202 = vadd.f32 0.0, %v1201
        %v1203 = vpop.f32.mrf.mxu0
        %v1204 = vpop.f32.mrf.mxu0
        %v1205 = vadd.f32 0.0, %v1204
        %v1206 = vpop.f32.mrf.mxu0
        %1207 = vdwg.mxu0
        %v1208 = vadd.f32 %v1063, %v1146
        %v1209 = vadd.f32 %v1064, %v1149
        %v1210 = vadd.f32 %v1065, %v1154
        %v1211 = vadd.f32 %v1066, %v1157
        %v1212 = vadd.f32 %v1067, %v1162
        %v1213 = vadd.f32 %v1068, %v1165
        %v1214 = vadd.f32 %v1069, %v1170
        %v1215 = vadd.f32 %v1070, %v1173
        %v1216 = vadd.f32 %v1071, %v1178
        %v1217 = vadd.f32 %v1072, %v1181
        %v1218 = vadd.f32 %v1073, %v1186
        %v1219 = vadd.f32 %v1074, %v1189
        %v1220 = vadd.f32 %v1075, %v1194
        %v1221 = vadd.f32 %v1076, %v1197
        %v1222 = vadd.f32 %v1077, %v1202
        %v1223 = vadd.f32 %v1078, %v1205
        %1224 = vst.msk [vmem:[#allocation2] sm:$0xff] %vm352, %v1208
        %1225 = vst.msk [vmem:[#allocation2 + $0x8] sm:$0xff] %vm352, %v1209
        %1226 = vst.msk [vmem:[#allocation2 + $0x10] sm:$0xff] %vm352, %v1210
        %1227 = vst.msk [vmem:[#allocation2 + $0x18] sm:$0xff] %vm352, %v1211
        %1228 = vst.msk [vmem:[#allocation2 + $0x20] sm:$0xff] %vm352, %v1212
        %1229 = vst.msk [vmem:[#allocation2 + $0x28] sm:$0xff] %vm352, %v1213
        %1230 = vst.msk [vmem:[#allocation2 + $0x30] sm:$0xff] %vm352, %v1214
        %1231 = vst.msk [vmem:[#allocation2 + $0x38] sm:$0xff] %vm352, %v1215
        %1232 = vst.msk [vmem:[#allocation2 + $0x40] sm:$0xff] %vm352, %v1216
        %1233 = vst.msk [vmem:[#allocation2 + $0x48] sm:$0xff] %vm352, %v1217
        %1234 = vst.msk [vmem:[#allocation2 + $0x50] sm:$0xff] %vm352, %v1218
        %1235 = vst.msk [vmem:[#allocation2 + $0x58] sm:$0xff] %vm352, %v1219
        %1236 = vst.msk [vmem:[#allocation2 + $0x60] sm:$0xff] %vm352, %v1220
        %1237 = vst.msk [vmem:[#allocation2 + $0x68] sm:$0xff] %vm352, %v1221
        %1238 = vst.msk [vmem:[#allocation2 + $0x70] sm:$0xff] %vm352, %v1222
        %1239 = vst.msk [vmem:[#allocation2 + $0x78] sm:$0xff] %vm352, %v1223
        %s1240 = scalar_lea.vmem %s1, 64
        %v1241 = vld [vmem:[%s1240] sm:$0xf]
        %v1242 = vld [vmem:[%s1240 + $0x4] sm:$0xf]
        %v1243 = vld [vmem:[%s1240 + $0x8] sm:$0xf]
        %v1244 = vld [vmem:[%s1240 + $0xc] sm:$0xf]
        %v1245 = vld [vmem:[%s1240 + $0x10] sm:$0xf]
        %v1246 = vld [vmem:[%s1240 + $0x14] sm:$0xf]
        %v1247 = vld [vmem:[%s1240 + $0x18] sm:$0xf]
        %v1248 = vld [vmem:[%s1240 + $0x1c] sm:$0xf]
        %v1249 = vld [vmem:[%s1240 + $0x20] sm:$0xf]
        %v1250 = vld [vmem:[%s1240 + $0x24] sm:$0xf]
        %v1251 = vld [vmem:[%s1240 + $0x28] sm:$0xf]
        %v1252 = vld [vmem:[%s1240 + $0x2c] sm:$0xf]
        %v1253 = vld [vmem:[%s1240 + $0x30] sm:$0xf]
        %v1254 = vld [vmem:[%s1240 + $0x34] sm:$0xf]
        %v1255 = vld [vmem:[%s1240 + $0x38] sm:$0xf]
        %v1256 = vld [vmem:[%s1240 + $0x3c] sm:$0xf]
        %v1273 = vunpack.c.l.b16 %v1241
        %v1274 = vunpack.c.l.b16 %v1242
        %v1275 = vunpack.c.l.b16 %v1243
        %v1276 = vunpack.c.l.b16 %v1244
        %v1277 = vunpack.c.l.b16 %v1245
        %v1278 = vunpack.c.l.b16 %v1246
        %v1279 = vunpack.c.l.b16 %v1247
        %v1280 = vunpack.c.l.b16 %v1248
        %v1281 = vunpack.c.l.b16 %v1249
        %v1282 = vunpack.c.l.b16 %v1250
        %v1283 = vunpack.c.l.b16 %v1251
        %v1284 = vunpack.c.l.b16 %v1252
        %v1285 = vunpack.c.l.b16 %v1253
        %v1286 = vunpack.c.l.b16 %v1254
        %v1287 = vunpack.c.l.b16 %v1255
        %v1288 = vunpack.c.l.b16 %v1256
        %v1289 = vpack.c.b16 %v1274, %v1273
        %v1290 = vpack.c.b16 %v1276, %v1275
        %v1291 = vpack.c.b16 %v1278, %v1277
        %v1292 = vpack.c.b16 %v1280, %v1279
        %v1293 = vpack.c.b16 %v1282, %v1281
        %v1294 = vpack.c.b16 %v1284, %v1283
        %v1295 = vpack.c.b16 %v1286, %v1285
        %v1296 = vpack.c.b16 %v1288, %v1287
        %v1298 = vsel %vm425, %v1289, 0
        %v1301 = vsel %vm425, %v1290, 0
        %v1304 = vsel %vm425, %v1291, 0
        %v1307 = vsel %vm425, %v1292, 0
        %v1310 = vsel %vm425, %v1293, 0
        %v1313 = vsel %vm425, %v1294, 0
        %v1316 = vsel %vm425, %v1295, 0
        %v1319 = vsel %vm425, %v1296, 0
        %1321 = vmatprep.subr.bf16.mxu0 0
        %1322 = vmatpush1.bf16.msra.mxu0 0
        %1323 = vmatprep.subr.bf16.mxu0 0
        %1324 = vmatpush1.bf16.msra.mxu0 0
        %1325 = vmatprep.subr.bf16.mxu0 0
        %1326 = vmatpush1.bf16.msra.mxu0 0
        %1327 = vmatprep.subr.bf16.mxu0 0
        %1328 = vmatpush1.bf16.msra.mxu0 0
        %1329 = vmatprep.subr.bf16.mxu0 0
        %1330 = vmatpush1.bf16.msra.mxu0 %v255
        %1331 = vmatprep.subr.bf16.mxu0 0
        %1332 = vmatpush1.bf16.msra.mxu0 %v254
        %1333 = vmatprep.subr.bf16.mxu0 0
        %1334 = vmatpush1.bf16.msra.mxu0 %v253
        %1335 = vmatprep.subr.bf16.mxu0 0
        %1336 = vmatpush1.bf16.msra.mxu0 %v252
        %1337 = vmatprep.subr.bf16.mxu0 0
        %1338 = vmatpush2.bf16.msra.mxu0 0
        %1339 = vmatprep.subr.bf16.mxu0 0
        %1340 = vmatpush2.bf16.msra.mxu0 0
        %1341 = vmatprep.subr.bf16.mxu0 0
        %1342 = vmatpush2.bf16.msra.mxu0 0
        %1343 = vmatprep.subr.bf16.mxu0 0
        %1344 = vmatpush2.bf16.msra.mxu0 0
        %1345 = vmatprep.subr.bf16.mxu0 0
        %1346 = vmatpush2.bf16.msra.mxu0 0
        %1347 = vmatprep.subr.bf16.mxu0 0
        %1348 = vmatpush2.bf16.msra.mxu0 0
        %1349 = vmatprep.subr.bf16.mxu0 0
        %1350 = vmatpush2.bf16.msra.mxu0 0
        %1351 = vmatprep.subr.bf16.mxu0 0
        %1352 = vmatpush2.bf16.msra.mxu0 0
        %1353 = vmatprep.mubr.bf16.mxu0 0
        %1354 = vmatmul.mubr.bf16.gmra.mxu0 %v1298
        %v1355 = vpop.f32.mrf.mxu0
        %v1356 = vadd.f32 0.0, %v1355
        %v1357 = vpop.f32.mrf.mxu0
        %v1358 = vpop.f32.mrf.mxu0
        %v1359 = vadd.f32 0.0, %v1358
        %v1360 = vpop.f32.mrf.mxu0
        %1361 = vmatprep.mubr.bf16.mxu0 0
        %1362 = vmatmul.mubr.bf16.gmra.mxu0 %v1301
        %v1363 = vpop.f32.mrf.mxu0
        %v1364 = vadd.f32 0.0, %v1363
        %v1365 = vpop.f32.mrf.mxu0
        %v1366 = vpop.f32.mrf.mxu0
        %v1367 = vadd.f32 0.0, %v1366
        %v1368 = vpop.f32.mrf.mxu0
        %1369 = vmatprep.mubr.bf16.mxu0 0
        %1370 = vmatmul.mubr.bf16.gmra.mxu0 %v1304
        %v1371 = vpop.f32.mrf.mxu0
        %v1372 = vadd.f32 0.0, %v1371
        %v1373 = vpop.f32.mrf.mxu0
        %v1374 = vpop.f32.mrf.mxu0
        %v1375 = vadd.f32 0.0, %v1374
        %v1376 = vpop.f32.mrf.mxu0
        %1377 = vmatprep.mubr.bf16.mxu0 0
        %1378 = vmatmul.mubr.bf16.gmra.mxu0 %v1307
        %v1379 = vpop.f32.mrf.mxu0
        %v1380 = vadd.f32 0.0, %v1379
        %v1381 = vpop.f32.mrf.mxu0
        %v1382 = vpop.f32.mrf.mxu0
        %v1383 = vadd.f32 0.0, %v1382
        %v1384 = vpop.f32.mrf.mxu0
        %1385 = vmatprep.mubr.bf16.mxu0 0
        %1386 = vmatmul.mubr.bf16.gmra.mxu0 %v1310
        %v1387 = vpop.f32.mrf.mxu0
        %v1388 = vadd.f32 0.0, %v1387
        %v1389 = vpop.f32.mrf.mxu0
        %v1390 = vpop.f32.mrf.mxu0
        %v1391 = vadd.f32 0.0, %v1390
        %v1392 = vpop.f32.mrf.mxu0
        %1393 = vmatprep.mubr.bf16.mxu0 0
        %1394 = vmatmul.mubr.bf16.gmra.mxu0 %v1313
        %v1395 = vpop.f32.mrf.mxu0
        %v1396 = vadd.f32 0.0, %v1395
        %v1397 = vpop.f32.mrf.mxu0
        %v1398 = vpop.f32.mrf.mxu0
        %v1399 = vadd.f32 0.0, %v1398
        %v1400 = vpop.f32.mrf.mxu0
        %1401 = vmatprep.mubr.bf16.mxu0 0
        %1402 = vmatmul.mubr.bf16.gmra.mxu0 %v1316
        %v1403 = vpop.f32.mrf.mxu0
        %v1404 = vadd.f32 0.0, %v1403
        %v1405 = vpop.f32.mrf.mxu0
        %v1406 = vpop.f32.mrf.mxu0
        %v1407 = vadd.f32 0.0, %v1406
        %v1408 = vpop.f32.mrf.mxu0
        %1409 = vmatprep.mubr.bf16.mxu0 0
        %1410 = vmatmul.mubr.bf16.gmra.mxu0 %v1319
        %v1411 = vpop.f32.mrf.mxu0
        %v1412 = vadd.f32 0.0, %v1411
        %v1413 = vpop.f32.mrf.mxu0
        %v1414 = vpop.f32.mrf.mxu0
        %v1415 = vadd.f32 0.0, %v1414
        %v1416 = vpop.f32.mrf.mxu0
        %1417 = vdwg.mxu0
        %1418 = vmatprep.subr.bf16.mxu0 0
        %1419 = vmatpush1.bf16.msra.mxu0 0
        %1420 = vmatprep.subr.bf16.mxu0 0
        %1421 = vmatpush1.bf16.msra.mxu0 0
        %1422 = vmatprep.subr.bf16.mxu0 0
        %1423 = vmatpush1.bf16.msra.mxu0 0
        %1424 = vmatprep.subr.bf16.mxu0 0
        %1425 = vmatpush1.bf16.msra.mxu0 0
        %1426 = vmatprep.subr.bf16.mxu0 0
        %1427 = vmatpush1.bf16.msra.mxu0 %v235
        %1428 = vmatprep.subr.bf16.mxu0 0
        %1429 = vmatpush1.bf16.msra.mxu0 %v234
        %1430 = vmatprep.subr.bf16.mxu0 0
        %1431 = vmatpush1.bf16.msra.mxu0 %v233
        %1432 = vmatprep.subr.bf16.mxu0 0
        %1433 = vmatpush1.bf16.msra.mxu0 %v232
        %1434 = vmatprep.subr.bf16.mxu0 0
        %1435 = vmatpush2.bf16.msra.mxu0 0
        %1436 = vmatprep.subr.bf16.mxu0 0
        %1437 = vmatpush2.bf16.msra.mxu0 0
        %1438 = vmatprep.subr.bf16.mxu0 0
        %1439 = vmatpush2.bf16.msra.mxu0 0
        %1440 = vmatprep.subr.bf16.mxu0 0
        %1441 = vmatpush2.bf16.msra.mxu0 0
        %1442 = vmatprep.subr.bf16.mxu0 0
        %1443 = vmatpush2.bf16.msra.mxu0 0
        %1444 = vmatprep.subr.bf16.mxu0 0
        %1445 = vmatpush2.bf16.msra.mxu0 0
        %1446 = vmatprep.subr.bf16.mxu0 0
        %1447 = vmatpush2.bf16.msra.mxu0 0
        %1448 = vmatprep.subr.bf16.mxu0 0
        %1449 = vmatpush2.bf16.msra.mxu0 0
        %1450 = vmatprep.mubr.bf16.mxu0 0
        %1451 = vmatmul.mubr.bf16.gmra.mxu0 %v1298
        %v1452 = vpop.f32.mrf.mxu0
        %v1453 = vadd.f32 %v1356, %v1452
        %v1454 = vpop.f32.mrf.mxu0
        %v1455 = vpop.f32.mrf.mxu0
        %v1456 = vadd.f32 %v1359, %v1455
        %v1457 = vpop.f32.mrf.mxu0
        %1458 = vmatprep.mubr.bf16.mxu0 0
        %1459 = vmatmul.mubr.bf16.gmra.mxu0 %v1301
        %v1460 = vpop.f32.mrf.mxu0
        %v1461 = vadd.f32 %v1364, %v1460
        %v1462 = vpop.f32.mrf.mxu0
        %v1463 = vpop.f32.mrf.mxu0
        %v1464 = vadd.f32 %v1367, %v1463
        %v1465 = vpop.f32.mrf.mxu0
        %1466 = vmatprep.mubr.bf16.mxu0 0
        %1467 = vmatmul.mubr.bf16.gmra.mxu0 %v1304
        %v1468 = vpop.f32.mrf.mxu0
        %v1469 = vadd.f32 %v1372, %v1468
        %v1470 = vpop.f32.mrf.mxu0
        %v1471 = vpop.f32.mrf.mxu0
        %v1472 = vadd.f32 %v1375, %v1471
        %v1473 = vpop.f32.mrf.mxu0
        %1474 = vmatprep.mubr.bf16.mxu0 0
        %1475 = vmatmul.mubr.bf16.gmra.mxu0 %v1307
        %v1476 = vpop.f32.mrf.mxu0
        %v1477 = vadd.f32 %v1380, %v1476
        %v1478 = vpop.f32.mrf.mxu0
        %v1479 = vpop.f32.mrf.mxu0
        %v1480 = vadd.f32 %v1383, %v1479
        %v1481 = vpop.f32.mrf.mxu0
        %1482 = vmatprep.mubr.bf16.mxu0 0
        %1483 = vmatmul.mubr.bf16.gmra.mxu0 %v1310
        %v1484 = vpop.f32.mrf.mxu0
        %v1485 = vadd.f32 %v1388, %v1484
        %v1486 = vpop.f32.mrf.mxu0
        %v1487 = vpop.f32.mrf.mxu0
        %v1488 = vadd.f32 %v1391, %v1487
        %v1489 = vpop.f32.mrf.mxu0
        %1490 = vmatprep.mubr.bf16.mxu0 0
        %1491 = vmatmul.mubr.bf16.gmra.mxu0 %v1313
        %v1492 = vpop.f32.mrf.mxu0
        %v1493 = vadd.f32 %v1396, %v1492
        %v1494 = vpop.f32.mrf.mxu0
        %v1495 = vpop.f32.mrf.mxu0
        %v1496 = vadd.f32 %v1399, %v1495
        %v1497 = vpop.f32.mrf.mxu0
        %1498 = vmatprep.mubr.bf16.mxu0 0
        %1499 = vmatmul.mubr.bf16.gmra.mxu0 %v1316
        %v1500 = vpop.f32.mrf.mxu0
        %v1501 = vadd.f32 %v1404, %v1500
        %v1502 = vpop.f32.mrf.mxu0
        %v1503 = vpop.f32.mrf.mxu0
        %v1504 = vadd.f32 %v1407, %v1503
        %v1505 = vpop.f32.mrf.mxu0
        %1506 = vmatprep.mubr.bf16.mxu0 0
        %1507 = vmatmul.mubr.bf16.gmra.mxu0 %v1319
        %v1508 = vpop.f32.mrf.mxu0
        %v1509 = vadd.f32 %v1412, %v1508
        %v1510 = vpop.f32.mrf.mxu0
        %v1511 = vpop.f32.mrf.mxu0
        %v1512 = vadd.f32 %v1415, %v1511
        %v1513 = vpop.f32.mrf.mxu0
        %1514 = vdwg.mxu0
        %s1515 = scalar_lea.vmem %s2, 64
        %v1516 = vld [vmem:[%s1515] sm:$0xf]
        %v1517 = vld [vmem:[%s1515 + $0x4] sm:$0xf]
        %v1518 = vld [vmem:[%s1515 + $0x8] sm:$0xf]
        %v1519 = vld [vmem:[%s1515 + $0xc] sm:$0xf]
        %v1520 = vld [vmem:[%s1515 + $0x10] sm:$0xf]
        %v1521 = vld [vmem:[%s1515 + $0x14] sm:$0xf]
        %v1522 = vld [vmem:[%s1515 + $0x18] sm:$0xf]
        %v1523 = vld [vmem:[%s1515 + $0x1c] sm:$0xf]
        %v1524 = vld [vmem:[%s1515 + $0x20] sm:$0xf]
        %v1525 = vld [vmem:[%s1515 + $0x24] sm:$0xf]
        %v1526 = vld [vmem:[%s1515 + $0x28] sm:$0xf]
        %v1527 = vld [vmem:[%s1515 + $0x2c] sm:$0xf]
        %v1528 = vld [vmem:[%s1515 + $0x30] sm:$0xf]
        %v1529 = vld [vmem:[%s1515 + $0x34] sm:$0xf]
        %v1530 = vld [vmem:[%s1515 + $0x38] sm:$0xf]
        %v1531 = vld [vmem:[%s1515 + $0x3c] sm:$0xf]
        %v1548 = vunpack.c.l.b16 %v1516
        %v1549 = vunpack.c.l.b16 %v1517
        %v1550 = vunpack.c.l.b16 %v1518
        %v1551 = vunpack.c.l.b16 %v1519
        %v1552 = vunpack.c.l.b16 %v1520
        %v1553 = vunpack.c.l.b16 %v1521
        %v1554 = vunpack.c.l.b16 %v1522
        %v1555 = vunpack.c.l.b16 %v1523
        %v1556 = vunpack.c.l.b16 %v1524
        %v1557 = vunpack.c.l.b16 %v1525
        %v1558 = vunpack.c.l.b16 %v1526
        %v1559 = vunpack.c.l.b16 %v1527
        %v1560 = vunpack.c.l.b16 %v1528
        %v1561 = vunpack.c.l.b16 %v1529
        %v1562 = vunpack.c.l.b16 %v1530
        %v1563 = vunpack.c.l.b16 %v1531
        %v1564 = vpack.c.b16 %v1549, %v1548
        %v1565 = vpack.c.b16 %v1551, %v1550
        %v1566 = vpack.c.b16 %v1553, %v1552
        %v1567 = vpack.c.b16 %v1555, %v1554
        %v1568 = vpack.c.b16 %v1557, %v1556
        %v1569 = vpack.c.b16 %v1559, %v1558
        %v1570 = vpack.c.b16 %v1561, %v1560
        %v1571 = vpack.c.b16 %v1563, %v1562
        %v1573 = vsel %vm425, %v1564, 0
        %v1576 = vsel %vm425, %v1565, 0
        %v1579 = vsel %vm425, %v1566, 0
        %v1582 = vsel %vm425, %v1567, 0
        %v1585 = vsel %vm425, %v1568, 0
        %v1588 = vsel %vm425, %v1569, 0
        %v1591 = vsel %vm425, %v1570, 0
        %v1594 = vsel %vm425, %v1571, 0
        %1596 = vmatprep.subr.bf16.mxu0 0
        %1597 = vmatpush1.bf16.msra.mxu0 0
        %1598 = vmatprep.subr.bf16.mxu0 0
        %1599 = vmatpush1.bf16.msra.mxu0 0
        %1600 = vmatprep.subr.bf16.mxu0 0
        %1601 = vmatpush1.bf16.msra.mxu0 0
        %1602 = vmatprep.subr.bf16.mxu0 0
        %1603 = vmatpush1.bf16.msra.mxu0 0
        %1604 = vmatprep.subr.bf16.mxu0 0
        %1605 = vmatpush1.bf16.msra.mxu0 %v235
        %1606 = vmatprep.subr.bf16.mxu0 0
        %1607 = vmatpush1.bf16.msra.mxu0 %v234
        %1608 = vmatprep.subr.bf16.mxu0 0
        %1609 = vmatpush1.bf16.msra.mxu0 %v233
        %1610 = vmatprep.subr.bf16.mxu0 0
        %1611 = vmatpush1.bf16.msra.mxu0 %v232
        %1612 = vmatprep.subr.bf16.mxu0 0
        %1613 = vmatpush2.bf16.msra.mxu0 0
        %1614 = vmatprep.subr.bf16.mxu0 0
        %1615 = vmatpush2.bf16.msra.mxu0 0
        %1616 = vmatprep.subr.bf16.mxu0 0
        %1617 = vmatpush2.bf16.msra.mxu0 0
        %1618 = vmatprep.subr.bf16.mxu0 0
        %1619 = vmatpush2.bf16.msra.mxu0 0
        %1620 = vmatprep.subr.bf16.mxu0 0
        %1621 = vmatpush2.bf16.msra.mxu0 0
        %1622 = vmatprep.subr.bf16.mxu0 0
        %1623 = vmatpush2.bf16.msra.mxu0 0
        %1624 = vmatprep.subr.bf16.mxu0 0
        %1625 = vmatpush2.bf16.msra.mxu0 0
        %1626 = vmatprep.subr.bf16.mxu0 0
        %1627 = vmatpush2.bf16.msra.mxu0 0
        %1628 = vmatprep.mubr.bf16.mxu0 0
        %1629 = vmatmul.mubr.bf16.gmra.mxu0 %v1573
        %v1630 = vpop.f32.mrf.mxu0
        %v1631 = vadd.f32 0.0, %v1630
        %v1632 = vpop.f32.mrf.mxu0
        %v1633 = vpop.f32.mrf.mxu0
        %v1634 = vadd.f32 0.0, %v1633
        %v1635 = vpop.f32.mrf.mxu0
        %1636 = vmatprep.mubr.bf16.mxu0 0
        %1637 = vmatmul.mubr.bf16.gmra.mxu0 %v1576
        %v1638 = vpop.f32.mrf.mxu0
        %v1639 = vadd.f32 0.0, %v1638
        %v1640 = vpop.f32.mrf.mxu0
        %v1641 = vpop.f32.mrf.mxu0
        %v1642 = vadd.f32 0.0, %v1641
        %v1643 = vpop.f32.mrf.mxu0
        %1644 = vmatprep.mubr.bf16.mxu0 0
        %1645 = vmatmul.mubr.bf16.gmra.mxu0 %v1579
        %v1646 = vpop.f32.mrf.mxu0
        %v1647 = vadd.f32 0.0, %v1646
        %v1648 = vpop.f32.mrf.mxu0
        %v1649 = vpop.f32.mrf.mxu0
        %v1650 = vadd.f32 0.0, %v1649
        %v1651 = vpop.f32.mrf.mxu0
        %1652 = vmatprep.mubr.bf16.mxu0 0
        %1653 = vmatmul.mubr.bf16.gmra.mxu0 %v1582
        %v1654 = vpop.f32.mrf.mxu0
        %v1655 = vadd.f32 0.0, %v1654
        %v1656 = vpop.f32.mrf.mxu0
        %v1657 = vpop.f32.mrf.mxu0
        %v1658 = vadd.f32 0.0, %v1657
        %v1659 = vpop.f32.mrf.mxu0
        %1660 = vmatprep.mubr.bf16.mxu0 0
        %1661 = vmatmul.mubr.bf16.gmra.mxu0 %v1585
        %v1662 = vpop.f32.mrf.mxu0
        %v1663 = vadd.f32 0.0, %v1662
        %v1664 = vpop.f32.mrf.mxu0
        %v1665 = vpop.f32.mrf.mxu0
        %v1666 = vadd.f32 0.0, %v1665
        %v1667 = vpop.f32.mrf.mxu0
        %1668 = vmatprep.mubr.bf16.mxu0 0
        %1669 = vmatmul.mubr.bf16.gmra.mxu0 %v1588
        %v1670 = vpop.f32.mrf.mxu0
        %v1671 = vadd.f32 0.0, %v1670
        %v1672 = vpop.f32.mrf.mxu0
        %v1673 = vpop.f32.mrf.mxu0
        %v1674 = vadd.f32 0.0, %v1673
        %v1675 = vpop.f32.mrf.mxu0
        %1676 = vmatprep.mubr.bf16.mxu0 0
        %1677 = vmatmul.mubr.bf16.gmra.mxu0 %v1591
        %v1678 = vpop.f32.mrf.mxu0
        %v1679 = vadd.f32 0.0, %v1678
        %v1680 = vpop.f32.mrf.mxu0
        %v1681 = vpop.f32.mrf.mxu0
        %v1682 = vadd.f32 0.0, %v1681
        %v1683 = vpop.f32.mrf.mxu0
        %1684 = vmatprep.mubr.bf16.mxu0 0
        %1685 = vmatmul.mubr.bf16.gmra.mxu0 %v1594
        %v1686 = vpop.f32.mrf.mxu0
        %v1687 = vadd.f32 0.0, %v1686
        %v1688 = vpop.f32.mrf.mxu0
        %v1689 = vpop.f32.mrf.mxu0
        %v1690 = vadd.f32 0.0, %v1689
        %v1691 = vpop.f32.mrf.mxu0
        %1692 = vdwg.mxu0
        %v1693 = vadd.f32 %v1453, %v1631
        %v1694 = vadd.f32 %v1456, %v1634
        %v1695 = vadd.f32 %v1461, %v1639
        %v1696 = vadd.f32 %v1464, %v1642
        %v1697 = vadd.f32 %v1469, %v1647
        %v1698 = vadd.f32 %v1472, %v1650
        %v1699 = vadd.f32 %v1477, %v1655
        %v1700 = vadd.f32 %v1480, %v1658
        %v1701 = vadd.f32 %v1485, %v1663
        %v1702 = vadd.f32 %v1488, %v1666
        %v1703 = vadd.f32 %v1493, %v1671
        %v1704 = vadd.f32 %v1496, %v1674
        %v1705 = vadd.f32 %v1501, %v1679
        %v1706 = vadd.f32 %v1504, %v1682
        %v1707 = vadd.f32 %v1509, %v1687
        %v1708 = vadd.f32 %v1512, %v1690
        %v1709 = vpack.c.bf16 %v1694, %v1693
        %v1710 = vpack.c.bf16 %v1696, %v1695
        %v1711 = vpack.c.bf16 %v1698, %v1697
        %v1712 = vpack.c.bf16 %v1700, %v1699
        %v1713 = vpack.c.bf16 %v1702, %v1701
        %v1714 = vpack.c.bf16 %v1704, %v1703
        %v1715 = vpack.c.bf16 %v1706, %v1705
        %v1716 = vpack.c.bf16 %v1708, %v1707
        %v1717 = vunpack.c.l.bf16 %v1709
        %v1718 = vunpack.c.h.bf16 %v1709
        %v1719 = vunpack.c.l.bf16 %v1710
        %v1720 = vunpack.c.h.bf16 %v1710
        %v1721 = vunpack.c.l.bf16 %v1711
        %v1722 = vunpack.c.h.bf16 %v1711
        %v1723 = vunpack.c.l.bf16 %v1712
        %v1724 = vunpack.c.h.bf16 %v1712
        %v1725 = vunpack.c.l.bf16 %v1713
        %v1726 = vunpack.c.h.bf16 %v1713
        %v1727 = vunpack.c.l.bf16 %v1714
        %v1728 = vunpack.c.h.bf16 %v1714
        %v1729 = vunpack.c.l.bf16 %v1715
        %v1730 = vunpack.c.h.bf16 %v1715
        %v1731 = vunpack.c.l.bf16 %v1716
        %v1732 = vunpack.c.h.bf16 %v1716
        %v1733 = vsub.f32 %v1693, %v1717
        %v1734 = vsub.f32 %v1694, %v1718
        %v1735 = vsub.f32 %v1695, %v1719
        %v1736 = vsub.f32 %v1696, %v1720
        %v1737 = vsub.f32 %v1697, %v1721
        %v1738 = vsub.f32 %v1698, %v1722
        %v1739 = vsub.f32 %v1699, %v1723
        %v1740 = vsub.f32 %v1700, %v1724
        %v1741 = vsub.f32 %v1701, %v1725
        %v1742 = vsub.f32 %v1702, %v1726
        %v1743 = vsub.f32 %v1703, %v1727
        %v1744 = vsub.f32 %v1704, %v1728
        %v1745 = vsub.f32 %v1705, %v1729
        %v1746 = vsub.f32 %v1706, %v1730
        %v1747 = vsub.f32 %v1707, %v1731
        %v1748 = vsub.f32 %v1708, %v1732
        %v1749 = vpack.c.bf16 %v1734, %v1733
        %v1750 = vpack.c.bf16 %v1736, %v1735
        %v1751 = vpack.c.bf16 %v1738, %v1737
        %v1752 = vpack.c.bf16 %v1740, %v1739
        %v1753 = vpack.c.bf16 %v1742, %v1741
        %v1754 = vpack.c.bf16 %v1744, %v1743
        %v1755 = vpack.c.bf16 %v1746, %v1745
        %v1756 = vpack.c.bf16 %v1748, %v1747
        %v1757 = vld [vmem:[#allocation2] sm:$0xff]
        %v1758 = vld [vmem:[#allocation2 + $0x8] sm:$0xff]
        %v1759 = vld [vmem:[#allocation2 + $0x10] sm:$0xff]
        %v1760 = vld [vmem:[#allocation2 + $0x18] sm:$0xff]
        %v1761 = vld [vmem:[#allocation2 + $0x20] sm:$0xff]
        %v1762 = vld [vmem:[#allocation2 + $0x28] sm:$0xff]
        %v1763 = vld [vmem:[#allocation2 + $0x30] sm:$0xff]
        %v1764 = vld [vmem:[#allocation2 + $0x38] sm:$0xff]
        %v1765 = vld [vmem:[#allocation2 + $0x40] sm:$0xff]
        %v1766 = vld [vmem:[#allocation2 + $0x48] sm:$0xff]
        %v1767 = vld [vmem:[#allocation2 + $0x50] sm:$0xff]
        %v1768 = vld [vmem:[#allocation2 + $0x58] sm:$0xff]
        %v1769 = vld [vmem:[#allocation2 + $0x60] sm:$0xff]
        %v1770 = vld [vmem:[#allocation2 + $0x68] sm:$0xff]
        %v1771 = vld [vmem:[#allocation2 + $0x70] sm:$0xff]
        %v1772 = vld [vmem:[#allocation2 + $0x78] sm:$0xff]
        %s1773 = scalar_lea.vmem %s3, 8
        %v1774 = vld [vmem:[%s1773] sm:$0xf]
        %v1775 = vld [vmem:[%s1773 + $0x4] sm:$0xf]
        %v1778 = vunpack.c.l.b16 %v1774
        %v1779 = vunpack.c.l.b16 %v1775
        %v1780 = vpack.c.b16 %v1779, %v1778
        %v1783 = vsel %vm909, %v1709, 0
        %v1786 = vsel %vm909, %v1710, 0
        %v1789 = vsel %vm909, %v1711, 0
        %v1792 = vsel %vm909, %v1712, 0
        %v1795 = vsel %vm909, %v1713, 0
        %v1798 = vsel %vm909, %v1714, 0
        %v1801 = vsel %vm909, %v1715, 0
        %v1804 = vsel %vm909, %v1716, 0
        %1806 = vmatprep.subr.bf16.mxu0 0
        %1807 = vmatpush1.bf16.msra.mxu0 0
        %1808 = vmatprep.subr.bf16.mxu0 0
        %1809 = vmatpush1.bf16.msra.mxu0 0
        %1810 = vmatprep.subr.bf16.mxu0 0
        %1811 = vmatpush1.bf16.msra.mxu0 0
        %1812 = vmatprep.subr.bf16.mxu0 0
        %1813 = vmatpush1.bf16.msra.mxu0 0
        %1814 = vmatprep.subr.bf16.mxu0 0
        %1815 = vmatpush1.bf16.msra.mxu0 0
        %1816 = vmatprep.subr.bf16.mxu0 0
        %1817 = vmatpush1.bf16.msra.mxu0 0
        %1818 = vmatprep.subr.bf16.mxu0 0
        %1819 = vmatpush1.bf16.msra.mxu0 0
        %1820 = vmatprep.subr.bf16.mxu0 0
        %1821 = vmatpush1.bf16.msra.mxu0 %v1780
        %1822 = vmatprep.subr.bf16.mxu0 0
        %1823 = vmatpush2.bf16.msra.mxu0 0
        %1824 = vmatprep.subr.bf16.mxu0 0
        %1825 = vmatpush2.bf16.msra.mxu0 0
        %1826 = vmatprep.subr.bf16.mxu0 0
        %1827 = vmatpush2.bf16.msra.mxu0 0
        %1828 = vmatprep.subr.bf16.mxu0 0
        %1829 = vmatpush2.bf16.msra.mxu0 0
        %1830 = vmatprep.subr.bf16.mxu0 0
        %1831 = vmatpush2.bf16.msra.mxu0 0
        %1832 = vmatprep.subr.bf16.mxu0 0
        %1833 = vmatpush2.bf16.msra.mxu0 0
        %1834 = vmatprep.subr.bf16.mxu0 0
        %1835 = vmatpush2.bf16.msra.mxu0 0
        %1836 = vmatprep.subr.bf16.mxu0 0
        %1837 = vmatpush2.bf16.msra.mxu0 0
        %1838 = vmatprep.mubr.bf16.mxu0 0
        %1839 = vmatmul.mubr.bf16.gmra.mxu0 %v1783
        %v1840 = vpop.f32.mrf.mxu0
        %v1841 = vadd.f32 0.0, %v1840
        %v1842 = vpop.f32.mrf.mxu0
        %v1843 = vpop.f32.mrf.mxu0
        %v1844 = vadd.f32 0.0, %v1843
        %v1845 = vpop.f32.mrf.mxu0
        %1846 = vmatprep.mubr.bf16.mxu0 0
        %1847 = vmatmul.mubr.bf16.gmra.mxu0 %v1786
        %v1848 = vpop.f32.mrf.mxu0
        %v1849 = vadd.f32 0.0, %v1848
        %v1850 = vpop.f32.mrf.mxu0
        %v1851 = vpop.f32.mrf.mxu0
        %v1852 = vadd.f32 0.0, %v1851
        %v1853 = vpop.f32.mrf.mxu0
        %1854 = vmatprep.mubr.bf16.mxu0 0
        %1855 = vmatmul.mubr.bf16.gmra.mxu0 %v1789
        %v1856 = vpop.f32.mrf.mxu0
        %v1857 = vadd.f32 0.0, %v1856
        %v1858 = vpop.f32.mrf.mxu0
        %v1859 = vpop.f32.mrf.mxu0
        %v1860 = vadd.f32 0.0, %v1859
        %v1861 = vpop.f32.mrf.mxu0
        %1862 = vmatprep.mubr.bf16.mxu0 0
        %1863 = vmatmul.mubr.bf16.gmra.mxu0 %v1792
        %v1864 = vpop.f32.mrf.mxu0
        %v1865 = vadd.f32 0.0, %v1864
        %v1866 = vpop.f32.mrf.mxu0
        %v1867 = vpop.f32.mrf.mxu0
        %v1868 = vadd.f32 0.0, %v1867
        %v1869 = vpop.f32.mrf.mxu0
        %1870 = vmatprep.mubr.bf16.mxu0 0
        %1871 = vmatmul.mubr.bf16.gmra.mxu0 %v1795
        %v1872 = vpop.f32.mrf.mxu0
        %v1873 = vadd.f32 0.0, %v1872
        %v1874 = vpop.f32.mrf.mxu0
        %v1875 = vpop.f32.mrf.mxu0
        %v1876 = vadd.f32 0.0, %v1875
        %v1877 = vpop.f32.mrf.mxu0
        %1878 = vmatprep.mubr.bf16.mxu0 0
        %1879 = vmatmul.mubr.bf16.gmra.mxu0 %v1798
        %v1880 = vpop.f32.mrf.mxu0
        %v1881 = vadd.f32 0.0, %v1880
        %v1882 = vpop.f32.mrf.mxu0
        %v1883 = vpop.f32.mrf.mxu0
        %v1884 = vadd.f32 0.0, %v1883
        %v1885 = vpop.f32.mrf.mxu0
        %1886 = vmatprep.mubr.bf16.mxu0 0
        %1887 = vmatmul.mubr.bf16.gmra.mxu0 %v1801
        %v1888 = vpop.f32.mrf.mxu0
        %v1889 = vadd.f32 0.0, %v1888
        %v1890 = vpop.f32.mrf.mxu0
        %v1891 = vpop.f32.mrf.mxu0
        %v1892 = vadd.f32 0.0, %v1891
        %v1893 = vpop.f32.mrf.mxu0
        %1894 = vmatprep.mubr.bf16.mxu0 0
        %1895 = vmatmul.mubr.bf16.gmra.mxu0 %v1804
        %v1896 = vpop.f32.mrf.mxu0
        %v1897 = vadd.f32 0.0, %v1896
        %v1898 = vpop.f32.mrf.mxu0
        %v1899 = vpop.f32.mrf.mxu0
        %v1900 = vadd.f32 0.0, %v1899
        %v1901 = vpop.f32.mrf.mxu0
        %1902 = vdwg.mxu0
        %v1903 = vadd.f32 %v1757, %v1841
        %v1904 = vadd.f32 %v1758, %v1844
        %v1905 = vadd.f32 %v1759, %v1849
        %v1906 = vadd.f32 %v1760, %v1852
        %v1907 = vadd.f32 %v1761, %v1857
        %v1908 = vadd.f32 %v1762, %v1860
        %v1909 = vadd.f32 %v1763, %v1865
        %v1910 = vadd.f32 %v1764, %v1868
        %v1911 = vadd.f32 %v1765, %v1873
        %v1912 = vadd.f32 %v1766, %v1876
        %v1913 = vadd.f32 %v1767, %v1881
        %v1914 = vadd.f32 %v1768, %v1884
        %v1915 = vadd.f32 %v1769, %v1889
        %v1916 = vadd.f32 %v1770, %v1892
        %v1917 = vadd.f32 %v1771, %v1897
        %v1918 = vadd.f32 %v1772, %v1900
        %1919 = vst.msk [vmem:[#allocation2] sm:$0xff] %vm352, %v1903
        %1920 = vst.msk [vmem:[#allocation2 + $0x8] sm:$0xff] %vm352, %v1904
        %1921 = vst.msk [vmem:[#allocation2 + $0x10] sm:$0xff] %vm352, %v1905
        %1922 = vst.msk [vmem:[#allocation2 + $0x18] sm:$0xff] %vm352, %v1906
        %1923 = vst.msk [vmem:[#allocation2 + $0x20] sm:$0xff] %vm352, %v1907
        %1924 = vst.msk [vmem:[#allocation2 + $0x28] sm:$0xff] %vm352, %v1908
        %1925 = vst.msk [vmem:[#allocation2 + $0x30] sm:$0xff] %vm352, %v1909
        %1926 = vst.msk [vmem:[#allocation2 + $0x38] sm:$0xff] %vm352, %v1910
        %1927 = vst.msk [vmem:[#allocation2 + $0x40] sm:$0xff] %vm352, %v1911
        %1928 = vst.msk [vmem:[#allocation2 + $0x48] sm:$0xff] %vm352, %v1912
        %1929 = vst.msk [vmem:[#allocation2 + $0x50] sm:$0xff] %vm352, %v1913
        %1930 = vst.msk [vmem:[#allocation2 + $0x58] sm:$0xff] %vm352, %v1914
        %1931 = vst.msk [vmem:[#allocation2 + $0x60] sm:$0xff] %vm352, %v1915
        %1932 = vst.msk [vmem:[#allocation2 + $0x68] sm:$0xff] %vm352, %v1916
        %1933 = vst.msk [vmem:[#allocation2 + $0x70] sm:$0xff] %vm352, %v1917
        %1934 = vst.msk [vmem:[#allocation2 + $0x78] sm:$0xff] %vm352, %v1918
        %v1935 = vld [vmem:[#allocation2] sm:$0xff]
        %v1936 = vld [vmem:[#allocation2 + $0x8] sm:$0xff]
        %v1937 = vld [vmem:[#allocation2 + $0x10] sm:$0xff]
        %v1938 = vld [vmem:[#allocation2 + $0x18] sm:$0xff]
        %v1939 = vld [vmem:[#allocation2 + $0x20] sm:$0xff]
        %v1940 = vld [vmem:[#allocation2 + $0x28] sm:$0xff]
        %v1941 = vld [vmem:[#allocation2 + $0x30] sm:$0xff]
        %v1942 = vld [vmem:[#allocation2 + $0x38] sm:$0xff]
        %v1943 = vld [vmem:[#allocation2 + $0x40] sm:$0xff]
        %v1944 = vld [vmem:[#allocation2 + $0x48] sm:$0xff]
        %v1945 = vld [vmem:[#allocation2 + $0x50] sm:$0xff]
        %v1946 = vld [vmem:[#allocation2 + $0x58] sm:$0xff]
        %v1947 = vld [vmem:[#allocation2 + $0x60] sm:$0xff]
        %v1948 = vld [vmem:[#allocation2 + $0x68] sm:$0xff]
        %v1949 = vld [vmem:[#allocation2 + $0x70] sm:$0xff]
        %v1950 = vld [vmem:[#allocation2 + $0x78] sm:$0xff]
        %v1951 = vld [vmem:[%s1773] sm:$0xf]
        %v1952 = vld [vmem:[%s1773 + $0x4] sm:$0xf]
        %v1955 = vunpack.c.l.b16 %v1951
        %v1956 = vunpack.c.l.b16 %v1952
        %v1957 = vpack.c.b16 %v1956, %v1955
        %v1960 = vsel %vm909, %v1749, 0
        %v1963 = vsel %vm909, %v1750, 0
        %v1966 = vsel %vm909, %v1751, 0
        %v1969 = vsel %vm909, %v1752, 0
        %v1972 = vsel %vm909, %v1753, 0
        %v1975 = vsel %vm909, %v1754, 0
        %v1978 = vsel %vm909, %v1755, 0
        %v1981 = vsel %vm909, %v1756, 0
        %1983 = vmatprep.subr.bf16.mxu0 0
        %1984 = vmatpush1.bf16.msra.mxu0 0
        %1985 = vmatprep.subr.bf16.mxu0 0
        %1986 = vmatpush1.bf16.msra.mxu0 0
        %1987 = vmatprep.subr.bf16.mxu0 0
        %1988 = vmatpush1.bf16.msra.mxu0 0
        %1989 = vmatprep.subr.bf16.mxu0 0
        %1990 = vmatpush1.bf16.msra.mxu0 0
        %1991 = vmatprep.subr.bf16.mxu0 0
        %1992 = vmatpush1.bf16.msra.mxu0 0
        %1993 = vmatprep.subr.bf16.mxu0 0
        %1994 = vmatpush1.bf16.msra.mxu0 0
        %1995 = vmatprep.subr.bf16.mxu0 0
        %1996 = vmatpush1.bf16.msra.mxu0 0
        %1997 = vmatprep.subr.bf16.mxu0 0
        %1998 = vmatpush1.bf16.msra.mxu0 %v1957
        %1999 = vmatprep.subr.bf16.mxu0 0
        %2000 = vmatpush2.bf16.msra.mxu0 0
        %2001 = vmatprep.subr.bf16.mxu0 0
        %2002 = vmatpush2.bf16.msra.mxu0 0
        %2003 = vmatprep.subr.bf16.mxu0 0
        %2004 = vmatpush2.bf16.msra.mxu0 0
        %2005 = vmatprep.subr.bf16.mxu0 0
        %2006 = vmatpush2.bf16.msra.mxu0 0
        %2007 = vmatprep.subr.bf16.mxu0 0
        %2008 = vmatpush2.bf16.msra.mxu0 0
        %2009 = vmatprep.subr.bf16.mxu0 0
        %2010 = vmatpush2.bf16.msra.mxu0 0
        %2011 = vmatprep.subr.bf16.mxu0 0
        %2012 = vmatpush2.bf16.msra.mxu0 0
        %2013 = vmatprep.subr.bf16.mxu0 0
        %2014 = vmatpush2.bf16.msra.mxu0 0
        %2015 = vmatprep.mubr.bf16.mxu0 0
        %2016 = vmatmul.mubr.bf16.gmra.mxu0 %v1960
        %v2017 = vpop.f32.mrf.mxu0
        %v2018 = vadd.f32 0.0, %v2017
        %v2019 = vpop.f32.mrf.mxu0
        %v2020 = vpop.f32.mrf.mxu0
        %v2021 = vadd.f32 0.0, %v2020
        %v2022 = vpop.f32.mrf.mxu0
        %2023 = vmatprep.mubr.bf16.mxu0 0
        %2024 = vmatmul.mubr.bf16.gmra.mxu0 %v1963
        %v2025 = vpop.f32.mrf.mxu0
        %v2026 = vadd.f32 0.0, %v2025
        %v2027 = vpop.f32.mrf.mxu0
        %v2028 = vpop.f32.mrf.mxu0
        %v2029 = vadd.f32 0.0, %v2028
        %v2030 = vpop.f32.mrf.mxu0
        %2031 = vmatprep.mubr.bf16.mxu0 0
        %2032 = vmatmul.mubr.bf16.gmra.mxu0 %v1966
        %v2033 = vpop.f32.mrf.mxu0
        %v2034 = vadd.f32 0.0, %v2033
        %v2035 = vpop.f32.mrf.mxu0
        %v2036 = vpop.f32.mrf.mxu0
        %v2037 = vadd.f32 0.0, %v2036
        %v2038 = vpop.f32.mrf.mxu0
        %2039 = vmatprep.mubr.bf16.mxu0 0
        %2040 = vmatmul.mubr.bf16.gmra.mxu0 %v1969
        %v2041 = vpop.f32.mrf.mxu0
        %v2042 = vadd.f32 0.0, %v2041
        %v2043 = vpop.f32.mrf.mxu0
        %v2044 = vpop.f32.mrf.mxu0
        %v2045 = vadd.f32 0.0, %v2044
        %v2046 = vpop.f32.mrf.mxu0
        %2047 = vmatprep.mubr.bf16.mxu0 0
        %2048 = vmatmul.mubr.bf16.gmra.mxu0 %v1972
        %v2049 = vpop.f32.mrf.mxu0
        %v2050 = vadd.f32 0.0, %v2049
        %v2051 = vpop.f32.mrf.mxu0
        %v2052 = vpop.f32.mrf.mxu0
        %v2053 = vadd.f32 0.0, %v2052
        %v2054 = vpop.f32.mrf.mxu0
        %2055 = vmatprep.mubr.bf16.mxu0 0
        %2056 = vmatmul.mubr.bf16.gmra.mxu0 %v1975
        %v2057 = vpop.f32.mrf.mxu0
        %v2058 = vadd.f32 0.0, %v2057
        %v2059 = vpop.f32.mrf.mxu0
        %v2060 = vpop.f32.mrf.mxu0
        %v2061 = vadd.f32 0.0, %v2060
        %v2062 = vpop.f32.mrf.mxu0
        %2063 = vmatprep.mubr.bf16.mxu0 0
        %2064 = vmatmul.mubr.bf16.gmra.mxu0 %v1978
        %v2065 = vpop.f32.mrf.mxu0
        %v2066 = vadd.f32 0.0, %v2065
        %v2067 = vpop.f32.mrf.mxu0
        %v2068 = vpop.f32.mrf.mxu0
        %v2069 = vadd.f32 0.0, %v2068
        %v2070 = vpop.f32.mrf.mxu0
        %2071 = vmatprep.mubr.bf16.mxu0 0
        %2072 = vmatmul.mubr.bf16.gmra.mxu0 %v1981
        %v2073 = vpop.f32.mrf.mxu0
        %v2074 = vadd.f32 0.0, %v2073
        %v2075 = vpop.f32.mrf.mxu0
        %v2076 = vpop.f32.mrf.mxu0
        %v2077 = vadd.f32 0.0, %v2076
        %v2078 = vpop.f32.mrf.mxu0
        %2079 = vdwg.mxu0
        %v2080 = vadd.f32 %v1935, %v2018
        %v2081 = vadd.f32 %v1936, %v2021
        %v2082 = vadd.f32 %v1937, %v2026
        %v2083 = vadd.f32 %v1938, %v2029
        %v2084 = vadd.f32 %v1939, %v2034
        %v2085 = vadd.f32 %v1940, %v2037
        %v2086 = vadd.f32 %v1941, %v2042
        %v2087 = vadd.f32 %v1942, %v2045
        %v2088 = vadd.f32 %v1943, %v2050
        %v2089 = vadd.f32 %v1944, %v2053
        %v2090 = vadd.f32 %v1945, %v2058
        %v2091 = vadd.f32 %v1946, %v2061
        %v2092 = vadd.f32 %v1947, %v2066
        %v2093 = vadd.f32 %v1948, %v2069
        %v2094 = vadd.f32 %v1949, %v2074
        %v2095 = vadd.f32 %v1950, %v2077
        %2096 = vst.msk [vmem:[#allocation2] sm:$0xff] %vm352, %v2080
        %2097 = vst.msk [vmem:[#allocation2 + $0x8] sm:$0xff] %vm352, %v2081
        %2098 = vst.msk [vmem:[#allocation2 + $0x10] sm:$0xff] %vm352, %v2082
        %2099 = vst.msk [vmem:[#allocation2 + $0x18] sm:$0xff] %vm352, %v2083
        %2100 = vst.msk [vmem:[#allocation2 + $0x20] sm:$0xff] %vm352, %v2084
        %2101 = vst.msk [vmem:[#allocation2 + $0x28] sm:$0xff] %vm352, %v2085
        %2102 = vst.msk [vmem:[#allocation2 + $0x30] sm:$0xff] %vm352, %v2086
        %2103 = vst.msk [vmem:[#allocation2 + $0x38] sm:$0xff] %vm352, %v2087
        %2104 = vst.msk [vmem:[#allocation2 + $0x40] sm:$0xff] %vm352, %v2088
        %2105 = vst.msk [vmem:[#allocation2 + $0x48] sm:$0xff] %vm352, %v2089
        %2106 = vst.msk [vmem:[#allocation2 + $0x50] sm:$0xff] %vm352, %v2090
        %2107 = vst.msk [vmem:[#allocation2 + $0x58] sm:$0xff] %vm352, %v2091
        %2108 = vst.msk [vmem:[#allocation2 + $0x60] sm:$0xff] %vm352, %v2092
        %2109 = vst.msk [vmem:[#allocation2 + $0x68] sm:$0xff] %vm352, %v2093
        %2110 = vst.msk [vmem:[#allocation2 + $0x70] sm:$0xff] %vm352, %v2094
        %2111 = vst.msk [vmem:[#allocation2 + $0x78] sm:$0xff] %vm352, %v2095
        %s2112 = scalar_lea.vmem %s1, 128
        %v2113 = vld [vmem:[%s2112] sm:$0xf]
        %v2114 = vld [vmem:[%s2112 + $0x4] sm:$0xf]
        %v2115 = vld [vmem:[%s2112 + $0x8] sm:$0xf]
        %v2116 = vld [vmem:[%s2112 + $0xc] sm:$0xf]
        %v2117 = vld [vmem:[%s2112 + $0x10] sm:$0xf]
        %v2118 = vld [vmem:[%s2112 + $0x14] sm:$0xf]
        %v2119 = vld [vmem:[%s2112 + $0x18] sm:$0xf]
        %v2120 = vld [vmem:[%s2112 + $0x1c] sm:$0xf]
        %v2121 = vld [vmem:[%s2112 + $0x20] sm:$0xf]
        %v2122 = vld [vmem:[%s2112 + $0x24] sm:$0xf]
        %v2123 = vld [vmem:[%s2112 + $0x28] sm:$0xf]
        %v2124 = vld [vmem:[%s2112 + $0x2c] sm:$0xf]
        %v2125 = vld [vmem:[%s2112 + $0x30] sm:$0xf]
        %v2126 = vld [vmem:[%s2112 + $0x34] sm:$0xf]
        %v2127 = vld [vmem:[%s2112 + $0x38] sm:$0xf]
        %v2128 = vld [vmem:[%s2112 + $0x3c] sm:$0xf]
        %v2145 = vunpack.c.l.b16 %v2113
        %v2146 = vunpack.c.l.b16 %v2114
        %v2147 = vunpack.c.l.b16 %v2115
        %v2148 = vunpack.c.l.b16 %v2116
        %v2149 = vunpack.c.l.b16 %v2117
        %v2150 = vunpack.c.l.b16 %v2118
        %v2151 = vunpack.c.l.b16 %v2119
        %v2152 = vunpack.c.l.b16 %v2120
        %v2153 = vunpack.c.l.b16 %v2121
        %v2154 = vunpack.c.l.b16 %v2122
        %v2155 = vunpack.c.l.b16 %v2123
        %v2156 = vunpack.c.l.b16 %v2124
        %v2157 = vunpack.c.l.b16 %v2125
        %v2158 = vunpack.c.l.b16 %v2126
        %v2159 = vunpack.c.l.b16 %v2127
        %v2160 = vunpack.c.l.b16 %v2128
        %v2161 = vpack.c.b16 %v2146, %v2145
        %v2162 = vpack.c.b16 %v2148, %v2147
        %v2163 = vpack.c.b16 %v2150, %v2149
        %v2164 = vpack.c.b16 %v2152, %v2151
        %v2165 = vpack.c.b16 %v2154, %v2153
        %v2166 = vpack.c.b16 %v2156, %v2155
        %v2167 = vpack.c.b16 %v2158, %v2157
        %v2168 = vpack.c.b16 %v2160, %v2159
        %v2170 = vsel %vm425, %v2161, 0
        %v2173 = vsel %vm425, %v2162, 0
        %v2176 = vsel %vm425, %v2163, 0
        %v2179 = vsel %vm425, %v2164, 0
        %v2182 = vsel %vm425, %v2165, 0
        %v2185 = vsel %vm425, %v2166, 0
        %v2188 = vsel %vm425, %v2167, 0
        %v2191 = vsel %vm425, %v2168, 0
        %2193 = vmatprep.subr.bf16.mxu0 0
        %2194 = vmatpush1.bf16.msra.mxu0 0
        %2195 = vmatprep.subr.bf16.mxu0 0
        %2196 = vmatpush1.bf16.msra.mxu0 0
        %2197 = vmatprep.subr.bf16.mxu0 0
        %2198 = vmatpush1.bf16.msra.mxu0 0
        %2199 = vmatprep.subr.bf16.mxu0 0
        %2200 = vmatpush1.bf16.msra.mxu0 0
        %2201 = vmatprep.subr.bf16.mxu0 0
        %2202 = vmatpush1.bf16.msra.mxu0 %v255
        %2203 = vmatprep.subr.bf16.mxu0 0
        %2204 = vmatpush1.bf16.msra.mxu0 %v254
        %2205 = vmatprep.subr.bf16.mxu0 0
        %2206 = vmatpush1.bf16.msra.mxu0 %v253
        %2207 = vmatprep.subr.bf16.mxu0 0
        %2208 = vmatpush1.bf16.msra.mxu0 %v252
        %2209 = vmatprep.subr.bf16.mxu0 0
        %2210 = vmatpush2.bf16.msra.mxu0 0
        %2211 = vmatprep.subr.bf16.mxu0 0
        %2212 = vmatpush2.bf16.msra.mxu0 0
        %2213 = vmatprep.subr.bf16.mxu0 0
        %2214 = vmatpush2.bf16.msra.mxu0 0
        %2215 = vmatprep.subr.bf16.mxu0 0
        %2216 = vmatpush2.bf16.msra.mxu0 0
        %2217 = vmatprep.subr.bf16.mxu0 0
        %2218 = vmatpush2.bf16.msra.mxu0 0
        %2219 = vmatprep.subr.bf16.mxu0 0
        %2220 = vmatpush2.bf16.msra.mxu0 0
        %2221 = vmatprep.subr.bf16.mxu0 0
        %2222 = vmatpush2.bf16.msra.mxu0 0
        %2223 = vmatprep.subr.bf16.mxu0 0
        %2224 = vmatpush2.bf16.msra.mxu0 0
        %2225 = vmatprep.mubr.bf16.mxu0 0
        %2226 = vmatmul.mubr.bf16.gmra.mxu0 %v2170
        %v2227 = vpop.f32.mrf.mxu0
        %v2228 = vadd.f32 0.0, %v2227
        %v2229 = vpop.f32.mrf.mxu0
        %v2230 = vpop.f32.mrf.mxu0
        %v2231 = vadd.f32 0.0, %v2230
        %v2232 = vpop.f32.mrf.mxu0
        %2233 = vmatprep.mubr.bf16.mxu0 0
        %2234 = vmatmul.mubr.bf16.gmra.mxu0 %v2173
        %v2235 = vpop.f32.mrf.mxu0
        %v2236 = vadd.f32 0.0, %v2235
        %v2237 = vpop.f32.mrf.mxu0
        %v2238 = vpop.f32.mrf.mxu0
        %v2239 = vadd.f32 0.0, %v2238
        %v2240 = vpop.f32.mrf.mxu0
        %2241 = vmatprep.mubr.bf16.mxu0 0
        %2242 = vmatmul.mubr.bf16.gmra.mxu0 %v2176
        %v2243 = vpop.f32.mrf.mxu0
        %v2244 = vadd.f32 0.0, %v2243
        %v2245 = vpop.f32.mrf.mxu0
        %v2246 = vpop.f32.mrf.mxu0
        %v2247 = vadd.f32 0.0, %v2246
        %v2248 = vpop.f32.mrf.mxu0
        %2249 = vmatprep.mubr.bf16.mxu0 0
        %2250 = vmatmul.mubr.bf16.gmra.mxu0 %v2179
        %v2251 = vpop.f32.mrf.mxu0
        %v2252 = vadd.f32 0.0, %v2251
        %v2253 = vpop.f32.mrf.mxu0
        %v2254 = vpop.f32.mrf.mxu0
        %v2255 = vadd.f32 0.0, %v2254
        %v2256 = vpop.f32.mrf.mxu0
        %2257 = vmatprep.mubr.bf16.mxu0 0
        %2258 = vmatmul.mubr.bf16.gmra.mxu0 %v2182
        %v2259 = vpop.f32.mrf.mxu0
        %v2260 = vadd.f32 0.0, %v2259
        %v2261 = vpop.f32.mrf.mxu0
        %v2262 = vpop.f32.mrf.mxu0
        %v2263 = vadd.f32 0.0, %v2262
        %v2264 = vpop.f32.mrf.mxu0
        %2265 = vmatprep.mubr.bf16.mxu0 0
        %2266 = vmatmul.mubr.bf16.gmra.mxu0 %v2185
        %v2267 = vpop.f32.mrf.mxu0
        %v2268 = vadd.f32 0.0, %v2267
        %v2269 = vpop.f32.mrf.mxu0
        %v2270 = vpop.f32.mrf.mxu0
        %v2271 = vadd.f32 0.0, %v2270
        %v2272 = vpop.f32.mrf.mxu0
        %2273 = vmatprep.mubr.bf16.mxu0 0
        %2274 = vmatmul.mubr.bf16.gmra.mxu0 %v2188
        %v2275 = vpop.f32.mrf.mxu0
        %v2276 = vadd.f32 0.0, %v2275
        %v2277 = vpop.f32.mrf.mxu0
        %v2278 = vpop.f32.mrf.mxu0
        %v2279 = vadd.f32 0.0, %v2278
        %v2280 = vpop.f32.mrf.mxu0
        %2281 = vmatprep.mubr.bf16.mxu0 0
        %2282 = vmatmul.mubr.bf16.gmra.mxu0 %v2191
        %v2283 = vpop.f32.mrf.mxu0
        %v2284 = vadd.f32 0.0, %v2283
        %v2285 = vpop.f32.mrf.mxu0
        %v2286 = vpop.f32.mrf.mxu0
        %v2287 = vadd.f32 0.0, %v2286
        %v2288 = vpop.f32.mrf.mxu0
        %2289 = vdwg.mxu0
        %2290 = vmatprep.subr.bf16.mxu0 0
        %2291 = vmatpush1.bf16.msra.mxu0 0
        %2292 = vmatprep.subr.bf16.mxu0 0
        %2293 = vmatpush1.bf16.msra.mxu0 0
        %2294 = vmatprep.subr.bf16.mxu0 0
        %2295 = vmatpush1.bf16.msra.mxu0 0
        %2296 = vmatprep.subr.bf16.mxu0 0
        %2297 = vmatpush1.bf16.msra.mxu0 0
        %2298 = vmatprep.subr.bf16.mxu0 0
        %2299 = vmatpush1.bf16.msra.mxu0 %v235
        %2300 = vmatprep.subr.bf16.mxu0 0
        %2301 = vmatpush1.bf16.msra.mxu0 %v234
        %2302 = vmatprep.subr.bf16.mxu0 0
        %2303 = vmatpush1.bf16.msra.mxu0 %v233
        %2304 = vmatprep.subr.bf16.mxu0 0
        %2305 = vmatpush1.bf16.msra.mxu0 %v232
        %2306 = vmatprep.subr.bf16.mxu0 0
        %2307 = vmatpush2.bf16.msra.mxu0 0
        %2308 = vmatprep.subr.bf16.mxu0 0
        %2309 = vmatpush2.bf16.msra.mxu0 0
        %2310 = vmatprep.subr.bf16.mxu0 0
        %2311 = vmatpush2.bf16.msra.mxu0 0
        %2312 = vmatprep.subr.bf16.mxu0 0
        %2313 = vmatpush2.bf16.msra.mxu0 0
        %2314 = vmatprep.subr.bf16.mxu0 0
        %2315 = vmatpush2.bf16.msra.mxu0 0
        %2316 = vmatprep.subr.bf16.mxu0 0
        %2317 = vmatpush2.bf16.msra.mxu0 0
        %2318 = vmatprep.subr.bf16.mxu0 0
        %2319 = vmatpush2.bf16.msra.mxu0 0
        %2320 = vmatprep.subr.bf16.mxu0 0
        %2321 = vmatpush2.bf16.msra.mxu0 0
        %2322 = vmatprep.mubr.bf16.mxu0 0
        %2323 = vmatmul.mubr.bf16.gmra.mxu0 %v2170
        %v2324 = vpop.f32.mrf.mxu0
        %v2325 = vadd.f32 %v2228, %v2324
        %v2326 = vpop.f32.mrf.mxu0
        %v2327 = vpop.f32.mrf.mxu0
        %v2328 = vadd.f32 %v2231, %v2327
        %v2329 = vpop.f32.mrf.mxu0
        %2330 = vmatprep.mubr.bf16.mxu0 0
        %2331 = vmatmul.mubr.bf16.gmra.mxu0 %v2173
        %v2332 = vpop.f32.mrf.mxu0
        %v2333 = vadd.f32 %v2236, %v2332
        %v2334 = vpop.f32.mrf.mxu0
        %v2335 = vpop.f32.mrf.mxu0
        %v2336 = vadd.f32 %v2239, %v2335
        %v2337 = vpop.f32.mrf.mxu0
        %2338 = vmatprep.mubr.bf16.mxu0 0
        %2339 = vmatmul.mubr.bf16.gmra.mxu0 %v2176
        %v2340 = vpop.f32.mrf.mxu0
        %v2341 = vadd.f32 %v2244, %v2340
        %v2342 = vpop.f32.mrf.mxu0
        %v2343 = vpop.f32.mrf.mxu0
        %v2344 = vadd.f32 %v2247, %v2343
        %v2345 = vpop.f32.mrf.mxu0
        %2346 = vmatprep.mubr.bf16.mxu0 0
        %2347 = vmatmul.mubr.bf16.gmra.mxu0 %v2179
        %v2348 = vpop.f32.mrf.mxu0
        %v2349 = vadd.f32 %v2252, %v2348
        %v2350 = vpop.f32.mrf.mxu0
        %v2351 = vpop.f32.mrf.mxu0
        %v2352 = vadd.f32 %v2255, %v2351
        %v2353 = vpop.f32.mrf.mxu0
        %2354 = vmatprep.mubr.bf16.mxu0 0
        %2355 = vmatmul.mubr.bf16.gmra.mxu0 %v2182
        %v2356 = vpop.f32.mrf.mxu0
        %v2357 = vadd.f32 %v2260, %v2356
        %v2358 = vpop.f32.mrf.mxu0
        %v2359 = vpop.f32.mrf.mxu0
        %v2360 = vadd.f32 %v2263, %v2359
        %v2361 = vpop.f32.mrf.mxu0
        %2362 = vmatprep.mubr.bf16.mxu0 0
        %2363 = vmatmul.mubr.bf16.gmra.mxu0 %v2185
        %v2364 = vpop.f32.mrf.mxu0
        %v2365 = vadd.f32 %v2268, %v2364
        %v2366 = vpop.f32.mrf.mxu0
        %v2367 = vpop.f32.mrf.mxu0
        %v2368 = vadd.f32 %v2271, %v2367
        %v2369 = vpop.f32.mrf.mxu0
        %2370 = vmatprep.mubr.bf16.mxu0 0
        %2371 = vmatmul.mubr.bf16.gmra.mxu0 %v2188
        %v2372 = vpop.f32.mrf.mxu0
        %v2373 = vadd.f32 %v2276, %v2372
        %v2374 = vpop.f32.mrf.mxu0
        %v2375 = vpop.f32.mrf.mxu0
        %v2376 = vadd.f32 %v2279, %v2375
        %v2377 = vpop.f32.mrf.mxu0
        %2378 = vmatprep.mubr.bf16.mxu0 0
        %2379 = vmatmul.mubr.bf16.gmra.mxu0 %v2191
        %v2380 = vpop.f32.mrf.mxu0
        %v2381 = vadd.f32 %v2284, %v2380
        %v2382 = vpop.f32.mrf.mxu0
        %v2383 = vpop.f32.mrf.mxu0
        %v2384 = vadd.f32 %v2287, %v2383
        %v2385 = vpop.f32.mrf.mxu0
        %2386 = vdwg.mxu0
        %s2387 = scalar_lea.vmem %s2, 128
        %v2388 = vld [vmem:[%s2387] sm:$0xf]
        %v2389 = vld [vmem:[%s2387 + $0x4] sm:$0xf]
        %v2390 = vld [vmem:[%s2387 + $0x8] sm:$0xf]
        %v2391 = vld [vmem:[%s2387 + $0xc] sm:$0xf]
        %v2392 = vld [vmem:[%s2387 + $0x10] sm:$0xf]
        %v2393 = vld [vmem:[%s2387 + $0x14] sm:$0xf]
        %v2394 = vld [vmem:[%s2387 + $0x18] sm:$0xf]
        %v2395 = vld [vmem:[%s2387 + $0x1c] sm:$0xf]
        %v2396 = vld [vmem:[%s2387 + $0x20] sm:$0xf]
        %v2397 = vld [vmem:[%s2387 + $0x24] sm:$0xf]
        %v2398 = vld [vmem:[%s2387 + $0x28] sm:$0xf]
        %v2399 = vld [vmem:[%s2387 + $0x2c] sm:$0xf]
        %v2400 = vld [vmem:[%s2387 + $0x30] sm:$0xf]
        %v2401 = vld [vmem:[%s2387 + $0x34] sm:$0xf]
        %v2402 = vld [vmem:[%s2387 + $0x38] sm:$0xf]
        %v2403 = vld [vmem:[%s2387 + $0x3c] sm:$0xf]
        %v2420 = vunpack.c.l.b16 %v2388
        %v2421 = vunpack.c.l.b16 %v2389
        %v2422 = vunpack.c.l.b16 %v2390
        %v2423 = vunpack.c.l.b16 %v2391
        %v2424 = vunpack.c.l.b16 %v2392
        %v2425 = vunpack.c.l.b16 %v2393
        %v2426 = vunpack.c.l.b16 %v2394
        %v2427 = vunpack.c.l.b16 %v2395
        %v2428 = vunpack.c.l.b16 %v2396
        %v2429 = vunpack.c.l.b16 %v2397
        %v2430 = vunpack.c.l.b16 %v2398
        %v2431 = vunpack.c.l.b16 %v2399
        %v2432 = vunpack.c.l.b16 %v2400
        %v2433 = vunpack.c.l.b16 %v2401
        %v2434 = vunpack.c.l.b16 %v2402
        %v2435 = vunpack.c.l.b16 %v2403
        %v2436 = vpack.c.b16 %v2421, %v2420
        %v2437 = vpack.c.b16 %v2423, %v2422
        %v2438 = vpack.c.b16 %v2425, %v2424
        %v2439 = vpack.c.b16 %v2427, %v2426
        %v2440 = vpack.c.b16 %v2429, %v2428
        %v2441 = vpack.c.b16 %v2431, %v2430
        %v2442 = vpack.c.b16 %v2433, %v2432
        %v2443 = vpack.c.b16 %v2435, %v2434
        %v2445 = vsel %vm425, %v2436, 0
        %v2448 = vsel %vm425, %v2437, 0
        %v2451 = vsel %vm425, %v2438, 0
        %v2454 = vsel %vm425, %v2439, 0
        %v2457 = vsel %vm425, %v2440, 0
        %v2460 = vsel %vm425, %v2441, 0
        %v2463 = vsel %vm425, %v2442, 0
        %v2466 = vsel %vm425, %v2443, 0
        %2468 = vmatprep.subr.bf16.mxu0 0
        %2469 = vmatpush1.bf16.msra.mxu0 0
        %2470 = vmatprep.subr.bf16.mxu0 0
        %2471 = vmatpush1.bf16.msra.mxu0 0
        %2472 = vmatprep.subr.bf16.mxu0 0
        %2473 = vmatpush1.bf16.msra.mxu0 0
        %2474 = vmatprep.subr.bf16.mxu0 0
        %2475 = vmatpush1.bf16.msra.mxu0 0
        %2476 = vmatprep.subr.bf16.mxu0 0
        %2477 = vmatpush1.bf16.msra.mxu0 %v235
        %2478 = vmatprep.subr.bf16.mxu0 0
        %2479 = vmatpush1.bf16.msra.mxu0 %v234
        %2480 = vmatprep.subr.bf16.mxu0 0
        %2481 = vmatpush1.bf16.msra.mxu0 %v233
        %2482 = vmatprep.subr.bf16.mxu0 0
        %2483 = vmatpush1.bf16.msra.mxu0 %v232
        %2484 = vmatprep.subr.bf16.mxu0 0
        %2485 = vmatpush2.bf16.msra.mxu0 0
        %2486 = vmatprep.subr.bf16.mxu0 0
        %2487 = vmatpush2.bf16.msra.mxu0 0
        %2488 = vmatprep.subr.bf16.mxu0 0
        %2489 = vmatpush2.bf16.msra.mxu0 0
        %2490 = vmatprep.subr.bf16.mxu0 0
        %2491 = vmatpush2.bf16.msra.mxu0 0
        %2492 = vmatprep.subr.bf16.mxu0 0
        %2493 = vmatpush2.bf16.msra.mxu0 0
        %2494 = vmatprep.subr.bf16.mxu0 0
        %2495 = vmatpush2.bf16.msra.mxu0 0
        %2496 = vmatprep.subr.bf16.mxu0 0
        %2497 = vmatpush2.bf16.msra.mxu0 0
        %2498 = vmatprep.subr.bf16.mxu0 0
        %2499 = vmatpush2.bf16.msra.mxu0 0
        %2500 = vmatprep.mubr.bf16.mxu0 0
        %2501 = vmatmul.mubr.bf16.gmra.mxu0 %v2445
        %v2502 = vpop.f32.mrf.mxu0
        %v2503 = vadd.f32 0.0, %v2502
        %v2504 = vpop.f32.mrf.mxu0
        %v2505 = vpop.f32.mrf.mxu0
        %v2506 = vadd.f32 0.0, %v2505
        %v2507 = vpop.f32.mrf.mxu0
        %2508 = vmatprep.mubr.bf16.mxu0 0
        %2509 = vmatmul.mubr.bf16.gmra.mxu0 %v2448
        %v2510 = vpop.f32.mrf.mxu0
        %v2511 = vadd.f32 0.0, %v2510
        %v2512 = vpop.f32.mrf.mxu0
        %v2513 = vpop.f32.mrf.mxu0
        %v2514 = vadd.f32 0.0, %v2513
        %v2515 = vpop.f32.mrf.mxu0
        %2516 = vmatprep.mubr.bf16.mxu0 0
        %2517 = vmatmul.mubr.bf16.gmra.mxu0 %v2451
        %v2518 = vpop.f32.mrf.mxu0
        %v2519 = vadd.f32 0.0, %v2518
        %v2520 = vpop.f32.mrf.mxu0
        %v2521 = vpop.f32.mrf.mxu0
        %v2522 = vadd.f32 0.0, %v2521
        %v2523 = vpop.f32.mrf.mxu0
        %2524 = vmatprep.mubr.bf16.mxu0 0
        %2525 = vmatmul.mubr.bf16.gmra.mxu0 %v2454
        %v2526 = vpop.f32.mrf.mxu0
        %v2527 = vadd.f32 0.0, %v2526
        %v2528 = vpop.f32.mrf.mxu0
        %v2529 = vpop.f32.mrf.mxu0
        %v2530 = vadd.f32 0.0, %v2529
        %v2531 = vpop.f32.mrf.mxu0
        %2532 = vmatprep.mubr.bf16.mxu0 0
        %2533 = vmatmul.mubr.bf16.gmra.mxu0 %v2457
        %v2534 = vpop.f32.mrf.mxu0
        %v2535 = vadd.f32 0.0, %v2534
        %v2536 = vpop.f32.mrf.mxu0
        %v2537 = vpop.f32.mrf.mxu0
        %v2538 = vadd.f32 0.0, %v2537
        %v2539 = vpop.f32.mrf.mxu0
        %2540 = vmatprep.mubr.bf16.mxu0 0
        %2541 = vmatmul.mubr.bf16.gmra.mxu0 %v2460
        %v2542 = vpop.f32.mrf.mxu0
        %v2543 = vadd.f32 0.0, %v2542
        %v2544 = vpop.f32.mrf.mxu0
        %v2545 = vpop.f32.mrf.mxu0
        %v2546 = vadd.f32 0.0, %v2545
        %v2547 = vpop.f32.mrf.mxu0
        %2548 = vmatprep.mubr.bf16.mxu0 0
        %2549 = vmatmul.mubr.bf16.gmra.mxu0 %v2463
        %v2550 = vpop.f32.mrf.mxu0
        %v2551 = vadd.f32 0.0, %v2550
        %v2552 = vpop.f32.mrf.mxu0
        %v2553 = vpop.f32.mrf.mxu0
        %v2554 = vadd.f32 0.0, %v2553
        %v2555 = vpop.f32.mrf.mxu0
        %2556 = vmatprep.mubr.bf16.mxu0 0
        %2557 = vmatmul.mubr.bf16.gmra.mxu0 %v2466
        %v2558 = vpop.f32.mrf.mxu0
        %v2559 = vadd.f32 0.0, %v2558
        %v2560 = vpop.f32.mrf.mxu0
        %v2561 = vpop.f32.mrf.mxu0
        %v2562 = vadd.f32 0.0, %v2561
        %v2563 = vpop.f32.mrf.mxu0
        %2564 = vdwg.mxu0
        %v2565 = vadd.f32 %v2325, %v2503
        %v2566 = vadd.f32 %v2328, %v2506
        %v2567 = vadd.f32 %v2333, %v2511
        %v2568 = vadd.f32 %v2336, %v2514
        %v2569 = vadd.f32 %v2341, %v2519
        %v2570 = vadd.f32 %v2344, %v2522
        %v2571 = vadd.f32 %v2349, %v2527
        %v2572 = vadd.f32 %v2352, %v2530
        %v2573 = vadd.f32 %v2357, %v2535
        %v2574 = vadd.f32 %v2360, %v2538
        %v2575 = vadd.f32 %v2365, %v2543
        %v2576 = vadd.f32 %v2368, %v2546
        %v2577 = vadd.f32 %v2373, %v2551
        %v2578 = vadd.f32 %v2376, %v2554
        %v2579 = vadd.f32 %v2381, %v2559
        %v2580 = vadd.f32 %v2384, %v2562
        %v2581 = vpack.c.bf16 %v2566, %v2565
        %v2582 = vpack.c.bf16 %v2568, %v2567
        %v2583 = vpack.c.bf16 %v2570, %v2569
        %v2584 = vpack.c.bf16 %v2572, %v2571
        %v2585 = vpack.c.bf16 %v2574, %v2573
        %v2586 = vpack.c.bf16 %v2576, %v2575
        %v2587 = vpack.c.bf16 %v2578, %v2577
        %v2588 = vpack.c.bf16 %v2580, %v2579
        %v2589 = vunpack.c.l.bf16 %v2581
        %v2590 = vunpack.c.h.bf16 %v2581
        %v2591 = vunpack.c.l.bf16 %v2582
        %v2592 = vunpack.c.h.bf16 %v2582
        %v2593 = vunpack.c.l.bf16 %v2583
        %v2594 = vunpack.c.h.bf16 %v2583
        %v2595 = vunpack.c.l.bf16 %v2584
        %v2596 = vunpack.c.h.bf16 %v2584
        %v2597 = vunpack.c.l.bf16 %v2585
        %v2598 = vunpack.c.h.bf16 %v2585
        %v2599 = vunpack.c.l.bf16 %v2586
        %v2600 = vunpack.c.h.bf16 %v2586
        %v2601 = vunpack.c.l.bf16 %v2587
        %v2602 = vunpack.c.h.bf16 %v2587
        %v2603 = vunpack.c.l.bf16 %v2588
        %v2604 = vunpack.c.h.bf16 %v2588
        %v2605 = vsub.f32 %v2565, %v2589
        %v2606 = vsub.f32 %v2566, %v2590
        %v2607 = vsub.f32 %v2567, %v2591
        %v2608 = vsub.f32 %v2568, %v2592
        %v2609 = vsub.f32 %v2569, %v2593
        %v2610 = vsub.f32 %v2570, %v2594
        %v2611 = vsub.f32 %v2571, %v2595
        %v2612 = vsub.f32 %v2572, %v2596
        %v2613 = vsub.f32 %v2573, %v2597
        %v2614 = vsub.f32 %v2574, %v2598
        %v2615 = vsub.f32 %v2575, %v2599
        %v2616 = vsub.f32 %v2576, %v2600
        %v2617 = vsub.f32 %v2577, %v2601
        %v2618 = vsub.f32 %v2578, %v2602
        %v2619 = vsub.f32 %v2579, %v2603
        %v2620 = vsub.f32 %v2580, %v2604
        %v2621 = vpack.c.bf16 %v2606, %v2605
        %v2622 = vpack.c.bf16 %v2608, %v2607
        %v2623 = vpack.c.bf16 %v2610, %v2609
        %v2624 = vpack.c.bf16 %v2612, %v2611
        %v2625 = vpack.c.bf16 %v2614, %v2613
        %v2626 = vpack.c.bf16 %v2616, %v2615
        %v2627 = vpack.c.bf16 %v2618, %v2617
        %v2628 = vpack.c.bf16 %v2620, %v2619
        %v2629 = vld [vmem:[#allocation2] sm:$0xff]
        %v2630 = vld [vmem:[#allocation2 + $0x8] sm:$0xff]
        %v2631 = vld [vmem:[#allocation2 + $0x10] sm:$0xff]
        %v2632 = vld [vmem:[#allocation2 + $0x18] sm:$0xff]
        %v2633 = vld [vmem:[#allocation2 + $0x20] sm:$0xff]
        %v2634 = vld [vmem:[#allocation2 + $0x28] sm:$0xff]
        %v2635 = vld [vmem:[#allocation2 + $0x30] sm:$0xff]
        %v2636 = vld [vmem:[#allocation2 + $0x38] sm:$0xff]
        %v2637 = vld [vmem:[#allocation2 + $0x40] sm:$0xff]
        %v2638 = vld [vmem:[#allocation2 + $0x48] sm:$0xff]
        %v2639 = vld [vmem:[#allocation2 + $0x50] sm:$0xff]
        %v2640 = vld [vmem:[#allocation2 + $0x58] sm:$0xff]
        %v2641 = vld [vmem:[#allocation2 + $0x60] sm:$0xff]
        %v2642 = vld [vmem:[#allocation2 + $0x68] sm:$0xff]
        %v2643 = vld [vmem:[#allocation2 + $0x70] sm:$0xff]
        %v2644 = vld [vmem:[#allocation2 + $0x78] sm:$0xff]
        %s2645 = scalar_lea.vmem %s3, 16
        %v2646 = vld [vmem:[%s2645] sm:$0xf]
        %v2647 = vld [vmem:[%s2645 + $0x4] sm:$0xf]
        %v2650 = vunpack.c.l.b16 %v2646
        %v2651 = vunpack.c.l.b16 %v2647
        %v2652 = vpack.c.b16 %v2651, %v2650
        %v2655 = vsel %vm909, %v2581, 0
        %v2658 = vsel %vm909, %v2582, 0
        %v2661 = vsel %vm909, %v2583, 0
        %v2664 = vsel %vm909, %v2584, 0
        %v2667 = vsel %vm909, %v2585, 0
        %v2670 = vsel %vm909, %v2586, 0
        %v2673 = vsel %vm909, %v2587, 0
        %v2676 = vsel %vm909, %v2588, 0
        %2678 = vmatprep.subr.bf16.mxu0 0
        %2679 = vmatpush1.bf16.msra.mxu0 0
        %2680 = vmatprep.subr.bf16.mxu0 0
        %2681 = vmatpush1.bf16.msra.mxu0 0
        %2682 = vmatprep.subr.bf16.mxu0 0
        %2683 = vmatpush1.bf16.msra.mxu0 0
        %2684 = vmatprep.subr.bf16.mxu0 0
        %2685 = vmatpush1.bf16.msra.mxu0 0
        %2686 = vmatprep.subr.bf16.mxu0 0
        %2687 = vmatpush1.bf16.msra.mxu0 0
        %2688 = vmatprep.subr.bf16.mxu0 0
        %2689 = vmatpush1.bf16.msra.mxu0 0
        %2690 = vmatprep.subr.bf16.mxu0 0
        %2691 = vmatpush1.bf16.msra.mxu0 0
        %2692 = vmatprep.subr.bf16.mxu0 0
        %2693 = vmatpush1.bf16.msra.mxu0 %v2652
        %2694 = vmatprep.subr.bf16.mxu0 0
        %2695 = vmatpush2.bf16.msra.mxu0 0
        %2696 = vmatprep.subr.bf16.mxu0 0
        %2697 = vmatpush2.bf16.msra.mxu0 0
        %2698 = vmatprep.subr.bf16.mxu0 0
        %2699 = vmatpush2.bf16.msra.mxu0 0
        %2700 = vmatprep.subr.bf16.mxu0 0
        %2701 = vmatpush2.bf16.msra.mxu0 0
        %2702 = vmatprep.subr.bf16.mxu0 0
        %2703 = vmatpush2.bf16.msra.mxu0 0
        %2704 = vmatprep.subr.bf16.mxu0 0
        %2705 = vmatpush2.bf16.msra.mxu0 0
        %2706 = vmatprep.subr.bf16.mxu0 0
        %2707 = vmatpush2.bf16.msra.mxu0 0
        %2708 = vmatprep.subr.bf16.mxu0 0
        %2709 = vmatpush2.bf16.msra.mxu0 0
        %2710 = vmatprep.mubr.bf16.mxu0 0
        %2711 = vmatmul.mubr.bf16.gmra.mxu0 %v2655
        %v2712 = vpop.f32.mrf.mxu0
        %v2713 = vadd.f32 0.0, %v2712
        %v2714 = vpop.f32.mrf.mxu0
        %v2715 = vpop.f32.mrf.mxu0
        %v2716 = vadd.f32 0.0, %v2715
        %v2717 = vpop.f32.mrf.mxu0
        %2718 = vmatprep.mubr.bf16.mxu0 0
        %2719 = vmatmul.mubr.bf16.gmra.mxu0 %v2658
        %v2720 = vpop.f32.mrf.mxu0
        %v2721 = vadd.f32 0.0, %v2720
        %v2722 = vpop.f32.mrf.mxu0
        %v2723 = vpop.f32.mrf.mxu0
        %v2724 = vadd.f32 0.0, %v2723
        %v2725 = vpop.f32.mrf.mxu0
        %2726 = vmatprep.mubr.bf16.mxu0 0
        %2727 = vmatmul.mubr.bf16.gmra.mxu0 %v2661
        %v2728 = vpop.f32.mrf.mxu0
        %v2729 = vadd.f32 0.0, %v2728
        %v2730 = vpop.f32.mrf.mxu0
        %v2731 = vpop.f32.mrf.mxu0
        %v2732 = vadd.f32 0.0, %v2731
        %v2733 = vpop.f32.mrf.mxu0
        %2734 = vmatprep.mubr.bf16.mxu0 0
        %2735 = vmatmul.mubr.bf16.gmra.mxu0 %v2664
        %v2736 = vpop.f32.mrf.mxu0
        %v2737 = vadd.f32 0.0, %v2736
        %v2738 = vpop.f32.mrf.mxu0
        %v2739 = vpop.f32.mrf.mxu0
        %v2740 = vadd.f32 0.0, %v2739
        %v2741 = vpop.f32.mrf.mxu0
        %2742 = vmatprep.mubr.bf16.mxu0 0
        %2743 = vmatmul.mubr.bf16.gmra.mxu0 %v2667
        %v2744 = vpop.f32.mrf.mxu0
        %v2745 = vadd.f32 0.0, %v2744
        %v2746 = vpop.f32.mrf.mxu0
        %v2747 = vpop.f32.mrf.mxu0
        %v2748 = vadd.f32 0.0, %v2747
        %v2749 = vpop.f32.mrf.mxu0
        %2750 = vmatprep.mubr.bf16.mxu0 0
        %2751 = vmatmul.mubr.bf16.gmra.mxu0 %v2670
        %v2752 = vpop.f32.mrf.mxu0
        %v2753 = vadd.f32 0.0, %v2752
        %v2754 = vpop.f32.mrf.mxu0
        %v2755 = vpop.f32.mrf.mxu0
        %v2756 = vadd.f32 0.0, %v2755
        %v2757 = vpop.f32.mrf.mxu0
        %2758 = vmatprep.mubr.bf16.mxu0 0
        %2759 = vmatmul.mubr.bf16.gmra.mxu0 %v2673
        %v2760 = vpop.f32.mrf.mxu0
        %v2761 = vadd.f32 0.0, %v2760
        %v2762 = vpop.f32.mrf.mxu0
        %v2763 = vpop.f32.mrf.mxu0
        %v2764 = vadd.f32 0.0, %v2763
        %v2765 = vpop.f32.mrf.mxu0
        %2766 = vmatprep.mubr.bf16.mxu0 0
        %2767 = vmatmul.mubr.bf16.gmra.mxu0 %v2676
        %v2768 = vpop.f32.mrf.mxu0
        %v2769 = vadd.f32 0.0, %v2768
        %v2770 = vpop.f32.mrf.mxu0
        %v2771 = vpop.f32.mrf.mxu0
        %v2772 = vadd.f32 0.0, %v2771
        %v2773 = vpop.f32.mrf.mxu0
        %2774 = vdwg.mxu0
        %v2775 = vadd.f32 %v2629, %v2713
        %v2776 = vadd.f32 %v2630, %v2716
        %v2777 = vadd.f32 %v2631, %v2721
        %v2778 = vadd.f32 %v2632, %v2724
        %v2779 = vadd.f32 %v2633, %v2729
        %v2780 = vadd.f32 %v2634, %v2732
        %v2781 = vadd.f32 %v2635, %v2737
        %v2782 = vadd.f32 %v2636, %v2740
        %v2783 = vadd.f32 %v2637, %v2745
        %v2784 = vadd.f32 %v2638, %v2748
        %v2785 = vadd.f32 %v2639, %v2753
        %v2786 = vadd.f32 %v2640, %v2756
        %v2787 = vadd.f32 %v2641, %v2761
        %v2788 = vadd.f32 %v2642, %v2764
        %v2789 = vadd.f32 %v2643, %v2769
        %v2790 = vadd.f32 %v2644, %v2772
        %2791 = vst.msk [vmem:[#allocation2] sm:$0xff] %vm352, %v2775
        %2792 = vst.msk [vmem:[#allocation2 + $0x8] sm:$0xff] %vm352, %v2776
        %2793 = vst.msk [vmem:[#allocation2 + $0x10] sm:$0xff] %vm352, %v2777
        %2794 = vst.msk [vmem:[#allocation2 + $0x18] sm:$0xff] %vm352, %v2778
        %2795 = vst.msk [vmem:[#allocation2 + $0x20] sm:$0xff] %vm352, %v2779
        %2796 = vst.msk [vmem:[#allocation2 + $0x28] sm:$0xff] %vm352, %v2780
        %2797 = vst.msk [vmem:[#allocation2 + $0x30] sm:$0xff] %vm352, %v2781
        %2798 = vst.msk [vmem:[#allocation2 + $0x38] sm:$0xff] %vm352, %v2782
        %2799 = vst.msk [vmem:[#allocation2 + $0x40] sm:$0xff] %vm352, %v2783
        %2800 = vst.msk [vmem:[#allocation2 + $0x48] sm:$0xff] %vm352, %v2784
        %2801 = vst.msk [vmem:[#allocation2 + $0x50] sm:$0xff] %vm352, %v2785
        %2802 = vst.msk [vmem:[#allocation2 + $0x58] sm:$0xff] %vm352, %v2786
        %2803 = vst.msk [vmem:[#allocation2 + $0x60] sm:$0xff] %vm352, %v2787
        %2804 = vst.msk [vmem:[#allocation2 + $0x68] sm:$0xff] %vm352, %v2788
        %2805 = vst.msk [vmem:[#allocation2 + $0x70] sm:$0xff] %vm352, %v2789
        %2806 = vst.msk [vmem:[#allocation2 + $0x78] sm:$0xff] %vm352, %v2790
        %v2807 = vld [vmem:[#allocation2] sm:$0xff]
        %v2808 = vld [vmem:[#allocation2 + $0x8] sm:$0xff]
        %v2809 = vld [vmem:[#allocation2 + $0x10] sm:$0xff]
        %v2810 = vld [vmem:[#allocation2 + $0x18] sm:$0xff]
        %v2811 = vld [vmem:[#allocation2 + $0x20] sm:$0xff]
        %v2812 = vld [vmem:[#allocation2 + $0x28] sm:$0xff]
        %v2813 = vld [vmem:[#allocation2 + $0x30] sm:$0xff]
        %v2814 = vld [vmem:[#allocation2 + $0x38] sm:$0xff]
        %v2815 = vld [vmem:[#allocation2 + $0x40] sm:$0xff]
        %v2816 = vld [vmem:[#allocation2 + $0x48] sm:$0xff]
        %v2817 = vld [vmem:[#allocation2 + $0x50] sm:$0xff]
        %v2818 = vld [vmem:[#allocation2 + $0x58] sm:$0xff]
        %v2819 = vld [vmem:[#allocation2 + $0x60] sm:$0xff]
        %v2820 = vld [vmem:[#allocation2 + $0x68] sm:$0xff]
        %v2821 = vld [vmem:[#allocation2 + $0x70] sm:$0xff]
        %v2822 = vld [vmem:[#allocation2 + $0x78] sm:$0xff]
        %v2823 = vld [vmem:[%s2645] sm:$0xf]
        %v2824 = vld [vmem:[%s2645 + $0x4] sm:$0xf]
        %v2827 = vunpack.c.l.b16 %v2823
        %v2828 = vunpack.c.l.b16 %v2824
        %v2829 = vpack.c.b16 %v2828, %v2827
        %v2832 = vsel %vm909, %v2621, 0
        %v2835 = vsel %vm909, %v2622, 0
        %v2838 = vsel %vm909, %v2623, 0
        %v2841 = vsel %vm909, %v2624, 0
        %v2844 = vsel %vm909, %v2625, 0
        %v2847 = vsel %vm909, %v2626, 0
        %v2850 = vsel %vm909, %v2627, 0
        %v2853 = vsel %vm909, %v2628, 0
        %2855 = vmatprep.subr.bf16.mxu0 0
        %2856 = vmatpush1.bf16.msra.mxu0 0
        %2857 = vmatprep.subr.bf16.mxu0 0
        %2858 = vmatpush1.bf16.msra.mxu0 0
        %2859 = vmatprep.subr.bf16.mxu0 0
        %2860 = vmatpush1.bf16.msra.mxu0 0
        %2861 = vmatprep.subr.bf16.mxu0 0
        %2862 = vmatpush1.bf16.msra.mxu0 0
        %2863 = vmatprep.subr.bf16.mxu0 0
        %2864 = vmatpush1.bf16.msra.mxu0 0
        %2865 = vmatprep.subr.bf16.mxu0 0
        %2866 = vmatpush1.bf16.msra.mxu0 0
        %2867 = vmatprep.subr.bf16.mxu0 0
        %2868 = vmatpush1.bf16.msra.mxu0 0
        %2869 = vmatprep.subr.bf16.mxu0 0
        %2870 = vmatpush1.bf16.msra.mxu0 %v2829
        %2871 = vmatprep.subr.bf16.mxu0 0
        %2872 = vmatpush2.bf16.msra.mxu0 0
        %2873 = vmatprep.subr.bf16.mxu0 0
        %2874 = vmatpush2.bf16.msra.mxu0 0
        %2875 = vmatprep.subr.bf16.mxu0 0
        %2876 = vmatpush2.bf16.msra.mxu0 0
        %2877 = vmatprep.subr.bf16.mxu0 0
        %2878 = vmatpush2.bf16.msra.mxu0 0
        %2879 = vmatprep.subr.bf16.mxu0 0
        %2880 = vmatpush2.bf16.msra.mxu0 0
        %2881 = vmatprep.subr.bf16.mxu0 0
        %2882 = vmatpush2.bf16.msra.mxu0 0
        %2883 = vmatprep.subr.bf16.mxu0 0
        %2884 = vmatpush2.bf16.msra.mxu0 0
        %2885 = vmatprep.subr.bf16.mxu0 0
        %2886 = vmatpush2.bf16.msra.mxu0 0
        %2887 = vmatprep.mubr.bf16.mxu0 0
        %2888 = vmatmul.mubr.bf16.gmra.mxu0 %v2832
        %v2889 = vpop.f32.mrf.mxu0
        %v2890 = vadd.f32 0.0, %v2889
        %v2891 = vpop.f32.mrf.mxu0
        %v2892 = vpop.f32.mrf.mxu0
        %v2893 = vadd.f32 0.0, %v2892
        %v2894 = vpop.f32.mrf.mxu0
        %2895 = vmatprep.mubr.bf16.mxu0 0
        %2896 = vmatmul.mubr.bf16.gmra.mxu0 %v2835
        %v2897 = vpop.f32.mrf.mxu0
        %v2898 = vadd.f32 0.0, %v2897
        %v2899 = vpop.f32.mrf.mxu0
        %v2900 = vpop.f32.mrf.mxu0
        %v2901 = vadd.f32 0.0, %v2900
        %v2902 = vpop.f32.mrf.mxu0
        %2903 = vmatprep.mubr.bf16.mxu0 0
        %2904 = vmatmul.mubr.bf16.gmra.mxu0 %v2838
        %v2905 = vpop.f32.mrf.mxu0
        %v2906 = vadd.f32 0.0, %v2905
        %v2907 = vpop.f32.mrf.mxu0
        %v2908 = vpop.f32.mrf.mxu0
        %v2909 = vadd.f32 0.0, %v2908
        %v2910 = vpop.f32.mrf.mxu0
        %2911 = vmatprep.mubr.bf16.mxu0 0
        %2912 = vmatmul.mubr.bf16.gmra.mxu0 %v2841
        %v2913 = vpop.f32.mrf.mxu0
        %v2914 = vadd.f32 0.0, %v2913
        %v2915 = vpop.f32.mrf.mxu0
        %v2916 = vpop.f32.mrf.mxu0
        %v2917 = vadd.f32 0.0, %v2916
        %v2918 = vpop.f32.mrf.mxu0
        %2919 = vmatprep.mubr.bf16.mxu0 0
        %2920 = vmatmul.mubr.bf16.gmra.mxu0 %v2844
        %v2921 = vpop.f32.mrf.mxu0
        %v2922 = vadd.f32 0.0, %v2921
        %v2923 = vpop.f32.mrf.mxu0
        %v2924 = vpop.f32.mrf.mxu0
        %v2925 = vadd.f32 0.0, %v2924
        %v2926 = vpop.f32.mrf.mxu0
        %2927 = vmatprep.mubr.bf16.mxu0 0
        %2928 = vmatmul.mubr.bf16.gmra.mxu0 %v2847
        %v2929 = vpop.f32.mrf.mxu0
        %v2930 = vadd.f32 0.0, %v2929
        %v2931 = vpop.f32.mrf.mxu0
        %v2932 = vpop.f32.mrf.mxu0
        %v2933 = vadd.f32 0.0, %v2932
        %v2934 = vpop.f32.mrf.mxu0
        %2935 = vmatprep.mubr.bf16.mxu0 0
        %2936 = vmatmul.mubr.bf16.gmra.mxu0 %v2850
        %v2937 = vpop.f32.mrf.mxu0
        %v2938 = vadd.f32 0.0, %v2937
        %v2939 = vpop.f32.mrf.mxu0
        %v2940 = vpop.f32.mrf.mxu0
        %v2941 = vadd.f32 0.0, %v2940
        %v2942 = vpop.f32.mrf.mxu0
        %2943 = vmatprep.mubr.bf16.mxu0 0
        %2944 = vmatmul.mubr.bf16.gmra.mxu0 %v2853
        %v2945 = vpop.f32.mrf.mxu0
        %v2946 = vadd.f32 0.0, %v2945
        %v2947 = vpop.f32.mrf.mxu0
        %v2948 = vpop.f32.mrf.mxu0
        %v2949 = vadd.f32 0.0, %v2948
        %v2950 = vpop.f32.mrf.mxu0
        %2951 = vdwg.mxu0
        %v2952 = vadd.f32 %v2807, %v2890
        %v2953 = vadd.f32 %v2808, %v2893
        %v2954 = vadd.f32 %v2809, %v2898
        %v2955 = vadd.f32 %v2810, %v2901
        %v2956 = vadd.f32 %v2811, %v2906
        %v2957 = vadd.f32 %v2812, %v2909
        %v2958 = vadd.f32 %v2813, %v2914
        %v2959 = vadd.f32 %v2814, %v2917
        %v2960 = vadd.f32 %v2815, %v2922
        %v2961 = vadd.f32 %v2816, %v2925
        %v2962 = vadd.f32 %v2817, %v2930
        %v2963 = vadd.f32 %v2818, %v2933
        %v2964 = vadd.f32 %v2819, %v2938
        %v2965 = vadd.f32 %v2820, %v2941
        %v2966 = vadd.f32 %v2821, %v2946
        %v2967 = vadd.f32 %v2822, %v2949
        %2968 = vst.msk [vmem:[#allocation2] sm:$0xff] %vm352, %v2952
        %2969 = vst.msk [vmem:[#allocation2 + $0x8] sm:$0xff] %vm352, %v2953
        %2970 = vst.msk [vmem:[#allocation2 + $0x10] sm:$0xff] %vm352, %v2954
        %2971 = vst.msk [vmem:[#allocation2 + $0x18] sm:$0xff] %vm352, %v2955
        %2972 = vst.msk [vmem:[#allocation2 + $0x20] sm:$0xff] %vm352, %v2956
        %2973 = vst.msk [vmem:[#allocation2 + $0x28] sm:$0xff] %vm352, %v2957
        %2974 = vst.msk [vmem:[#allocation2 + $0x30] sm:$0xff] %vm352, %v2958
        %2975 = vst.msk [vmem:[#allocation2 + $0x38] sm:$0xff] %vm352, %v2959
        %2976 = vst.msk [vmem:[#allocation2 + $0x40] sm:$0xff] %vm352, %v2960
        %2977 = vst.msk [vmem:[#allocation2 + $0x48] sm:$0xff] %vm352, %v2961
        %2978 = vst.msk [vmem:[#allocation2 + $0x50] sm:$0xff] %vm352, %v2962
        %2979 = vst.msk [vmem:[#allocation2 + $0x58] sm:$0xff] %vm352, %v2963
        %2980 = vst.msk [vmem:[#allocation2 + $0x60] sm:$0xff] %vm352, %v2964
        %2981 = vst.msk [vmem:[#allocation2 + $0x68] sm:$0xff] %vm352, %v2965
        %2982 = vst.msk [vmem:[#allocation2 + $0x70] sm:$0xff] %vm352, %v2966
        %2983 = vst.msk [vmem:[#allocation2 + $0x78] sm:$0xff] %vm352, %v2967
        %v2984 = vld [vmem:[#allocation2] sm:$0xff]
        %v2985 = vld [vmem:[#allocation2 + $0x8] sm:$0xff]
        %v2986 = vld [vmem:[#allocation2 + $0x10] sm:$0xff]
        %v2987 = vld [vmem:[#allocation2 + $0x18] sm:$0xff]
        %v2988 = vld [vmem:[#allocation2 + $0x20] sm:$0xff]
        %v2989 = vld [vmem:[#allocation2 + $0x28] sm:$0xff]
        %v2990 = vld [vmem:[#allocation2 + $0x30] sm:$0xff]
        %v2991 = vld [vmem:[#allocation2 + $0x38] sm:$0xff]
        %v2992 = vld [vmem:[#allocation2 + $0x40] sm:$0xff]
        %v2993 = vld [vmem:[#allocation2 + $0x48] sm:$0xff]
        %v2994 = vld [vmem:[#allocation2 + $0x50] sm:$0xff]
        %v2995 = vld [vmem:[#allocation2 + $0x58] sm:$0xff]
        %v2996 = vld [vmem:[#allocation2 + $0x60] sm:$0xff]
        %v2997 = vld [vmem:[#allocation2 + $0x68] sm:$0xff]
        %v2998 = vld [vmem:[#allocation2 + $0x70] sm:$0xff]
        %v2999 = vld [vmem:[#allocation2 + $0x78] sm:$0xff]
        %vm3000 = vcmp.gt.f32.partialorder %v2984, 0.0
        %vm3001 = vcmp.gt.f32.partialorder %v2985, 0.0
        %vm3002 = vcmp.gt.f32.partialorder %v2986, 0.0
        %vm3003 = vcmp.gt.f32.partialorder %v2987, 0.0
        %vm3004 = vcmp.gt.f32.partialorder %v2988, 0.0
        %vm3005 = vcmp.gt.f32.partialorder %v2989, 0.0
        %vm3006 = vcmp.gt.f32.partialorder %v2990, 0.0
        %vm3007 = vcmp.gt.f32.partialorder %v2991, 0.0
        %vm3008 = vcmp.gt.f32.partialorder %v2992, 0.0
        %vm3009 = vcmp.gt.f32.partialorder %v2993, 0.0
        %vm3010 = vcmp.gt.f32.partialorder %v2994, 0.0
        %vm3011 = vcmp.gt.f32.partialorder %v2995, 0.0
        %vm3012 = vcmp.gt.f32.partialorder %v2996, 0.0
        %vm3013 = vcmp.gt.f32.partialorder %v2997, 0.0
        %vm3014 = vcmp.gt.f32.partialorder %v2998, 0.0
        %vm3015 = vcmp.gt.f32.partialorder %v2999, 0.0
        %v3016 = vmin.f32 %v2984, 0.0
        %v3017 = vmin.f32 %v2985, 0.0
        %v3018 = vmin.f32 %v2986, 0.0
        %v3019 = vmin.f32 %v2987, 0.0
        %v3020 = vmin.f32 %v2988, 0.0
        %v3021 = vmin.f32 %v2989, 0.0
        %v3022 = vmin.f32 %v2990, 0.0
        %v3023 = vmin.f32 %v2991, 0.0
        %v3024 = vmin.f32 %v2992, 0.0
        %v3025 = vmin.f32 %v2993, 0.0
        %v3026 = vmin.f32 %v2994, 0.0
        %v3027 = vmin.f32 %v2995, 0.0
        %v3028 = vmin.f32 %v2996, 0.0
        %v3029 = vmin.f32 %v2997, 0.0
        %v3030 = vmin.f32 %v2998, 0.0
        %v3031 = vmin.f32 %v2999, 0.0
        %v3032 = vmul.f32 %v3016, 1.442695
        %v3033 = vpow.pop %v3032
        %v3034 = vmul.f32 %v3017, 1.442695
        %v3035 = vpow.pop %v3034
        %v3036 = vmul.f32 %v3018, 1.442695
        %v3037 = vpow.pop %v3036
        %v3038 = vmul.f32 %v3019, 1.442695
        %v3039 = vpow.pop %v3038
        %v3040 = vmul.f32 %v3020, 1.442695
        %v3041 = vpow.pop %v3040
        %v3042 = vmul.f32 %v3021, 1.442695
        %v3043 = vpow.pop %v3042
        %v3044 = vmul.f32 %v3022, 1.442695
        %v3045 = vpow.pop %v3044
        %v3046 = vmul.f32 %v3023, 1.442695
        %v3047 = vpow.pop %v3046
        %v3048 = vmul.f32 %v3024, 1.442695
        %v3049 = vpow.pop %v3048
        %v3050 = vmul.f32 %v3025, 1.442695
        %v3051 = vpow.pop %v3050
        %v3052 = vmul.f32 %v3026, 1.442695
        %v3053 = vpow.pop %v3052
        %v3054 = vmul.f32 %v3027, 1.442695
        %v3055 = vpow.pop %v3054
        %v3056 = vmul.f32 %v3028, 1.442695
        %v3057 = vpow.pop %v3056
        %v3058 = vmul.f32 %v3029, 1.442695
        %v3059 = vpow.pop %v3058
        %v3060 = vmul.f32 %v3030, 1.442695
        %v3061 = vpow.pop %v3060
        %v3062 = vmul.f32 %v3031, 1.442695
        %v3063 = vpow.pop %v3062
        %v3064 = vsub.f32 %v3033, 1.0
        %v3065 = vsub.f32 %v3035, 1.0
        %v3066 = vsub.f32 %v3037, 1.0
        %v3067 = vsub.f32 %v3039, 1.0
        %v3068 = vsub.f32 %v3041, 1.0
        %v3069 = vsub.f32 %v3043, 1.0
        %v3070 = vsub.f32 %v3045, 1.0
        %v3071 = vsub.f32 %v3047, 1.0
        %v3072 = vsub.f32 %v3049, 1.0
        %v3073 = vsub.f32 %v3051, 1.0
        %v3074 = vsub.f32 %v3053, 1.0
        %v3075 = vsub.f32 %v3055, 1.0
        %v3076 = vsub.f32 %v3057, 1.0
        %v3077 = vsub.f32 %v3059, 1.0
        %v3078 = vsub.f32 %v3061, 1.0
        %v3079 = vsub.f32 %v3063, 1.0
        %v3080 = vsel %vm3000, %v2984, %v3064
        %v3081 = vsel %vm3001, %v2985, %v3065
        %v3082 = vsel %vm3002, %v2986, %v3066
        %v3083 = vsel %vm3003, %v2987, %v3067
        %v3084 = vsel %vm3004, %v2988, %v3068
        %v3085 = vsel %vm3005, %v2989, %v3069
        %v3086 = vsel %vm3006, %v2990, %v3070
        %v3087 = vsel %vm3007, %v2991, %v3071
        %v3088 = vsel %vm3008, %v2992, %v3072
        %v3089 = vsel %vm3009, %v2993, %v3073
        %v3090 = vsel %vm3010, %v2994, %v3074
        %v3091 = vsel %vm3011, %v2995, %v3075
        %v3092 = vsel %vm3012, %v2996, %v3076
        %v3093 = vsel %vm3013, %v2997, %v3077
        %v3094 = vsel %vm3014, %v2998, %v3078
        %v3095 = vsel %vm3015, %v2999, %v3079
        %3096 = vst.msk [vmem:[%s217] sm:$0xff] %vm352, %v3080
        %3097 = vst.msk [vmem:[%s217 + $0x8] sm:$0xff] %vm352, %v3081
        %3098 = vst.msk [vmem:[%s217 + $0x10] sm:$0xff] %vm352, %v3082
        %3099 = vst.msk [vmem:[%s217 + $0x18] sm:$0xff] %vm352, %v3083
        %3100 = vst.msk [vmem:[%s217 + $0x20] sm:$0xff] %vm352, %v3084
        %3101 = vst.msk [vmem:[%s217 + $0x28] sm:$0xff] %vm352, %v3085
        %3102 = vst.msk [vmem:[%s217 + $0x30] sm:$0xff] %vm352, %v3086
        %3103 = vst.msk [vmem:[%s217 + $0x38] sm:$0xff] %vm352, %v3087
        %3112 = vrot.lane.b32.xlu0 %v3088, 32
        %v3113 = vpop.permute.xlu0 %3112
        %3114 = vrot.lane.b32.xlu0 %v3089, 32
        %v3115 = vpop.permute.xlu0 %3114
        %3116 = vrot.lane.b32.xlu0 %v3090, 32
        %v3117 = vpop.permute.xlu0 %3116
        %3118 = vrot.lane.b32.xlu0 %v3091, 32
        %v3119 = vpop.permute.xlu0 %3118
        %3120 = vrot.lane.b32.xlu0 %v3092, 32
        %v3121 = vpop.permute.xlu0 %3120
        %3122 = vrot.lane.b32.xlu0 %v3093, 32
        %v3123 = vpop.permute.xlu0 %3122
        %3124 = vrot.lane.b32.xlu0 %v3094, 32
        %v3125 = vpop.permute.xlu0 %3124
        %3126 = vrot.lane.b32.xlu0 %v3095, 32
        %v3127 = vpop.permute.xlu0 %3126
        %vm3136 = vcmask 523520
        %3137 = vst.msk [vmem:[%s217] sm:$0xff] %vm3136, %v3113
        %3138 = vst.msk [vmem:[%s217 + $0x8] sm:$0xff] %vm3136, %v3115
        %3139 = vst.msk [vmem:[%s217 + $0x10] sm:$0xff] %vm3136, %v3117
        %3140 = vst.msk [vmem:[%s217 + $0x18] sm:$0xff] %vm3136, %v3119
        %3141 = vst.msk [vmem:[%s217 + $0x20] sm:$0xff] %vm3136, %v3121
        %3142 = vst.msk [vmem:[%s217 + $0x28] sm:$0xff] %vm3136, %v3123
        %3143 = vst.msk [vmem:[%s217 + $0x30] sm:$0xff] %vm3136, %v3125
        %3144 = vst.msk [vmem:[%s217 + $0x38] sm:$0xff] %vm3136, %v3127
        %s3145 = sand.u32 %s137, 1
        %s3146 = scalar_lea.sflag [#allocation4], %s3145
        %s3147 = sand.u32 %s137, 1
        %s3148 = smul.addr %s3147, 64
        %s3149 = scalar_lea.vmem [#allocation3], %s3148
        // Predicated region
        $region41: #{tpu_custom_call.1} parent=39 // pred_check
          %p3150 = pneg %p147
        $region42: #{tpu_custom_call.1} parent=39 // pred_check_branch
          %3152 = sbr.rel (%p3150) target = $region44
        $region43: #{tpu_custom_call.1} parent=39 // pred_region
          %s3154 = ssub.s32 1024, 1024
          %3155 = vsyncadd %s3146, %s3154
          %s3156 = smul.addr %s19, 8
          %s3157 = smul.addr %s3156, 128
          %s3158 = scalar_lea.hbm %s5, %s3157
          %s3159 = sshll.u32 %s3149, 4
          %s3160 = int_to_ptr.vmem [resolvable:$true] %s3159
          %3165 = dma.vmem_to_hbm [thread:$0]  %s3160, 1024, %s3158, %s3146, 128, 128, 8
        $region44: #{tpu_custom_call.1} parent=39 // pred_fallthru
          _
      $region40: #{tpu_custom_call.1} parent=5 // pred_fallthru
        _
      %p3166 = scmp.le.s32.totalorder 2, %s14
      // Predicated region
      $region45: #{tpu_custom_call.1} parent=5 // pred_check
        %p3167 = pneg %p3166
      $region46: #{tpu_custom_call.1} parent=5 // pred_check_branch
        %3169 = sbr.rel (%p3167) target = $region48
      $region47: #{tpu_custom_call.1} parent=5 // pred_region
        %s3170 = ssub.s32 %s14, 2
        // Predicated region
        $region49: #{tpu_custom_call.1} parent=47 // pred_check
          %p3171 = pneg %p153
        $region50: #{tpu_custom_call.1} parent=47 // pred_check_branch
          %3173 = sbr.rel (%p3171) target = $region52
        $region51: #{tpu_custom_call.1} parent=47 // pred_region
          %s3174 = sand.u32 %s138, 1
          %s3175 = scalar_lea.sflag [#allocation4], %s3174
          %s3176 = sand.u32 %s138, 1
          %s3177 = smul.addr %s3176, 64
          %s3178 = scalar_lea.vmem [#allocation3], %s3177
          %3179 = dma.done %s3175, 1024
        $region52: #{tpu_custom_call.1} parent=47 // pred_fallthru
          _
      $region48: #{tpu_custom_call.1} parent=5 // pred_fallthru
        _
    $region6: #{tpu_custom_call.1} parent=1 // loop_footer
      %s18 = sadd.s32 1, %s14
    $region7: #{tpu_custom_call.1} parent=1 // loop_footer_branch
      %13 = sbr.rel target = $region3
    $region8: #{tpu_custom_call.1} parent=1 // loop_exit
      _
    %3180 = vsyncpa [#allocation4], 1
    %s3181 = scalar_lea.sflag [#allocation4], 1
    %3182 = vsyncpa %s3181, 1

</llo_original>
